<compile_context>
chip_gen: v7x
topology: tpu7x:2x2x1
jax: 0.10.0
libtpu: 0.0.40
codegen_flags: <defaults>
</compile_context>

<pallas_src>
import functools

import jax
import jax.numpy as jnp
from jax.experimental import pallas as pl
from jax.experimental.pallas import tpu as pltpu


def _round_up(n, m):
    return ((n + m - 1) // m) * m


# ------------------------------ Pallas kernel --------------------------------
def encoder_kernel(x_ref, wq_ref, bq_ref, wk_ref, bk_ref, wv_ref, bv_ref,
                   wo_ref, bo_ref, w1_ref, b1_ref, w2_ref, b2_ref,
                   lnw_ref, lnb_ref, out_ref, *, d_model, h, q, v, zero_score):
    """Encoder forward for one (bb, S, Dp) batch block (Dp = 128-padded d_model)."""
    f32 = jnp.float32
    bb, S, Dp = x_ref.shape
    cdt = x_ref.dtype                       # MXU operand dtype (f32 or bf16)
    M = bb * S
    HVp = wo_ref.shape[0]                   # 128-padded h*v

    x = x_ref[...]                          # (bb, S, Dp)
    x2 = x.reshape(M, Dp)                   # lane-dense 2-D activations

    def mm(a, b):                           # 2-D MXU matmul, f32 accumulation
        return jnp.dot(a.astype(cdt), b, preferred_element_type=f32)

    def bmm(a, b, contract_b):              # (bb,*,*) matmul, single leading batch dim
        return jax.lax.dot_general(
            a.astype(cdt), b.astype(cdt),
            (((2,), (contract_b,)), ((0,), (0,))),
            preferred_element_type=f32)

    # ---- projections: single lane-dense 2-D matmuls (no x / weight replication)
    V3 = (mm(x2, wv_ref[...]) + bv_ref[...]).reshape(bb, S, HVp)      # f32

    if zero_score:
        # train+mask: torch.where(tril(zeros) > 0, score, 0) zeroes every score,
        # so softmax is uniform -> attention == per-head row-mean of V.  Skip the
        # Q/K projections, QK^T, exp and P@V; project the single mean row.
        ones = jnp.full((bb, 1, S), 1.0 / S, dtype=cdt)
        vbar = bmm(ones, V3, 1)                                       # (bb,1,HVp)
        mha_row = mm(vbar.reshape(bb, HVp), wo_ref[...]) + bo_ref[...]  # (bb,Dp)
        mha = jnp.broadcast_to(mha_row.reshape(bb, 1, Dp), (bb, S, Dp))
    else:
        Q3 = (mm(x2, wq_ref[...]) + bq_ref[...]).reshape(bb, S, -1)   # (bb,S,HQp)
        K3 = (mm(x2, wk_ref[...]) + bk_ref[...]).reshape(bb, S, -1)
        heads = []
        # TODO(synk): at production S, replace this with a flash-style kv-block
        # loop (online max/sum) instead of materializing (bb,S,S) per head.
        for i in range(h):
            Qi = Q3[:, :, i * q:(i + 1) * q]
            Ki = K3[:, :, i * q:(i + 1) * q]
            Vi = V3[:, :, i * v:(i + 1) * v]
            s = bmm(Qi, Ki, 2)                                        # (bb,S,S) f32
            s = s - jnp.max(s, axis=-1, keepdims=True)
            p = jnp.exp(s)
            P = p * pl.reciprocal(jnp.sum(p, axis=-1, keepdims=True), approx=True)
            heads.append(bmm(P, Vi, 1))                               # (bb,S,v)
        pad = HVp - h * v
        if pad:                                                       # lane-pad to HVp
            heads.append(jnp.zeros((bb, S, pad), f32))
        attn = jnp.concatenate(heads, axis=-1)                        # (bb,S,HVp)
        # concat-heads output projection: ONE (M, HVp) @ (HVp, Dp) matmul
        mha = (mm(attn.reshape(M, HVp), wo_ref[...]) + bo_ref[...]).reshape(bb, S, Dp)

    # ---- LayerNorm with statistics masked to the real d_model lanes (built once)
    lane = jax.lax.broadcasted_iota(jnp.int32, (1, 1, Dp), 2)
    msk = (lane < d_model).astype(f32)
    inv_d = 1.0 / d_model
    lnw = lnw_ref[...]                      # (1, Dp), zero in the padded lanes
    lnb = lnb_ref[...]

    def layer_norm(y):                      # y: (bb, S, Dp) f32, padded lanes are 0
        mu = jnp.sum(y, axis=-1, keepdims=True) * inv_d
        c = (y - mu) * msk
        var = jnp.sum(c * c, axis=-1, keepdims=True) * inv_d
        return c * jax.lax.rsqrt(var + 1e-5) * lnw + lnb

    # TODO(synk): training-mode dropout (stochastic masking) not implemented.
    y1 = layer_norm(mha + x.astype(f32))                              # (bb,S,Dp)

    # ---- position-wise feed-forward: plain 2-D matmuls, no weight replication
    # TODO(synk): at production d_hidden, tile Hp and accumulate the 2nd matmul.
    y1_2 = y1.reshape(M, Dp)
    hdn = jnp.maximum(mm(y1_2, w1_ref[...]) + b1_ref[...], 0.0)       # (M, Hp)
    ff = (mm(hdn, w2_ref[...]) + b2_ref[...]).reshape(bb, S, Dp)

    out_ref[...] = layer_norm(ff + y1).astype(out_ref.dtype)


# ------------------------------ wrapper ---------------------------------------
def encoder_forward(x, params, *, h, q, v, mask=True, stage='test',
                    compute_dtype=jnp.bfloat16, batch_block=None):
    B, S, D = x.shape
    d_hidden = params['w1'].shape[1]
    hq, hv = h * q, h * v
    Dp = _round_up(D, 128)                  # lane-dense model dim
    Hp = _round_up(d_hidden, 128)           # lane-dense FFN hidden dim
    HQp = _round_up(hq, 128)                # lane-dense Q/K projection dim
    HVp = _round_up(hv, 128)                # lane-dense V / W_o-input dim
    zero_score = bool(mask and stage == 'train')

    # grid: at least 2 "parallel" steps so v7x's two TensorCores both get work
    # and the x/out block DMAs overlap with compute.
    if batch_block is None:
        target = min(B, 4)
        bb = next((d for d in range(B, 0, -1) if B % d == 0 and B // d >= target), 1)
    else:
        bb = batch_block
    assert B % bb == 0, "batch_block must divide the batch size"

    f32 = jnp.float32
    cdt = compute_dtype
    pD, pH = Dp - D, Hp - d_hidden

    def pad2(a, r, c):
        return jnp.pad(a, ((0, r), (0, c)))

    # One-time (XLA-side) weight prep: zero-pad every matmul output dim to a
    # multiple of 128.  Weights stay un-split; heads are sliced out only inside
    # the kernel for the QK^T / P@V contractions.
    wq = pad2(params['wq'], pD, HQp - hq).astype(cdt)     # (Dp, HQp)
    wk = pad2(params['wk'], pD, HQp - hq).astype(cdt)
    wv = pad2(params['wv'], pD, HVp - hv).astype(cdt)     # (Dp, HVp)
    wo = pad2(params['wo'], HVp - hv, pD).astype(cdt)     # (HVp, Dp)
    bq = pad2(params['bq'], 0, HQp - hq).astype(f32)      # (1, HQp)
    bk = pad2(params['bk'], 0, HQp - hq).astype(f32)
    bv = pad2(params['bv'], 0, HVp - hv).astype(f32)      # (1, HVp)
    bo = pad2(params['bo'], 0, pD).astype(f32)            # (1, Dp)
    w1 = pad2(params['w1'], pD, pH).astype(cdt)           # (Dp, Hp)
    b1 = pad2(params['b1'], 0, pH).astype(f32)            # (1, Hp)
    w2 = pad2(params['w2'], pH, pD).astype(cdt)           # (Hp, Dp)
    b2 = pad2(params['b2'], 0, pD).astype(f32)            # (1, Dp)
    lnw = pad2(params['lnw'], 0, pD).astype(f32)
    lnb = pad2(params['lnb'], 0, pD).astype(f32)
    # TODO(synk): in production, keep the padded (B,S,Dp) activation layout
    # end-to-end (or alias buffers) so this pad/cast and the final [:, :, :D]
    # slice are not extra HBM passes around the kernel.
    xp = jnp.pad(x, ((0, 0), (0, 0), (0, pD))).astype(cdt)

    weights = (wq, bq, wk, bk, wv, bv, wo, bo, w1, b1, w2, b2, lnw, lnb)
    kernel = functools.partial(encoder_kernel, d_model=D, h=h, q=q, v=v,
                               zero_score=zero_score)

    # Generation-aware VMEM budget: ~80% of physical capacity (~100 MiB on
    # v5e/v6e, ~51 MiB on v7x), but no more than the kernel plausibly needs.
    try:
        vmem_cap = int(pltpu.get_tpu_info().vmem_capacity_bytes)
    except Exception:
        vmem_cap = 128 * 1024 * 1024
    weight_bytes = sum(int(a.size) * a.dtype.itemsize for a in weights)
    block_bytes = (int(bb * S * Dp)
                   * (jnp.dtype(cdt).itemsize + jnp.dtype(x.dtype).itemsize)
                   + weight_bytes)
    vmem_limit = int(min(int(0.8 * vmem_cap),
                         max(16 * 1024 * 1024, 8 * block_bytes)))

    # Advisory cost estimate for XLA's scheduler.
    toks = B * S
    attn_flops = (0 if zero_score
                  else 4 * toks * Dp * HQp + 2 * B * h * S * S * (q + v))
    flops = (attn_flops + 2 * toks * Dp * HVp + 2 * toks * HVp * Dp
             + 4 * toks * Dp * Hp)
    transcendentals = (0 if zero_score else B * h * S * S) + 2 * toks
    io_bytes = int(B * S * Dp) * (jnp.dtype(cdt).itemsize
                                  + jnp.dtype(x.dtype).itemsize)

    grid = (B // bb,)
    out_shape = jax.ShapeDtypeStruct((B, S, Dp), x.dtype)
    x_spec = pl.BlockSpec((bb, S, Dp), lambda i: (i, 0, 0))
    out_specs = pl.BlockSpec((bb, S, Dp), lambda i: (i, 0, 0))

    def wspec(a, single_buffer):
        nd = a.ndim
        if single_buffer:
            # grid-invariant weights: single-buffer to halve their VMEM footprint
            return pl.BlockSpec(a.shape, lambda i, _nd=nd: (0,) * _nd,
                                pipeline_mode=pl.Buffered(1))
        return pl.BlockSpec(a.shape, lambda i, _nd=nd: (0,) * _nd)

    def run(single_buffer):
        return pl.pallas_call(
            kernel,
            out_shape=out_shape,
            grid=grid,
            in_specs=[x_spec] + [wspec(a, single_buffer) for a in weights],
            out_specs=out_specs,
            compiler_params=pltpu.CompilerParams(
                dimension_semantics=("parallel",),
                vmem_limit_bytes=vmem_limit),
            cost_estimate=pl.CostEstimate(flops=int(flops),
                                          transcendentals=int(transcendentals),
                                          bytes_accessed=int(io_bytes + weight_bytes)),
        )(xp, *weights)

    try:
        out = run(True)
    except Exception:       # pipeline_mode=pl.Buffered not supported on this jax
        out = run(False)
    return out[:, :, :D]    # drop the lane padding (lane-dense slab inside)


# ------------------------------ pure-JAX reference -----------------------------
def _layer_norm_ref(x, w, b, eps=1e-5):
    mu = jnp.mean(x, axis=-1, keepdims=True)
    var = jnp.mean((x - mu) ** 2, axis=-1, keepdims=True)
    return (x - mu) * jax.lax.rsqrt(var + eps) * w + b


def encoder_ref(x, p, *, h, q, v, mask=True, stage='test'):
    hp = jax.lax.Precision.HIGHEST
    dot = lambda a, b: jnp.matmul(a, b, precision=hp)

    Q = dot(x, p['wq']) + p['bq'][0]
    K = dot(x, p['wk']) + p['bk'][0]
    V = dot(x, p['wv']) + p['bv'][0]
    Qh = jnp.concatenate(jnp.split(Q, h, axis=-1), axis=0)
    Kh = jnp.concatenate(jnp.split(K, h, axis=-1), axis=0)
    Vh = jnp.concatenate(jnp.split(V, h, axis=-1), axis=0)
    score = jnp.einsum('bij,bkj->bik', Qh, Kh, precision=hp)
    if mask and stage == 'train':
        score = jnp.zeros_like(score)
    score = jax.nn.softmax(score, axis=-1)
    attn = jnp.einsum('bik,bkd->bid', score, Vh, precision=hp)
    attn = jnp.concatenate(jnp.split(attn, h, axis=0), axis=-1)
    mha = dot(attn, p['wo']) + p['bo'][0]

    x1 = _layer_norm_ref(mha + x, p['lnw'][0], p['lnb'][0])
    ff = dot(jnp.maximum(dot(x1, p['w1']) + p['b1'][0], 0.0), p['w2']) + p['b2'][0]
    return _layer_norm_ref(ff + x1, p['lnw'][0], p['lnb'][0])


# ------------------------------ main -------------------------------------------
if __name__ == "__main__":
    B, S = 2, 8
    d_model, q, v, h, d_hidden = 32, 8, 8, 4, 64

    key = jax.random.PRNGKey(0)
    keys = jax.random.split(key, 16)

    def init(k, shape, scale=0.1):
        return (scale * jax.random.normal(k, shape)).astype(jnp.float32)

    params = {
        'wq': init(keys[0], (d_model, q * h)), 'bq': init(keys[1], (1, q * h)),
        'wk': init(keys[2], (d_model, q * h)), 'bk': init(keys[3], (1, q * h)),
        'wv': init(keys[4], (d_model, v * h)), 'bv': init(keys[5], (1, v * h)),
        'wo': init(keys[6], (v * h, d_model)), 'bo': init(keys[7], (1, d_model)),
        'w1': init(keys[8], (d_model, d_hidden)), 'b1': init(keys[9], (1, d_hidden)),
        'w2': init(keys[10], (d_hidden, d_model)), 'b2': init(keys[11], (1, d_model)),
        'lnw': jnp.ones((1, d_model), jnp.float32),   # nn.LayerNorm default init
        'lnb': jnp.zeros((1, d_model), jnp.float32),
    }
    x = jax.random.normal(keys[12], (B, S, d_model), dtype=jnp.float32)

    # f32 MXU operands; tolerance covers the EUP approx-reciprocal in softmax.
    for stage in ('test', 'train'):
        out = jax.block_until_ready(
            encoder_forward(x, params, h=h, q=q, v=v, mask=True, stage=stage,
                            compute_dtype=jnp.float32))
        ref = encoder_ref(x, params, h=h, q=q, v=v, mask=True, stage=stage)
        assert out.shape == (B, S, d_model)
        assert jnp.allclose(out, ref, atol=2e-2, rtol=2e-2), f"mismatch at stage={stage}"

    # default path: bf16 MXU operands (f32 accumulation / softmax / LayerNorm).
    out_bf16 = jax.block_until_ready(
        encoder_forward(x, params, h=h, q=q, v=v, mask=True, stage='test'))
    ref = encoder_ref(x, params, h=h, q=q, v=v, mask=True, stage='test')
    assert out_bf16.shape == (B, S, d_model)
    assert jnp.allclose(out_bf16, ref, atol=7e-2, rtol=7e-2), "mismatch (bf16 path)"

    print("KERNEL_OK")
</pallas_src>

<mosaic_0001>
module attributes {stable_mosaic.version = 11 : i64} {
  func.func @encoder_kernel(%arg0: i32, %arg1: memref<1x8x128xf32, #tpu.memory_space<vmem>>, %arg2: memref<128x128xf32, #tpu.memory_space<vmem>>, %arg3: memref<1x128xf32, #tpu.memory_space<vmem>>, %arg4: memref<128x128xf32, #tpu.memory_space<vmem>>, %arg5: memref<1x128xf32, #tpu.memory_space<vmem>>, %arg6: memref<128x128xf32, #tpu.memory_space<vmem>>, %arg7: memref<1x128xf32, #tpu.memory_space<vmem>>, %arg8: memref<128x128xf32, #tpu.memory_space<vmem>>, %arg9: memref<1x128xf32, #tpu.memory_space<vmem>>, %arg10: memref<128x128xf32, #tpu.memory_space<vmem>>, %arg11: memref<1x128xf32, #tpu.memory_space<vmem>>, %arg12: memref<128x128xf32, #tpu.memory_space<vmem>>, %arg13: memref<1x128xf32, #tpu.memory_space<vmem>>, %arg14: memref<1x128xf32, #tpu.memory_space<vmem>>, %arg15: memref<1x128xf32, #tpu.memory_space<vmem>>, %arg16: memref<1x8x128xf32, #tpu.memory_space<vmem>>) attributes {dimension_semantics = [#tpu.dimension_semantics<parallel>], iteration_bounds = array<i64: 2>, scalar_prefetch = 0 : i64, scratch_operands = 0 : i64, tpu.core_type = #tpu.core_type<tc>, window_params = [{transform_indices = @transform_0, window_bounds = array<i64: 1, 8, 128>}, {pipeline_mode = #tpu.pipeline_mode<synchronous>, transform_indices = @transform_1, window_bounds = array<i64: 128, 128>}, {pipeline_mode = #tpu.pipeline_mode<synchronous>, transform_indices = @transform_2, window_bounds = array<i64: 1, 128>}, {pipeline_mode = #tpu.pipeline_mode<synchronous>, transform_indices = @transform_3, window_bounds = array<i64: 128, 128>}, {pipeline_mode = #tpu.pipeline_mode<synchronous>, transform_indices = @transform_4, window_bounds = array<i64: 1, 128>}, {pipeline_mode = #tpu.pipeline_mode<synchronous>, transform_indices = @transform_5, window_bounds = array<i64: 128, 128>}, {pipeline_mode = #tpu.pipeline_mode<synchronous>, transform_indices = @transform_6, window_bounds = array<i64: 1, 128>}, {pipeline_mode = #tpu.pipeline_mode<synchronous>, transform_indices = @transform_7, window_bounds = array<i64: 128, 128>}, {pipeline_mode = #tpu.pipeline_mode<synchronous>, transform_indices = @transform_8, window_bounds = array<i64: 1, 128>}, {pipeline_mode = #tpu.pipeline_mode<synchronous>, transform_indices = @transform_9, window_bounds = array<i64: 128, 128>}, {pipeline_mode = #tpu.pipeline_mode<synchronous>, transform_indices = @transform_10, window_bounds = array<i64: 1, 128>}, {pipeline_mode = #tpu.pipeline_mode<synchronous>, transform_indices = @transform_11, window_bounds = array<i64: 128, 128>}, {pipeline_mode = #tpu.pipeline_mode<synchronous>, transform_indices = @transform_12, window_bounds = array<i64: 1, 128>}, {pipeline_mode = #tpu.pipeline_mode<synchronous>, transform_indices = @transform_13, window_bounds = array<i64: 1, 128>}, {pipeline_mode = #tpu.pipeline_mode<synchronous>, transform_indices = @transform_14, window_bounds = array<i64: 1, 128>}, {transform_indices = @transform_15, window_bounds = array<i64: 1, 8, 128>}]} {
    %c0 = arith.constant 0 : index
    %c0_0 = arith.constant 0 : index
    %c0_1 = arith.constant 0 : index
    %0 = vector.load %arg1[%c0, %c0_0, %c0_1] : memref<1x8x128xf32, #tpu.memory_space<vmem>>, vector<1x8x128xf32>
    %1 = vector.shape_cast %0 : vector<1x8x128xf32> to vector<8x128xf32>
    %c0_2 = arith.constant 0 : index
    %c0_3 = arith.constant 0 : index
    %2 = vector.load %arg6[%c0_2, %c0_3] : memref<128x128xf32, #tpu.memory_space<vmem>>, vector<128x128xf32>
    %cst = arith.constant dense<0.000000e+00> : vector<8x128xf32>
    %3 = tpu.matmul %1, %2, %cst {dimension_numbers = #tpu.dot_dimension_numbers<[1], [0], [0], [1], [0, 0, 1, 1], [], []>} : vector<8x128xf32>, vector<128x128xf32>, vector<8x128xf32> -> vector<8x128xf32>
    %c0_4 = arith.constant 0 : index
    %c0_5 = arith.constant 0 : index
    %4 = vector.load %arg7[%c0_4, %c0_5] : memref<1x128xf32, #tpu.memory_space<vmem>>, vector<1x128xf32>
    %5 = vector.broadcast %4 : vector<1x128xf32> to vector<8x128xf32>
    %6 = arith.addf %3, %5 : vector<8x128xf32>
    %7 = vector.shape_cast %6 : vector<8x128xf32> to vector<1x8x128xf32>
    %c0_6 = arith.constant 0 : index
    %c0_7 = arith.constant 0 : index
    %8 = vector.load %arg2[%c0_6, %c0_7] : memref<128x128xf32, #tpu.memory_space<vmem>>, vector<128x128xf32>
    %cst_8 = arith.constant dense<0.000000e+00> : vector<8x128xf32>
    %9 = tpu.matmul %1, %8, %cst_8 {dimension_numbers = #tpu.dot_dimension_numbers<[1], [0], [0], [1], [0, 0, 1, 1], [], []>} : vector<8x128xf32>, vector<128x128xf32>, vector<8x128xf32> -> vector<8x128xf32>
    %c0_9 = arith.constant 0 : index
    %c0_10 = arith.constant 0 : index
    %10 = vector.load %arg3[%c0_9, %c0_10] : memref<1x128xf32, #tpu.memory_space<vmem>>, vector<1x128xf32>
    %11 = vector.broadcast %10 : vector<1x128xf32> to vector<8x128xf32>
    %12 = arith.addf %9, %11 : vector<8x128xf32>
    %13 = vector.shape_cast %12 : vector<8x128xf32> to vector<1x8x128xf32>
    %c0_11 = arith.constant 0 : index
    %c0_12 = arith.constant 0 : index
    %14 = vector.load %arg4[%c0_11, %c0_12] : memref<128x128xf32, #tpu.memory_space<vmem>>, vector<128x128xf32>
    %cst_13 = arith.constant dense<0.000000e+00> : vector<8x128xf32>
    %15 = tpu.matmul %1, %14, %cst_13 {dimension_numbers = #tpu.dot_dimension_numbers<[1], [0], [0], [1], [0, 0, 1, 1], [], []>} : vector<8x128xf32>, vector<128x128xf32>, vector<8x128xf32> -> vector<8x128xf32>
    %c0_14 = arith.constant 0 : index
    %c0_15 = arith.constant 0 : index
    %16 = vector.load %arg5[%c0_14, %c0_15] : memref<1x128xf32, #tpu.memory_space<vmem>>, vector<1x128xf32>
    %17 = vector.broadcast %16 : vector<1x128xf32> to vector<8x128xf32>
    %18 = arith.addf %15, %17 : vector<8x128xf32>
    %19 = vector.shape_cast %18 : vector<8x128xf32> to vector<1x8x128xf32>
    %20 = vector.extract_strided_slice %13 {offsets = [0, 0, 0], sizes = [1, 8, 8], strides = [1, 1, 1]} : vector<1x8x128xf32> to vector<1x8x8xf32>
    %21 = vector.extract_strided_slice %19 {offsets = [0, 0, 0], sizes = [1, 8, 8], strides = [1, 1, 1]} : vector<1x8x128xf32> to vector<1x8x8xf32>
    %22 = vector.extract_strided_slice %7 {offsets = [0, 0, 0], sizes = [1, 8, 8], strides = [1, 1, 1]} : vector<1x8x128xf32> to vector<1x8x8xf32>
    %cst_16 = arith.constant dense<0.000000e+00> : vector<1x8x8xf32>
    %23 = tpu.matmul %20, %21, %cst_16 {dimension_numbers = #tpu.dot_dimension_numbers<[2], [2], [1], [1], [0, 0, 0, 1, 1, 1], [0], [0]>} : vector<1x8x8xf32>, vector<1x8x8xf32>, vector<1x8x8xf32> -> vector<1x8x8xf32>
    %cst_17 = arith.constant dense<0xFF800000> : vector<1x8xf32>
    %24 = vector.multi_reduction <maximumf>, %23, %cst_17 [2] : vector<1x8x8xf32> to vector<1x8xf32>
    %25 = vector.shape_cast %24 : vector<1x8xf32> to vector<1x8x1xf32>
    %26 = vector.broadcast %25 : vector<1x8x1xf32> to vector<1x8x8xf32>
    %27 = arith.subf %23, %26 : vector<1x8x8xf32>
    %28 = math.exp %27 : vector<1x8x8xf32>
    %cst_18 = arith.constant dense<0.000000e+00> : vector<1x8xf32>
    %29 = vector.multi_reduction <add>, %28, %cst_18 [2] : vector<1x8x8xf32> to vector<1x8xf32>
    %30 = vector.shape_cast %29 : vector<1x8xf32> to vector<1x8x1xf32>
    %31 = tpu.reciprocal %30 {approx = true} : vector<1x8x1xf32> -> vector<1x8x1xf32>
    %32 = vector.broadcast %31 : vector<1x8x1xf32> to vector<1x8x8xf32>
    %33 = arith.mulf %28, %32 : vector<1x8x8xf32>
    %cst_19 = arith.constant dense<0.000000e+00> : vector<1x8x8xf32>
    %34 = tpu.matmul %33, %22, %cst_19 {dimension_numbers = #tpu.dot_dimension_numbers<[2], [1], [1], [2], [0, 0, 0, 1, 1, 2], [0], [0]>} : vector<1x8x8xf32>, vector<1x8x8xf32>, vector<1x8x8xf32> -> vector<1x8x8xf32>
    %35 = vector.extract_strided_slice %13 {offsets = [0, 0, 8], sizes = [1, 8, 8], strides = [1, 1, 1]} : vector<1x8x128xf32> to vector<1x8x8xf32>
    %36 = vector.extract_strided_slice %19 {offsets = [0, 0, 8], sizes = [1, 8, 8], strides = [1, 1, 1]} : vector<1x8x128xf32> to vector<1x8x8xf32>
    %37 = vector.extract_strided_slice %7 {offsets = [0, 0, 8], sizes = [1, 8, 8], strides = [1, 1, 1]} : vector<1x8x128xf32> to vector<1x8x8xf32>
    %cst_20 = arith.constant dense<0.000000e+00> : vector<1x8x8xf32>
    %38 = tpu.matmul %35, %36, %cst_20 {dimension_numbers = #tpu.dot_dimension_numbers<[2], [2], [1], [1], [0, 0, 0, 1, 1, 1], [0], [0]>} : vector<1x8x8xf32>, vector<1x8x8xf32>, vector<1x8x8xf32> -> vector<1x8x8xf32>
    %cst_21 = arith.constant dense<0xFF800000> : vector<1x8xf32>
    %39 = vector.multi_reduction <maximumf>, %38, %cst_21 [2] : vector<1x8x8xf32> to vector<1x8xf32>
    %40 = vector.shape_cast %39 : vector<1x8xf32> to vector<1x8x1xf32>
    %41 = vector.broadcast %40 : vector<1x8x1xf32> to vector<1x8x8xf32>
    %42 = arith.subf %38, %41 : vector<1x8x8xf32>
    %43 = math.exp %42 : vector<1x8x8xf32>
    %cst_22 = arith.constant dense<0.000000e+00> : vector<1x8xf32>
    %44 = vector.multi_reduction <add>, %43, %cst_22 [2] : vector<1x8x8xf32> to vector<1x8xf32>
    %45 = vector.shape_cast %44 : vector<1x8xf32> to vector<1x8x1xf32>
    %46 = tpu.reciprocal %45 {approx = true} : vector<1x8x1xf32> -> vector<1x8x1xf32>
    %47 = vector.broadcast %46 : vector<1x8x1xf32> to vector<1x8x8xf32>
    %48 = arith.mulf %43, %47 : vector<1x8x8xf32>
    %cst_23 = arith.constant dense<0.000000e+00> : vector<1x8x8xf32>
    %49 = tpu.matmul %48, %37, %cst_23 {dimension_numbers = #tpu.dot_dimension_numbers<[2], [1], [1], [2], [0, 0, 0, 1, 1, 2], [0], [0]>} : vector<1x8x8xf32>, vector<1x8x8xf32>, vector<1x8x8xf32> -> vector<1x8x8xf32>
    %50 = vector.extract_strided_slice %13 {offsets = [0, 0, 16], sizes = [1, 8, 8], strides = [1, 1, 1]} : vector<1x8x128xf32> to vector<1x8x8xf32>
    %51 = vector.extract_strided_slice %19 {offsets = [0, 0, 16], sizes = [1, 8, 8], strides = [1, 1, 1]} : vector<1x8x128xf32> to vector<1x8x8xf32>
    %52 = vector.extract_strided_slice %7 {offsets = [0, 0, 16], sizes = [1, 8, 8], strides = [1, 1, 1]} : vector<1x8x128xf32> to vector<1x8x8xf32>
    %cst_24 = arith.constant dense<0.000000e+00> : vector<1x8x8xf32>
    %53 = tpu.matmul %50, %51, %cst_24 {dimension_numbers = #tpu.dot_dimension_numbers<[2], [2], [1], [1], [0, 0, 0, 1, 1, 1], [0], [0]>} : vector<1x8x8xf32>, vector<1x8x8xf32>, vector<1x8x8xf32> -> vector<1x8x8xf32>
    %cst_25 = arith.constant dense<0xFF800000> : vector<1x8xf32>
    %54 = vector.multi_reduction <maximumf>, %53, %cst_25 [2] : vector<1x8x8xf32> to vector<1x8xf32>
    %55 = vector.shape_cast %54 : vector<1x8xf32> to vector<1x8x1xf32>
    %56 = vector.broadcast %55 : vector<1x8x1xf32> to vector<1x8x8xf32>
    %57 = arith.subf %53, %56 : vector<1x8x8xf32>
    %58 = math.exp %57 : vector<1x8x8xf32>
    %cst_26 = arith.constant dense<0.000000e+00> : vector<1x8xf32>
    %59 = vector.multi_reduction <add>, %58, %cst_26 [2] : vector<1x8x8xf32> to vector<1x8xf32>
    %60 = vector.shape_cast %59 : vector<1x8xf32> to vector<1x8x1xf32>
    %61 = tpu.reciprocal %60 {approx = true} : vector<1x8x1xf32> -> vector<1x8x1xf32>
    %62 = vector.broadcast %61 : vector<1x8x1xf32> to vector<1x8x8xf32>
    %63 = arith.mulf %58, %62 : vector<1x8x8xf32>
    %cst_27 = arith.constant dense<0.000000e+00> : vector<1x8x8xf32>
    %64 = tpu.matmul %63, %52, %cst_27 {dimension_numbers = #tpu.dot_dimension_numbers<[2], [1], [1], [2], [0, 0, 0, 1, 1, 2], [0], [0]>} : vector<1x8x8xf32>, vector<1x8x8xf32>, vector<1x8x8xf32> -> vector<1x8x8xf32>
    %65 = vector.extract_strided_slice %13 {offsets = [0, 0, 24], sizes = [1, 8, 8], strides = [1, 1, 1]} : vector<1x8x128xf32> to vector<1x8x8xf32>
    %66 = vector.extract_strided_slice %19 {offsets = [0, 0, 24], sizes = [1, 8, 8], strides = [1, 1, 1]} : vector<1x8x128xf32> to vector<1x8x8xf32>
    %67 = vector.extract_strided_slice %7 {offsets = [0, 0, 24], sizes = [1, 8, 8], strides = [1, 1, 1]} : vector<1x8x128xf32> to vector<1x8x8xf32>
    %cst_28 = arith.constant dense<0.000000e+00> : vector<1x8x8xf32>
    %68 = tpu.matmul %65, %66, %cst_28 {dimension_numbers = #tpu.dot_dimension_numbers<[2], [2], [1], [1], [0, 0, 0, 1, 1, 1], [0], [0]>} : vector<1x8x8xf32>, vector<1x8x8xf32>, vector<1x8x8xf32> -> vector<1x8x8xf32>
    %cst_29 = arith.constant dense<0xFF800000> : vector<1x8xf32>
    %69 = vector.multi_reduction <maximumf>, %68, %cst_29 [2] : vector<1x8x8xf32> to vector<1x8xf32>
    %70 = vector.shape_cast %69 : vector<1x8xf32> to vector<1x8x1xf32>
    %71 = vector.broadcast %70 : vector<1x8x1xf32> to vector<1x8x8xf32>
    %72 = arith.subf %68, %71 : vector<1x8x8xf32>
    %73 = math.exp %72 : vector<1x8x8xf32>
    %cst_30 = arith.constant dense<0.000000e+00> : vector<1x8xf32>
    %74 = vector.multi_reduction <add>, %73, %cst_30 [2] : vector<1x8x8xf32> to vector<1x8xf32>
    %75 = vector.shape_cast %74 : vector<1x8xf32> to vector<1x8x1xf32>
    %76 = tpu.reciprocal %75 {approx = true} : vector<1x8x1xf32> -> vector<1x8x1xf32>
    %77 = vector.broadcast %76 : vector<1x8x1xf32> to vector<1x8x8xf32>
    %78 = arith.mulf %73, %77 : vector<1x8x8xf32>
    %cst_31 = arith.constant dense<0.000000e+00> : vector<1x8x8xf32>
    %79 = tpu.matmul %78, %67, %cst_31 {dimension_numbers = #tpu.dot_dimension_numbers<[2], [1], [1], [2], [0, 0, 0, 1, 1, 2], [0], [0]>} : vector<1x8x8xf32>, vector<1x8x8xf32>, vector<1x8x8xf32> -> vector<1x8x8xf32>
    %cst_32 = arith.constant 0.000000e+00 : f32
    %80 = vector.broadcast %cst_32 : f32 to vector<1x8x96xf32>
    %81 = tpu.concatenate %34, %49, %64, %79, %80 in 2 : vector<1x8x8xf32>, vector<1x8x8xf32>, vector<1x8x8xf32>, vector<1x8x8xf32>, vector<1x8x96xf32> -> vector<1x8x128xf32>
    %82 = vector.shape_cast %81 : vector<1x8x128xf32> to vector<8x128xf32>
    %c0_33 = arith.constant 0 : index
    %c0_34 = arith.constant 0 : index
    %83 = vector.load %arg8[%c0_33, %c0_34] : memref<128x128xf32, #tpu.memory_space<vmem>>, vector<128x128xf32>
    %cst_35 = arith.constant dense<0.000000e+00> : vector<8x128xf32>
    %84 = tpu.matmul %82, %83, %cst_35 {dimension_numbers = #tpu.dot_dimension_numbers<[1], [0], [0], [1], [0, 0, 1, 1], [], []>} : vector<8x128xf32>, vector<128x128xf32>, vector<8x128xf32> -> vector<8x128xf32>
    %c0_36 = arith.constant 0 : index
    %c0_37 = arith.constant 0 : index
    %85 = vector.load %arg9[%c0_36, %c0_37] : memref<1x128xf32, #tpu.memory_space<vmem>>, vector<1x128xf32>
    %86 = vector.broadcast %85 : vector<1x128xf32> to vector<8x128xf32>
    %87 = arith.addf %84, %86 : vector<8x128xf32>
    %88 = vector.shape_cast %87 : vector<8x128xf32> to vector<1x8x128xf32>
    %89 = tpu.iota {dimensions = array<i32: 2>} : vector<1x1x128xi32>
    %c32_i32 = arith.constant 32 : i32
    %90 = vector.broadcast %c32_i32 : i32 to vector<1x1x128xi32>
    %91 = arith.cmpi slt, %89, %90 : vector<1x1x128xi32>
    %92 = arith.extui %91 : vector<1x1x128xi1> to vector<1x1x128xi32>
    %93 = arith.sitofp %92 : vector<1x1x128xi32> to vector<1x1x128xf32>
    %c0_38 = arith.constant 0 : index
    %c0_39 = arith.constant 0 : index
    %94 = vector.load %arg14[%c0_38, %c0_39] : memref<1x128xf32, #tpu.memory_space<vmem>>, vector<1x128xf32>
    %c0_40 = arith.constant 0 : index
    %c0_41 = arith.constant 0 : index
    %95 = vector.load %arg15[%c0_40, %c0_41] : memref<1x128xf32, #tpu.memory_space<vmem>>, vector<1x128xf32>
    %96 = arith.addf %88, %0 : vector<1x8x128xf32>
    %cst_42 = arith.constant dense<0.000000e+00> : vector<1x8xf32>
    %97 = vector.multi_reduction <add>, %96, %cst_42 [2] : vector<1x8x128xf32> to vector<1x8xf32>
    %98 = vector.shape_cast %97 : vector<1x8xf32> to vector<1x8x1xf32>
    %cst_43 = arith.constant 3.125000e-02 : f32
    %99 = vector.broadcast %cst_43 : f32 to vector<1x8x1xf32>
    %100 = arith.mulf %98, %99 : vector<1x8x1xf32>
    %101 = vector.broadcast %100 : vector<1x8x1xf32> to vector<1x8x128xf32>
    %102 = arith.subf %96, %101 : vector<1x8x128xf32>
    %103 = vector.broadcast %93 : vector<1x1x128xf32> to vector<1x8x128xf32>
    %104 = arith.mulf %102, %103 : vector<1x8x128xf32>
    %105 = arith.mulf %104, %104 : vector<1x8x128xf32>
    %cst_44 = arith.constant dense<0.000000e+00> : vector<1x8xf32>
    %106 = vector.multi_reduction <add>, %105, %cst_44 [2] : vector<1x8x128xf32> to vector<1x8xf32>
    %107 = vector.shape_cast %106 : vector<1x8xf32> to vector<1x8x1xf32>
    %cst_45 = arith.constant 3.125000e-02 : f32
    %108 = vector.broadcast %cst_45 : f32 to vector<1x8x1xf32>
    %109 = arith.mulf %107, %108 : vector<1x8x1xf32>
    %cst_46 = arith.constant 9.99999974E-6 : f32
    %110 = vector.broadcast %cst_46 : f32 to vector<1x8x1xf32>
    %111 = arith.addf %109, %110 : vector<1x8x1xf32>
    %112 = math.rsqrt %111 : vector<1x8x1xf32>
    %113 = vector.broadcast %112 : vector<1x8x1xf32> to vector<1x8x128xf32>
    %114 = arith.mulf %104, %113 : vector<1x8x128xf32>
    %115 = vector.shape_cast %94 : vector<1x128xf32> to vector<1x1x128xf32>
    %116 = vector.broadcast %115 : vector<1x1x128xf32> to vector<1x8x128xf32>
    %117 = arith.mulf %114, %116 : vector<1x8x128xf32>
    %118 = vector.shape_cast %95 : vector<1x128xf32> to vector<1x1x128xf32>
    %119 = vector.broadcast %118 : vector<1x1x128xf32> to vector<1x8x128xf32>
    %120 = arith.addf %117, %119 : vector<1x8x128xf32>
    %121 = vector.shape_cast %120 : vector<1x8x128xf32> to vector<8x128xf32>
    %c0_47 = arith.constant 0 : index
    %c0_48 = arith.constant 0 : index
    %122 = vector.load %arg10[%c0_47, %c0_48] : memref<128x128xf32, #tpu.memory_space<vmem>>, vector<128x128xf32>
    %cst_49 = arith.constant dense<0.000000e+00> : vector<8x128xf32>
    %123 = tpu.matmul %121, %122, %cst_49 {dimension_numbers = #tpu.dot_dimension_numbers<[1], [0], [0], [1], [0, 0, 1, 1], [], []>} : vector<8x128xf32>, vector<128x128xf32>, vector<8x128xf32> -> vector<8x128xf32>
    %c0_50 = arith.constant 0 : index
    %c0_51 = arith.constant 0 : index
    %124 = vector.load %arg11[%c0_50, %c0_51] : memref<1x128xf32, #tpu.memory_space<vmem>>, vector<1x128xf32>
    %125 = vector.broadcast %124 : vector<1x128xf32> to vector<8x128xf32>
    %126 = arith.addf %123, %125 : vector<8x128xf32>
    %cst_52 = arith.constant 0.000000e+00 : f32
    %127 = vector.broadcast %cst_52 : f32 to vector<8x128xf32>
    %128 = arith.maximumf %126, %127 : vector<8x128xf32>
    %c0_53 = arith.constant 0 : index
    %c0_54 = arith.constant 0 : index
    %129 = vector.load %arg12[%c0_53, %c0_54] : memref<128x128xf32, #tpu.memory_space<vmem>>, vector<128x128xf32>
    %cst_55 = arith.constant dense<0.000000e+00> : vector<8x128xf32>
    %130 = tpu.matmul %128, %129, %cst_55 {dimension_numbers = #tpu.dot_dimension_numbers<[1], [0], [0], [1], [0, 0, 1, 1], [], []>} : vector<8x128xf32>, vector<128x128xf32>, vector<8x128xf32> -> vector<8x128xf32>
    %c0_56 = arith.constant 0 : index
    %c0_57 = arith.constant 0 : index
    %131 = vector.load %arg13[%c0_56, %c0_57] : memref<1x128xf32, #tpu.memory_space<vmem>>, vector<1x128xf32>
    %132 = vector.broadcast %131 : vector<1x128xf32> to vector<8x128xf32>
    %133 = arith.addf %130, %132 : vector<8x128xf32>
    %134 = vector.shape_cast %133 : vector<8x128xf32> to vector<1x8x128xf32>
    %135 = arith.addf %134, %120 : vector<1x8x128xf32>
    %cst_58 = arith.constant dense<0.000000e+00> : vector<1x8xf32>
    %136 = vector.multi_reduction <add>, %135, %cst_58 [2] : vector<1x8x128xf32> to vector<1x8xf32>
    %137 = vector.shape_cast %136 : vector<1x8xf32> to vector<1x8x1xf32>
    %cst_59 = arith.constant 3.125000e-02 : f32
    %138 = vector.broadcast %cst_59 : f32 to vector<1x8x1xf32>
    %139 = arith.mulf %137, %138 : vector<1x8x1xf32>
    %140 = vector.broadcast %139 : vector<1x8x1xf32> to vector<1x8x128xf32>
    %141 = arith.subf %135, %140 : vector<1x8x128xf32>
    %142 = vector.broadcast %93 : vector<1x1x128xf32> to vector<1x8x128xf32>
    %143 = arith.mulf %141, %142 : vector<1x8x128xf32>
    %144 = arith.mulf %143, %143 : vector<1x8x128xf32>
    %cst_60 = arith.constant dense<0.000000e+00> : vector<1x8xf32>
    %145 = vector.multi_reduction <add>, %144, %cst_60 [2] : vector<1x8x128xf32> to vector<1x8xf32>
    %146 = vector.shape_cast %145 : vector<1x8xf32> to vector<1x8x1xf32>
    %cst_61 = arith.constant 3.125000e-02 : f32
    %147 = vector.broadcast %cst_61 : f32 to vector<1x8x1xf32>
    %148 = arith.mulf %146, %147 : vector<1x8x1xf32>
    %cst_62 = arith.constant 9.99999974E-6 : f32
    %149 = vector.broadcast %cst_62 : f32 to vector<1x8x1xf32>
    %150 = arith.addf %148, %149 : vector<1x8x1xf32>
    %151 = math.rsqrt %150 : vector<1x8x1xf32>
    %152 = vector.broadcast %151 : vector<1x8x1xf32> to vector<1x8x128xf32>
    %153 = arith.mulf %143, %152 : vector<1x8x128xf32>
    %154 = vector.shape_cast %94 : vector<1x128xf32> to vector<1x1x128xf32>
    %155 = vector.broadcast %154 : vector<1x1x128xf32> to vector<1x8x128xf32>
    %156 = arith.mulf %153, %155 : vector<1x8x128xf32>
    %157 = vector.shape_cast %95 : vector<1x128xf32> to vector<1x1x128xf32>
    %158 = vector.broadcast %157 : vector<1x1x128xf32> to vector<1x8x128xf32>
    %159 = arith.addf %156, %158 : vector<1x8x128xf32>
    %c0_63 = arith.constant 0 : index
    %c0_64 = arith.constant 0 : index
    %c0_65 = arith.constant 0 : index
    %160 = vector.load %arg16[%c0_63, %c0_64, %c0_65] : memref<1x8x128xf32, #tpu.memory_space<vmem>>, vector<1x8x128xf32>
    tpu.vector_store %arg16[%c0_63, %c0_64, %c0_65], %159 {strides = array<i32>} : memref<1x8x128xf32, #tpu.memory_space<vmem>>, vector<1x8x128xf32>,
    return
  }
  func.func @transform_0(%arg0: i32) -> (i32, i32, i32) {
    %c0_i32 = arith.constant 0 : i32
    %c0_i32_0 = arith.constant 0 : i32
    %c0_i32_1 = arith.constant 0 : i32
    return %arg0, %c0_i32, %c0_i32_0 : i32, i32, i32
  }
  func.func @transform_1(%arg0: i32) -> (i32, i32) {
    %c0_i32 = arith.constant 0 : i32
    %c0_i32_0 = arith.constant 0 : i32
    %c0_i32_1 = arith.constant 0 : i32
    return %c0_i32, %c0_i32_0 : i32, i32
  }
  func.func @transform_2(%arg0: i32) -> (i32, i32) {
    %c0_i32 = arith.constant 0 : i32
    %c0_i32_0 = arith.constant 0 : i32
    %c0_i32_1 = arith.constant 0 : i32
    return %c0_i32, %c0_i32_0 : i32, i32
  }
  func.func @transform_3(%arg0: i32) -> (i32, i32) {
    %c0_i32 = arith.constant 0 : i32
    %c0_i32_0 = arith.constant 0 : i32
    %c0_i32_1 = arith.constant 0 : i32
    return %c0_i32, %c0_i32_0 : i32, i32
  }
  func.func @transform_4(%arg0: i32) -> (i32, i32) {
    %c0_i32 = arith.constant 0 : i32
    %c0_i32_0 = arith.constant 0 : i32
    %c0_i32_1 = arith.constant 0 : i32
    return %c0_i32, %c0_i32_0 : i32, i32
  }
  func.func @transform_5(%arg0: i32) -> (i32, i32) {
    %c0_i32 = arith.constant 0 : i32
    %c0_i32_0 = arith.constant 0 : i32
    %c0_i32_1 = arith.constant 0 : i32
    return %c0_i32, %c0_i32_0 : i32, i32
  }
  func.func @transform_6(%arg0: i32) -> (i32, i32) {
    %c0_i32 = arith.constant 0 : i32
    %c0_i32_0 = arith.constant 0 : i32
    %c0_i32_1 = arith.constant 0 : i32
    return %c0_i32, %c0_i32_0 : i32, i32
  }
  func.func @transform_7(%arg0: i32) -> (i32, i32) {
    %c0_i32 = arith.constant 0 : i32
    %c0_i32_0 = arith.constant 0 : i32
    %c0_i32_1 = arith.constant 0 : i32
    return %c0_i32, %c0_i32_0 : i32, i32
  }
  func.func @transform_8(%arg0: i32) -> (i32, i32) {
    %c0_i32 = arith.constant 0 : i32
    %c0_i32_0 = arith.constant 0 : i32
    %c0_i32_1 = arith.constant 0 : i32
    return %c0_i32, %c0_i32_0 : i32, i32
  }
  func.func @transform_9(%arg0: i32) -> (i32, i32) {
    %c0_i32 = arith.constant 0 : i32
    %c0_i32_0 = arith.constant 0 : i32
    %c0_i32_1 = arith.constant 0 : i32
    return %c0_i32, %c0_i32_0 : i32, i32
  }
  func.func @transform_10(%arg0: i32) -> (i32, i32) {
    %c0_i32 = arith.constant 0 : i32
    %c0_i32_0 = arith.constant 0 : i32
    %c0_i32_1 = arith.constant 0 : i32
    return %c0_i32, %c0_i32_0 : i32, i32
  }
  func.func @transform_11(%arg0: i32) -> (i32, i32) {
    %c0_i32 = arith.constant 0 : i32
    %c0_i32_0 = arith.constant 0 : i32
    %c0_i32_1 = arith.constant 0 : i32
    return %c0_i32, %c0_i32_0 : i32, i32
  }
  func.func @transform_12(%arg0: i32) -> (i32, i32) {
    %c0_i32 = arith.constant 0 : i32
    %c0_i32_0 = arith.constant 0 : i32
    %c0_i32_1 = arith.constant 0 : i32
    return %c0_i32, %c0_i32_0 : i32, i32
  }
  func.func @transform_13(%arg0: i32) -> (i32, i32) {
    %c0_i32 = arith.constant 0 : i32
    %c0_i32_0 = arith.constant 0 : i32
    %c0_i32_1 = arith.constant 0 : i32
    return %c0_i32, %c0_i32_0 : i32, i32
  }
  func.func @transform_14(%arg0: i32) -> (i32, i32) {
    %c0_i32 = arith.constant 0 : i32
    %c0_i32_0 = arith.constant 0 : i32
    %c0_i32_1 = arith.constant 0 : i32
    return %c0_i32, %c0_i32_0 : i32, i32
  }
  func.func @transform_15(%arg0: i32) -> (i32, i32, i32) {
    %c0_i32 = arith.constant 0 : i32
    %c0_i32_0 = arith.constant 0 : i32
    %c0_i32_1 = arith.constant 0 : i32
    return %arg0, %c0_i32, %c0_i32_0 : i32, i32, i32
  }
}

module attributes {stable_mosaic.version = 11 : i64} {
  func.func @encoder_kernel(%arg0: i32, %arg1: memref<1x8x128xf32, #tpu.memory_space<vmem>>, %arg2: memref<128x128xf32, #tpu.memory_space<vmem>>, %arg3: memref<1x128xf32, #tpu.memory_space<vmem>>, %arg4: memref<128x128xf32, #tpu.memory_space<vmem>>, %arg5: memref<1x128xf32, #tpu.memory_space<vmem>>, %arg6: memref<128x128xf32, #tpu.memory_space<vmem>>, %arg7: memref<1x128xf32, #tpu.memory_space<vmem>>, %arg8: memref<128x128xf32, #tpu.memory_space<vmem>>, %arg9: memref<1x128xf32, #tpu.memory_space<vmem>>, %arg10: memref<128x128xf32, #tpu.memory_space<vmem>>, %arg11: memref<1x128xf32, #tpu.memory_space<vmem>>, %arg12: memref<128x128xf32, #tpu.memory_space<vmem>>, %arg13: memref<1x128xf32, #tpu.memory_space<vmem>>, %arg14: memref<1x128xf32, #tpu.memory_space<vmem>>, %arg15: memref<1x128xf32, #tpu.memory_space<vmem>>, %arg16: memref<1x8x128xf32, #tpu.memory_space<vmem>>) attributes {dimension_semantics = [#tpu.dimension_semantics<parallel>], iteration_bounds = array<i64: 2>, scalar_prefetch = 0 : i64, scratch_operands = 0 : i64, tpu.core_type = #tpu.core_type<tc>, window_params = [{transform_indices = @transform_0, window_bounds = array<i64: 1, 8, 128>}, {pipeline_mode = #tpu.pipeline_mode<synchronous>, transform_indices = @transform_1, window_bounds = array<i64: 128, 128>}, {pipeline_mode = #tpu.pipeline_mode<synchronous>, transform_indices = @transform_2, window_bounds = array<i64: 1, 128>}, {pipeline_mode = #tpu.pipeline_mode<synchronous>, transform_indices = @transform_3, window_bounds = array<i64: 128, 128>}, {pipeline_mode = #tpu.pipeline_mode<synchronous>, transform_indices = @transform_4, window_bounds = array<i64: 1, 128>}, {pipeline_mode = #tpu.pipeline_mode<synchronous>, transform_indices = @transform_5, window_bounds = array<i64: 128, 128>}, {pipeline_mode = #tpu.pipeline_mode<synchronous>, transform_indices = @transform_6, window_bounds = array<i64: 1, 128>}, {pipeline_mode = #tpu.pipeline_mode<synchronous>, transform_indices = @transform_7, window_bounds = array<i64: 128, 128>}, {pipeline_mode = #tpu.pipeline_mode<synchronous>, transform_indices = @transform_8, window_bounds = array<i64: 1, 128>}, {pipeline_mode = #tpu.pipeline_mode<synchronous>, transform_indices = @transform_9, window_bounds = array<i64: 128, 128>}, {pipeline_mode = #tpu.pipeline_mode<synchronous>, transform_indices = @transform_10, window_bounds = array<i64: 1, 128>}, {pipeline_mode = #tpu.pipeline_mode<synchronous>, transform_indices = @transform_11, window_bounds = array<i64: 128, 128>}, {pipeline_mode = #tpu.pipeline_mode<synchronous>, transform_indices = @transform_12, window_bounds = array<i64: 1, 128>}, {pipeline_mode = #tpu.pipeline_mode<synchronous>, transform_indices = @transform_13, window_bounds = array<i64: 1, 128>}, {pipeline_mode = #tpu.pipeline_mode<synchronous>, transform_indices = @transform_14, window_bounds = array<i64: 1, 128>}, {transform_indices = @transform_15, window_bounds = array<i64: 1, 8, 128>}]} {
    %c0 = arith.constant 0 : index
    %c0_0 = arith.constant 0 : index
    %c0_1 = arith.constant 0 : index
    %0 = vector.load %arg1[%c0, %c0_0, %c0_1] : memref<1x8x128xf32, #tpu.memory_space<vmem>>, vector<1x8x128xf32>
    %1 = vector.shape_cast %0 : vector<1x8x128xf32> to vector<8x128xf32>
    %c0_2 = arith.constant 0 : index
    %c0_3 = arith.constant 0 : index
    %2 = vector.load %arg6[%c0_2, %c0_3] : memref<128x128xf32, #tpu.memory_space<vmem>>, vector<128x128xf32>
    %cst = arith.constant dense<0.000000e+00> : vector<8x128xf32>
    %3 = tpu.matmul %1, %2, %cst {dimension_numbers = #tpu.dot_dimension_numbers<[1], [0], [0], [1], [0, 0, 1, 1], [], []>} : vector<8x128xf32>, vector<128x128xf32>, vector<8x128xf32> -> vector<8x128xf32>
    %c0_4 = arith.constant 0 : index
    %c0_5 = arith.constant 0 : index
    %4 = vector.load %arg7[%c0_4, %c0_5] : memref<1x128xf32, #tpu.memory_space<vmem>>, vector<1x128xf32>
    %5 = vector.broadcast %4 : vector<1x128xf32> to vector<8x128xf32>
    %6 = arith.addf %3, %5 : vector<8x128xf32>
    %7 = vector.shape_cast %6 : vector<8x128xf32> to vector<1x8x128xf32>
    %c0_6 = arith.constant 0 : index
    %c0_7 = arith.constant 0 : index
    %8 = vector.load %arg2[%c0_6, %c0_7] : memref<128x128xf32, #tpu.memory_space<vmem>>, vector<128x128xf32>
    %cst_8 = arith.constant dense<0.000000e+00> : vector<8x128xf32>
    %9 = tpu.matmul %1, %8, %cst_8 {dimension_numbers = #tpu.dot_dimension_numbers<[1], [0], [0], [1], [0, 0, 1, 1], [], []>} : vector<8x128xf32>, vector<128x128xf32>, vector<8x128xf32> -> vector<8x128xf32>
    %c0_9 = arith.constant 0 : index
    %c0_10 = arith.constant 0 : index
    %10 = vector.load %arg3[%c0_9, %c0_10] : memref<1x128xf32, #tpu.memory_space<vmem>>, vector<1x128xf32>
    %11 = vector.broadcast %10 : vector<1x128xf32> to vector<8x128xf32>
    %12 = arith.addf %9, %11 : vector<8x128xf32>
    %13 = vector.shape_cast %12 : vector<8x128xf32> to vector<1x8x128xf32>
    %c0_11 = arith.constant 0 : index
    %c0_12 = arith.constant 0 : index
    %14 = vector.load %arg4[%c0_11, %c0_12] : memref<128x128xf32, #tpu.memory_space<vmem>>, vector<128x128xf32>
    %cst_13 = arith.constant dense<0.000000e+00> : vector<8x128xf32>
    %15 = tpu.matmul %1, %14, %cst_13 {dimension_numbers = #tpu.dot_dimension_numbers<[1], [0], [0], [1], [0, 0, 1, 1], [], []>} : vector<8x128xf32>, vector<128x128xf32>, vector<8x128xf32> -> vector<8x128xf32>
    %c0_14 = arith.constant 0 : index
    %c0_15 = arith.constant 0 : index
    %16 = vector.load %arg5[%c0_14, %c0_15] : memref<1x128xf32, #tpu.memory_space<vmem>>, vector<1x128xf32>
    %17 = vector.broadcast %16 : vector<1x128xf32> to vector<8x128xf32>
    %18 = arith.addf %15, %17 : vector<8x128xf32>
    %19 = vector.shape_cast %18 : vector<8x128xf32> to vector<1x8x128xf32>
    %20 = vector.extract_strided_slice %13 {offsets = [0, 0, 0], sizes = [1, 8, 8], strides = [1, 1, 1]} : vector<1x8x128xf32> to vector<1x8x8xf32>
    %21 = vector.extract_strided_slice %19 {offsets = [0, 0, 0], sizes = [1, 8, 8], strides = [1, 1, 1]} : vector<1x8x128xf32> to vector<1x8x8xf32>
    %22 = vector.extract_strided_slice %7 {offsets = [0, 0, 0], sizes = [1, 8, 8], strides = [1, 1, 1]} : vector<1x8x128xf32> to vector<1x8x8xf32>
    %cst_16 = arith.constant dense<0.000000e+00> : vector<1x8x8xf32>
    %23 = tpu.matmul %20, %21, %cst_16 {dimension_numbers = #tpu.dot_dimension_numbers<[2], [2], [1], [1], [0, 0, 0, 1, 1, 1], [0], [0]>} : vector<1x8x8xf32>, vector<1x8x8xf32>, vector<1x8x8xf32> -> vector<1x8x8xf32>
    %cst_17 = arith.constant dense<0xFF800000> : vector<1x8xf32>
    %24 = vector.multi_reduction <maximumf>, %23, %cst_17 [2] : vector<1x8x8xf32> to vector<1x8xf32>
    %25 = vector.shape_cast %24 : vector<1x8xf32> to vector<1x8x1xf32>
    %26 = vector.broadcast %25 : vector<1x8x1xf32> to vector<1x8x8xf32>
    %27 = arith.subf %23, %26 : vector<1x8x8xf32>
    %28 = math.exp %27 : vector<1x8x8xf32>
    %cst_18 = arith.constant dense<0.000000e+00> : vector<1x8xf32>
    %29 = vector.multi_reduction <add>, %28, %cst_18 [2] : vector<1x8x8xf32> to vector<1x8xf32>
    %30 = vector.shape_cast %29 : vector<1x8xf32> to vector<1x8x1xf32>
    %31 = tpu.reciprocal %30 {approx = true} : vector<1x8x1xf32> -> vector<1x8x1xf32>
    %32 = vector.broadcast %31 : vector<1x8x1xf32> to vector<1x8x8xf32>
    %33 = arith.mulf %28, %32 : vector<1x8x8xf32>
    %cst_19 = arith.constant dense<0.000000e+00> : vector<1x8x8xf32>
    %34 = tpu.matmul %33, %22, %cst_19 {dimension_numbers = #tpu.dot_dimension_numbers<[2], [1], [1], [2], [0, 0, 0, 1, 1, 2], [0], [0]>} : vector<1x8x8xf32>, vector<1x8x8xf32>, vector<1x8x8xf32> -> vector<1x8x8xf32>
    %35 = vector.extract_strided_slice %13 {offsets = [0, 0, 8], sizes = [1, 8, 8], strides = [1, 1, 1]} : vector<1x8x128xf32> to vector<1x8x8xf32>
    %36 = vector.extract_strided_slice %19 {offsets = [0, 0, 8], sizes = [1, 8, 8], strides = [1, 1, 1]} : vector<1x8x128xf32> to vector<1x8x8xf32>
    %37 = vector.extract_strided_slice %7 {offsets = [0, 0, 8], sizes = [1, 8, 8], strides = [1, 1, 1]} : vector<1x8x128xf32> to vector<1x8x8xf32>
    %cst_20 = arith.constant dense<0.000000e+00> : vector<1x8x8xf32>
    %38 = tpu.matmul %35, %36, %cst_20 {dimension_numbers = #tpu.dot_dimension_numbers<[2], [2], [1], [1], [0, 0, 0, 1, 1, 1], [0], [0]>} : vector<1x8x8xf32>, vector<1x8x8xf32>, vector<1x8x8xf32> -> vector<1x8x8xf32>
    %cst_21 = arith.constant dense<0xFF800000> : vector<1x8xf32>
    %39 = vector.multi_reduction <maximumf>, %38, %cst_21 [2] : vector<1x8x8xf32> to vector<1x8xf32>
    %40 = vector.shape_cast %39 : vector<1x8xf32> to vector<1x8x1xf32>
    %41 = vector.broadcast %40 : vector<1x8x1xf32> to vector<1x8x8xf32>
    %42 = arith.subf %38, %41 : vector<1x8x8xf32>
    %43 = math.exp %42 : vector<1x8x8xf32>
    %cst_22 = arith.constant dense<0.000000e+00> : vector<1x8xf32>
    %44 = vector.multi_reduction <add>, %43, %cst_22 [2] : vector<1x8x8xf32> to vector<1x8xf32>
    %45 = vector.shape_cast %44 : vector<1x8xf32> to vector<1x8x1xf32>
    %46 = tpu.reciprocal %45 {approx = true} : vector<1x8x1xf32> -> vector<1x8x1xf32>
    %47 = vector.broadcast %46 : vector<1x8x1xf32> to vector<1x8x8xf32>
    %48 = arith.mulf %43, %47 : vector<1x8x8xf32>
    %cst_23 = arith.constant dense<0.000000e+00> : vector<1x8x8xf32>
    %49 = tpu.matmul %48, %37, %cst_23 {dimension_numbers = #tpu.dot_dimension_numbers<[2], [1], [1], [2], [0, 0, 0, 1, 1, 2], [0], [0]>} : vector<1x8x8xf32>, vector<1x8x8xf32>, vector<1x8x8xf32> -> vector<1x8x8xf32>
    %50 = vector.extract_strided_slice %13 {offsets = [0, 0, 16], sizes = [1, 8, 8], strides = [1, 1, 1]} : vector<1x8x128xf32> to vector<1x8x8xf32>
    %51 = vector.extract_strided_slice %19 {offsets = [0, 0, 16], sizes = [1, 8, 8], strides = [1, 1, 1]} : vector<1x8x128xf32> to vector<1x8x8xf32>
    %52 = vector.extract_strided_slice %7 {offsets = [0, 0, 16], sizes = [1, 8, 8], strides = [1, 1, 1]} : vector<1x8x128xf32> to vector<1x8x8xf32>
    %cst_24 = arith.constant dense<0.000000e+00> : vector<1x8x8xf32>
    %53 = tpu.matmul %50, %51, %cst_24 {dimension_numbers = #tpu.dot_dimension_numbers<[2], [2], [1], [1], [0, 0, 0, 1, 1, 1], [0], [0]>} : vector<1x8x8xf32>, vector<1x8x8xf32>, vector<1x8x8xf32> -> vector<1x8x8xf32>
    %cst_25 = arith.constant dense<0xFF800000> : vector<1x8xf32>
    %54 = vector.multi_reduction <maximumf>, %53, %cst_25 [2] : vector<1x8x8xf32> to vector<1x8xf32>
    %55 = vector.shape_cast %54 : vector<1x8xf32> to vector<1x8x1xf32>
    %56 = vector.broadcast %55 : vector<1x8x1xf32> to vector<1x8x8xf32>
    %57 = arith.subf %53, %56 : vector<1x8x8xf32>
    %58 = math.exp %57 : vector<1x8x8xf32>
    %cst_26 = arith.constant dense<0.000000e+00> : vector<1x8xf32>
    %59 = vector.multi_reduction <add>, %58, %cst_26 [2] : vector<1x8x8xf32> to vector<1x8xf32>
    %60 = vector.shape_cast %59 : vector<1x8xf32> to vector<1x8x1xf32>
    %61 = tpu.reciprocal %60 {approx = true} : vector<1x8x1xf32> -> vector<1x8x1xf32>
    %62 = vector.broadcast %61 : vector<1x8x1xf32> to vector<1x8x8xf32>
    %63 = arith.mulf %58, %62 : vector<1x8x8xf32>
    %cst_27 = arith.constant dense<0.000000e+00> : vector<1x8x8xf32>
    %64 = tpu.matmul %63, %52, %cst_27 {dimension_numbers = #tpu.dot_dimension_numbers<[2], [1], [1], [2], [0, 0, 0, 1, 1, 2], [0], [0]>} : vector<1x8x8xf32>, vector<1x8x8xf32>, vector<1x8x8xf32> -> vector<1x8x8xf32>
    %65 = vector.extract_strided_slice %13 {offsets = [0, 0, 24], sizes = [1, 8, 8], strides = [1, 1, 1]} : vector<1x8x128xf32> to vector<1x8x8xf32>
    %66 = vector.extract_strided_slice %19 {offsets = [0, 0, 24], sizes = [1, 8, 8], strides = [1, 1, 1]} : vector<1x8x128xf32> to vector<1x8x8xf32>
    %67 = vector.extract_strided_slice %7 {offsets = [0, 0, 24], sizes = [1, 8, 8], strides = [1, 1, 1]} : vector<1x8x128xf32> to vector<1x8x8xf32>
    %cst_28 = arith.constant dense<0.000000e+00> : vector<1x8x8xf32>
    %68 = tpu.matmul %65, %66, %cst_28 {dimension_numbers = #tpu.dot_dimension_numbers<[2], [2], [1], [1], [0, 0, 0, 1, 1, 1], [0], [0]>} : vector<1x8x8xf32>, vector<1x8x8xf32>, vector<1x8x8xf32> -> vector<1x8x8xf32>
    %cst_29 = arith.constant dense<0xFF800000> : vector<1x8xf32>
    %69 = vector.multi_reduction <maximumf>, %68, %cst_29 [2] : vector<1x8x8xf32> to vector<1x8xf32>
    %70 = vector.shape_cast %69 : vector<1x8xf32> to vector<1x8x1xf32>
    %71 = vector.broadcast %70 : vector<1x8x1xf32> to vector<1x8x8xf32>
    %72 = arith.subf %68, %71 : vector<1x8x8xf32>
    %73 = math.exp %72 : vector<1x8x8xf32>
    %cst_30 = arith.constant dense<0.000000e+00> : vector<1x8xf32>
    %74 = vector.multi_reduction <add>, %73, %cst_30 [2] : vector<1x8x8xf32> to vector<1x8xf32>
    %75 = vector.shape_cast %74 : vector<1x8xf32> to vector<1x8x1xf32>
    %76 = tpu.reciprocal %75 {approx = true} : vector<1x8x1xf32> -> vector<1x8x1xf32>
    %77 = vector.broadcast %76 : vector<1x8x1xf32> to vector<1x8x8xf32>
    %78 = arith.mulf %73, %77 : vector<1x8x8xf32>
    %cst_31 = arith.constant dense<0.000000e+00> : vector<1x8x8xf32>
    %79 = tpu.matmul %78, %67, %cst_31 {dimension_numbers = #tpu.dot_dimension_numbers<[2], [1], [1], [2], [0, 0, 0, 1, 1, 2], [0], [0]>} : vector<1x8x8xf32>, vector<1x8x8xf32>, vector<1x8x8xf32> -> vector<1x8x8xf32>
    %cst_32 = arith.constant 0.000000e+00 : f32
    %80 = vector.broadcast %cst_32 : f32 to vector<1x8x96xf32>
    %81 = tpu.concatenate %34, %49, %64, %79, %80 in 2 : vector<1x8x8xf32>, vector<1x8x8xf32>, vector<1x8x8xf32>, vector<1x8x8xf32>, vector<1x8x96xf32> -> vector<1x8x128xf32>
    %82 = vector.shape_cast %81 : vector<1x8x128xf32> to vector<8x128xf32>
    %c0_33 = arith.constant 0 : index
    %c0_34 = arith.constant 0 : index
    %83 = vector.load %arg8[%c0_33, %c0_34] : memref<128x128xf32, #tpu.memory_space<vmem>>, vector<128x128xf32>
    %cst_35 = arith.constant dense<0.000000e+00> : vector<8x128xf32>
    %84 = tpu.matmul %82, %83, %cst_35 {dimension_numbers = #tpu.dot_dimension_numbers<[1], [0], [0], [1], [0, 0, 1, 1], [], []>} : vector<8x128xf32>, vector<128x128xf32>, vector<8x128xf32> -> vector<8x128xf32>
    %c0_36 = arith.constant 0 : index
    %c0_37 = arith.constant 0 : index
    %85 = vector.load %arg9[%c0_36, %c0_37] : memref<1x128xf32, #tpu.memory_space<vmem>>, vector<1x128xf32>
    %86 = vector.broadcast %85 : vector<1x128xf32> to vector<8x128xf32>
    %87 = arith.addf %84, %86 : vector<8x128xf32>
    %88 = vector.shape_cast %87 : vector<8x128xf32> to vector<1x8x128xf32>
    %89 = tpu.iota {dimensions = array<i32: 2>} : vector<1x1x128xi32>
    %c32_i32 = arith.constant 32 : i32
    %90 = vector.broadcast %c32_i32 : i32 to vector<1x1x128xi32>
    %91 = arith.cmpi slt, %89, %90 : vector<1x1x128xi32>
    %92 = arith.extui %91 : vector<1x1x128xi1> to vector<1x1x128xi32>
    %93 = arith.sitofp %92 : vector<1x1x128xi32> to vector<1x1x128xf32>
    %c0_38 = arith.constant 0 : index
    %c0_39 = arith.constant 0 : index
    %94 = vector.load %arg14[%c0_38, %c0_39] : memref<1x128xf32, #tpu.memory_space<vmem>>, vector<1x128xf32>
    %c0_40 = arith.constant 0 : index
    %c0_41 = arith.constant 0 : index
    %95 = vector.load %arg15[%c0_40, %c0_41] : memref<1x128xf32, #tpu.memory_space<vmem>>, vector<1x128xf32>
    %96 = arith.addf %88, %0 : vector<1x8x128xf32>
    %cst_42 = arith.constant dense<0.000000e+00> : vector<1x8xf32>
    %97 = vector.multi_reduction <add>, %96, %cst_42 [2] : vector<1x8x128xf32> to vector<1x8xf32>
    %98 = vector.shape_cast %97 : vector<1x8xf32> to vector<1x8x1xf32>
    %cst_43 = arith.constant 3.125000e-02 : f32
    %99 = vector.broadcast %cst_43 : f32 to vector<1x8x1xf32>
    %100 = arith.mulf %98, %99 : vector<1x8x1xf32>
    %101 = vector.broadcast %100 : vector<1x8x1xf32> to vector<1x8x128xf32>
    %102 = arith.subf %96, %101 : vector<1x8x128xf32>
    %103 = vector.broadcast %93 : vector<1x1x128xf32> to vector<1x8x128xf32>
    %104 = arith.mulf %102, %103 : vector<1x8x128xf32>
    %105 = arith.mulf %104, %104 : vector<1x8x128xf32>
    %cst_44 = arith.constant dense<0.000000e+00> : vector<1x8xf32>
    %106 = vector.multi_reduction <add>, %105, %cst_44 [2] : vector<1x8x128xf32> to vector<1x8xf32>
    %107 = vector.shape_cast %106 : vector<1x8xf32> to vector<1x8x1xf32>
    %cst_45 = arith.constant 3.125000e-02 : f32
    %108 = vector.broadcast %cst_45 : f32 to vector<1x8x1xf32>
    %109 = arith.mulf %107, %108 : vector<1x8x1xf32>
    %cst_46 = arith.constant 9.99999974E-6 : f32
    %110 = vector.broadcast %cst_46 : f32 to vector<1x8x1xf32>
    %111 = arith.addf %109, %110 : vector<1x8x1xf32>
    %112 = math.rsqrt %111 : vector<1x8x1xf32>
    %113 = vector.broadcast %112 : vector<1x8x1xf32> to vector<1x8x128xf32>
    %114 = arith.mulf %104, %113 : vector<1x8x128xf32>
    %115 = vector.shape_cast %94 : vector<1x128xf32> to vector<1x1x128xf32>
    %116 = vector.broadcast %115 : vector<1x1x128xf32> to vector<1x8x128xf32>
    %117 = arith.mulf %114, %116 : vector<1x8x128xf32>
    %118 = vector.shape_cast %95 : vector<1x128xf32> to vector<1x1x128xf32>
    %119 = vector.broadcast %118 : vector<1x1x128xf32> to vector<1x8x128xf32>
    %120 = arith.addf %117, %119 : vector<1x8x128xf32>
    %121 = vector.shape_cast %120 : vector<1x8x128xf32> to vector<8x128xf32>
    %c0_47 = arith.constant 0 : index
    %c0_48 = arith.constant 0 : index
    %122 = vector.load %arg10[%c0_47, %c0_48] : memref<128x128xf32, #tpu.memory_space<vmem>>, vector<128x128xf32>
    %cst_49 = arith.constant dense<0.000000e+00> : vector<8x128xf32>
    %123 = tpu.matmul %121, %122, %cst_49 {dimension_numbers = #tpu.dot_dimension_numbers<[1], [0], [0], [1], [0, 0, 1, 1], [], []>} : vector<8x128xf32>, vector<128x128xf32>, vector<8x128xf32> -> vector<8x128xf32>
    %c0_50 = arith.constant 0 : index
    %c0_51 = arith.constant 0 : index
    %124 = vector.load %arg11[%c0_50, %c0_51] : memref<1x128xf32, #tpu.memory_space<vmem>>, vector<1x128xf32>
    %125 = vector.broadcast %124 : vector<1x128xf32> to vector<8x128xf32>
    %126 = arith.addf %123, %125 : vector<8x128xf32>
    %cst_52 = arith.constant 0.000000e+00 : f32
    %127 = vector.broadcast %cst_52 : f32 to vector<8x128xf32>
    %128 = arith.maximumf %126, %127 : vector<8x128xf32>
    %c0_53 = arith.constant 0 : index
    %c0_54 = arith.constant 0 : index
    %129 = vector.load %arg12[%c0_53, %c0_54] : memref<128x128xf32, #tpu.memory_space<vmem>>, vector<128x128xf32>
    %cst_55 = arith.constant dense<0.000000e+00> : vector<8x128xf32>
    %130 = tpu.matmul %128, %129, %cst_55 {dimension_numbers = #tpu.dot_dimension_numbers<[1], [0], [0], [1], [0, 0, 1, 1], [], []>} : vector<8x128xf32>, vector<128x128xf32>, vector<8x128xf32> -> vector<8x128xf32>
    %c0_56 = arith.constant 0 : index
    %c0_57 = arith.constant 0 : index
    %131 = vector.load %arg13[%c0_56, %c0_57] : memref<1x128xf32, #tpu.memory_space<vmem>>, vector<1x128xf32>
    %132 = vector.broadcast %131 : vector<1x128xf32> to vector<8x128xf32>
    %133 = arith.addf %130, %132 : vector<8x128xf32>
    %134 = vector.shape_cast %133 : vector<8x128xf32> to vector<1x8x128xf32>
    %135 = arith.addf %134, %120 : vector<1x8x128xf32>
    %cst_58 = arith.constant dense<0.000000e+00> : vector<1x8xf32>
    %136 = vector.multi_reduction <add>, %135, %cst_58 [2] : vector<1x8x128xf32> to vector<1x8xf32>
    %137 = vector.shape_cast %136 : vector<1x8xf32> to vector<1x8x1xf32>
    %cst_59 = arith.constant 3.125000e-02 : f32
    %138 = vector.broadcast %cst_59 : f32 to vector<1x8x1xf32>
    %139 = arith.mulf %137, %138 : vector<1x8x1xf32>
    %140 = vector.broadcast %139 : vector<1x8x1xf32> to vector<1x8x128xf32>
    %141 = arith.subf %135, %140 : vector<1x8x128xf32>
    %142 = vector.broadcast %93 : vector<1x1x128xf32> to vector<1x8x128xf32>
    %143 = arith.mulf %141, %142 : vector<1x8x128xf32>
    %144 = arith.mulf %143, %143 : vector<1x8x128xf32>
    %cst_60 = arith.constant dense<0.000000e+00> : vector<1x8xf32>
    %145 = vector.multi_reduction <add>, %144, %cst_60 [2] : vector<1x8x128xf32> to vector<1x8xf32>
    %146 = vector.shape_cast %145 : vector<1x8xf32> to vector<1x8x1xf32>
    %cst_61 = arith.constant 3.125000e-02 : f32
    %147 = vector.broadcast %cst_61 : f32 to vector<1x8x1xf32>
    %148 = arith.mulf %146, %147 : vector<1x8x1xf32>
    %cst_62 = arith.constant 9.99999974E-6 : f32
    %149 = vector.broadcast %cst_62 : f32 to vector<1x8x1xf32>
    %150 = arith.addf %148, %149 : vector<1x8x1xf32>
    %151 = math.rsqrt %150 : vector<1x8x1xf32>
    %152 = vector.broadcast %151 : vector<1x8x1xf32> to vector<1x8x128xf32>
    %153 = arith.mulf %143, %152 : vector<1x8x128xf32>
    %154 = vector.shape_cast %94 : vector<1x128xf32> to vector<1x1x128xf32>
    %155 = vector.broadcast %154 : vector<1x1x128xf32> to vector<1x8x128xf32>
    %156 = arith.mulf %153, %155 : vector<1x8x128xf32>
    %157 = vector.shape_cast %95 : vector<1x128xf32> to vector<1x1x128xf32>
    %158 = vector.broadcast %157 : vector<1x1x128xf32> to vector<1x8x128xf32>
    %159 = arith.addf %156, %158 : vector<1x8x128xf32>
    %c0_63 = arith.constant 0 : index
    %c0_64 = arith.constant 0 : index
    %c0_65 = arith.constant 0 : index
    %160 = vector.load %arg16[%c0_63, %c0_64, %c0_65] : memref<1x8x128xf32, #tpu.memory_space<vmem>>, vector<1x8x128xf32>
    tpu.vector_store %arg16[%c0_63, %c0_64, %c0_65], %159 {strides = array<i32>} : memref<1x8x128xf32, #tpu.memory_space<vmem>>, vector<1x8x128xf32>,
    return
  }
  func.func @transform_0(%arg0: i32) -> (i32, i32, i32) {
    %c0_i32 = arith.constant 0 : i32
    %c0_i32_0 = arith.constant 0 : i32
    %c0_i32_1 = arith.constant 0 : i32
    return %arg0, %c0_i32, %c0_i32_0 : i32, i32, i32
  }
  func.func @transform_1(%arg0: i32) -> (i32, i32) {
    %c0_i32 = arith.constant 0 : i32
    %c0_i32_0 = arith.constant 0 : i32
    %c0_i32_1 = arith.constant 0 : i32
    return %c0_i32, %c0_i32_0 : i32, i32
  }
  func.func @transform_2(%arg0: i32) -> (i32, i32) {
    %c0_i32 = arith.constant 0 : i32
    %c0_i32_0 = arith.constant 0 : i32
    %c0_i32_1 = arith.constant 0 : i32
    return %c0_i32, %c0_i32_0 : i32, i32
  }
  func.func @transform_3(%arg0: i32) -> (i32, i32) {
    %c0_i32 = arith.constant 0 : i32
    %c0_i32_0 = arith.constant 0 : i32
    %c0_i32_1 = arith.constant 0 : i32
    return %c0_i32, %c0_i32_0 : i32, i32
  }
  func.func @transform_4(%arg0: i32) -> (i32, i32) {
    %c0_i32 = arith.constant 0 : i32
    %c0_i32_0 = arith.constant 0 : i32
    %c0_i32_1 = arith.constant 0 : i32
    return %c0_i32, %c0_i32_0 : i32, i32
  }
  func.func @transform_5(%arg0: i32) -> (i32, i32) {
    %c0_i32 = arith.constant 0 : i32
    %c0_i32_0 = arith.constant 0 : i32
    %c0_i32_1 = arith.constant 0 : i32
    return %c0_i32, %c0_i32_0 : i32, i32
  }
  func.func @transform_6(%arg0: i32) -> (i32, i32) {
    %c0_i32 = arith.constant 0 : i32
    %c0_i32_0 = arith.constant 0 : i32
    %c0_i32_1 = arith.constant 0 : i32
    return %c0_i32, %c0_i32_0 : i32, i32
  }
  func.func @transform_7(%arg0: i32) -> (i32, i32) {
    %c0_i32 = arith.constant 0 : i32
    %c0_i32_0 = arith.constant 0 : i32
    %c0_i32_1 = arith.constant 0 : i32
    return %c0_i32, %c0_i32_0 : i32, i32
  }
  func.func @transform_8(%arg0: i32) -> (i32, i32) {
    %c0_i32 = arith.constant 0 : i32
    %c0_i32_0 = arith.constant 0 : i32
    %c0_i32_1 = arith.constant 0 : i32
    return %c0_i32, %c0_i32_0 : i32, i32
  }
  func.func @transform_9(%arg0: i32) -> (i32, i32) {
    %c0_i32 = arith.constant 0 : i32
    %c0_i32_0 = arith.constant 0 : i32
    %c0_i32_1 = arith.constant 0 : i32
    return %c0_i32, %c0_i32_0 : i32, i32
  }
  func.func @transform_10(%arg0: i32) -> (i32, i32) {
    %c0_i32 = arith.constant 0 : i32
    %c0_i32_0 = arith.constant 0 : i32
    %c0_i32_1 = arith.constant 0 : i32
    return %c0_i32, %c0_i32_0 : i32, i32
  }
  func.func @transform_11(%arg0: i32) -> (i32, i32) {
    %c0_i32 = arith.constant 0 : i32
    %c0_i32_0 = arith.constant 0 : i32
    %c0_i32_1 = arith.constant 0 : i32
    return %c0_i32, %c0_i32_0 : i32, i32
  }
  func.func @transform_12(%arg0: i32) -> (i32, i32) {
    %c0_i32 = arith.constant 0 : i32
    %c0_i32_0 = arith.constant 0 : i32
    %c0_i32_1 = arith.constant 0 : i32
    return %c0_i32, %c0_i32_0 : i32, i32
  }
  func.func @transform_13(%arg0: i32) -> (i32, i32) {
    %c0_i32 = arith.constant 0 : i32
    %c0_i32_0 = arith.constant 0 : i32
    %c0_i32_1 = arith.constant 0 : i32
    return %c0_i32, %c0_i32_0 : i32, i32
  }
  func.func @transform_14(%arg0: i32) -> (i32, i32) {
    %c0_i32 = arith.constant 0 : i32
    %c0_i32_0 = arith.constant 0 : i32
    %c0_i32_1 = arith.constant 0 : i32
    return %c0_i32, %c0_i32_0 : i32, i32
  }
  func.func @transform_15(%arg0: i32) -> (i32, i32, i32) {
    %c0_i32 = arith.constant 0 : i32
    %c0_i32_0 = arith.constant 0 : i32
    %c0_i32_1 = arith.constant 0 : i32
    return %arg0, %c0_i32, %c0_i32_0 : i32, i32, i32
  }
}

</mosaic_0001>

<llo_original>
// kernel: tpu_custom_call.1
$region0: #{tpu_custom_call.1}
  #allocation0 [shape = 'u32[]', space=smem, size = 0x4, offset = 0x4, fixed_abs, tag = 'smem constant byte address 0x4 - core index']
  #allocation1 [shape = 'u32[144,128]{1,0:T(1,128)}', space=vmem, size = 0x12000, scoped, tag = 'internal scratch']
  %s0 = inlined_call_operand.hbm [shape: f32[2,8,128], index: 0, kind: input, shape index: {}]
  %s1 = inlined_call_operand.hbm [shape: f32[128,128], index: 1, kind: input, shape index: {}]
  %s2 = inlined_call_operand.vmem [shape: f32[1,128], index: 2, kind: input, shape index: {}]
  %s3 = inlined_call_operand.hbm [shape: f32[128,128], index: 3, kind: input, shape index: {}]
  %s4 = inlined_call_operand.vmem [shape: f32[1,128], index: 4, kind: input, shape index: {}]
  %s5 = inlined_call_operand.hbm [shape: f32[128,128], index: 5, kind: input, shape index: {}]
  %s6 = inlined_call_operand.vmem [shape: f32[1,128], index: 6, kind: input, shape index: {}]
  %s7 = inlined_call_operand.hbm [shape: f32[128,128], index: 7, kind: input, shape index: {}]
  %s8 = inlined_call_operand.vmem [shape: f32[1,128], index: 8, kind: input, shape index: {}]
  %s9 = inlined_call_operand.hbm [shape: f32[128,128], index: 9, kind: input, shape index: {}]
  %s10 = inlined_call_operand.vmem [shape: f32[1,128], index: 10, kind: input, shape index: {}]
  %s11 = inlined_call_operand.hbm [shape: f32[128,128], index: 11, kind: input, shape index: {}]
  %s12 = inlined_call_operand.vmem [shape: f32[1,128], index: 12, kind: input, shape index: {}]
  %s13 = inlined_call_operand.vmem [shape: f32[1,128], index: 13, kind: input, shape index: {}]
  %s14 = inlined_call_operand.vmem [shape: f32[1,128], index: 14, kind: input, shape index: {}]
  %s15 = inlined_call_operand.hbm [shape: f32[2,8,128], index: 15, kind: output, shape index: {}]
  %s16 = sld [smem:[#allocation0]]
  $region121: #{tpu_custom_call.1} parent=0
    _
  %s18 = ssub.s32 1, %s16
  %s19 = scalar_select 0, %s18, %s16
  $region1: #{tpu_custom_call.1} parent=0
    #allocation2 [shape = 'u8[8192]{0}', space=vmem, size = 0x2000, scoped, tag = 'input window, operand 0']
    #allocation3 [shape = 's32[2]{0}', space=sflag, size = 0x8, scoped, tag = 'scoped memory for tpu_custom_call.1']
    #allocation4 [shape = 's32[2]{0}', space=sflag, size = 0x8, scoped, tag = 'scoped memory for tpu_custom_call.1']
    #allocation5 [shape = 'u8[65536]{0}', space=vmem, size = 0x10000, scoped, tag = 'input window, operand 1, single buffered']
    #allocation6 [shape = 's32[1]{0}', space=sflag, size = 0x4, scoped, tag = 'scoped memory for tpu_custom_call.1']
    #allocation7 [shape = 'u8[65536]{0}', space=vmem, size = 0x10000, scoped, tag = 'input window, operand 3, single buffered']
    #allocation8 [shape = 'u8[65536]{0}', space=vmem, size = 0x10000, scoped, tag = 'input window, operand 5, single buffered']
    #allocation9 [shape = 's32[1]{0}', space=sflag, size = 0x4, scoped, tag = 'scoped memory for tpu_custom_call.1']
    #allocation10 [shape = 'u8[65536]{0}', space=vmem, size = 0x10000, scoped, tag = 'input window, operand 7, single buffered']
    #allocation11 [shape = 'u8[65536]{0}', space=vmem, size = 0x10000, scoped, tag = 'input window, operand 9, single buffered']
    #allocation12 [shape = 's32[1]{0}', space=sflag, size = 0x4, scoped, tag = 'scoped memory for tpu_custom_call.1']
    #allocation13 [shape = 'u8[65536]{0}', space=vmem, size = 0x10000, scoped, tag = 'input window, operand 11, single buffered']
    #allocation14 [shape = 'u8[8192]{0}', space=vmem, size = 0x2000, scoped, tag = 'output window, operand 0']
    %20 = vsyncpa [#allocation3], 0
    %s21 = scalar_lea.sflag [#allocation3], 1
    %22 = vsyncpa %s21, 0
    %23 = vsyncpa [#allocation6], 0
    %24 = vsyncpa [#allocation9], 0
    %25 = vsyncpa [#allocation12], 0
    %26 = vsyncpa [#allocation4], 0
    %s27 = scalar_lea.sflag [#allocation4], 1
    %28 = vsyncpa %s27, 0
    loop: start=0, step=1, limit=4
    $region2: #{tpu_custom_call.1} parent=1 // loop_pre_header
      _
    $region3: #{tpu_custom_call.1} parent=1 // loop_header
      %s30 = sphi 0, %s34
      %p31 = scmp.ge.s32.totalorder %s30, 4
      %s40 = sphi 0, %s42
      %s43 = sphi 0, %s40
      %s44 = sphi 0, %s43
      %s60 = sphi 0, %s44
      %s64 = sphi 0, %s64
      %s66 = sphi 0, %s64
      %s67 = sphi 0, %s66
      %s81 = sphi 0, %s67
      %s85 = sphi 0, %s85
      %s87 = sphi 0, %s85
      %s88 = sphi 0, %s87
      %s102 = sphi 0, %s88
      %s106 = sphi 0, %s106
      %s108 = sphi 0, %s106
      %s109 = sphi 0, %s108
      %s123 = sphi 0, %s109
      %s127 = sphi 0, %s127
      %s129 = sphi 0, %s127
      %s130 = sphi 0, %s129
      %s144 = sphi 0, %s130
      %s148 = sphi 0, %s148
      %s150 = sphi 0, %s148
      %s151 = sphi 0, %s150
      %s165 = sphi 0, %s151
      %s169 = sphi 0, %s169
      %s171 = sphi 0, %s169
      %s172 = sphi 0, %s171
      %s186 = sphi 0, %s172
      %s190 = sphi 0, %s190
      %s192 = sphi 0, %s190
      %s193 = sphi 0, %s192
      %s207 = sphi 0, %s193
      %s211 = sphi 0, %s211
      %s213 = sphi 0, %s211
      %s214 = sphi 0, %s213
      %s228 = sphi 0, %s214
      %s232 = sphi 0, %s232
      %s234 = sphi 0, %s232
      %s235 = sphi 0, %s234
      %s249 = sphi 0, %s235
      %s253 = sphi 0, %s253
      %s255 = sphi 0, %s253
      %s256 = sphi 0, %s255
      %s270 = sphi 0, %s256
      %s274 = sphi 0, %s274
      %s276 = sphi 0, %s274
      %s277 = sphi 0, %s276
      %s291 = sphi 0, %s277
      %s295 = sphi 0, %s295
      %s297 = sphi 0, %s295
      %s298 = sphi 0, %s297
      %s312 = sphi 0, %s298
      %s316 = sphi 0, %s316
      %s318 = sphi 0, %s316
      %s319 = sphi 0, %s318
      %s333 = sphi 0, %s319
      %s337 = sphi 0, %s337
      %s339 = sphi 0, %s337
      %s340 = sphi 0, %s339
      %s354 = sphi 0, %s340
      %s360 = sphi 0, %s362
      %s363 = sphi 0, %s360
      %s364 = sphi 0, %s363
      %s380 = sphi 0, %s364
    $region4: #{tpu_custom_call.1} parent=1 // loop_header_branch
      %33 = sbr.rel (%p31) target = $region8
    $region5: #{tpu_custom_call.1} parent=1 // loop_body
      %s35 = ssub.s32 %s30, 1
      %s36 = ssub.s32 %s30, 2
      %s37 = sadd.s32 %s30, 1
      %s38 = ssub.s32 %s30, %s37
      %p39 = scmp.eq.s32.totalorder %s38, 0
      %s41 = sadd.s32 %s40, 1
      %s42 = scalar_select %p39, %s40, %s41
      %p45 = pneg %p39
      %p46 = scmp.eq.s32.totalorder %s30, 1
      %p47 = por %p45, %p46
      %p48 = scmp.ne.s32.totalorder %s40, %s43
      %p49 = scmp.eq.s32.totalorder %s30, 0
      %p50 = por %p48, %p49
      %p51 = scmp.ne.s32.totalorder %s40, %s43
      %p52 = scmp.eq.s32.totalorder %s35, 1
      %p53 = por %p51, %p52
      %p54 = scmp.ne.s32.totalorder %s43, %s44
      %p55 = scmp.eq.s32.totalorder %s35, 0
      %p56 = por %p54, %p55
      %p57 = scmp.ne.s32.totalorder %s43, %s44
      %p58 = scmp.eq.s32.totalorder %s36, 1
      %p59 = por %p57, %p58
      %p61 = scmp.ne.s32.totalorder %s44, %s60
      %p62 = scmp.eq.s32.totalorder %s36, 0
      %p63 = por %p61, %p62
      %s65 = sadd.s32 %s64, 1
      %p68 = scmp.eq.s32.totalorder %s30, 1
      %p69 = scmp.ne.s32.totalorder %s64, %s66
      %p70 = scmp.eq.s32.totalorder %s30, 0
      %p71 = por %p69, %p70
      %p72 = scmp.ne.s32.totalorder %s64, %s66
      %p73 = scmp.eq.s32.totalorder %s35, 1
      %p74 = por %p72, %p73
      %p75 = scmp.ne.s32.totalorder %s66, %s67
      %p76 = scmp.eq.s32.totalorder %s35, 0
      %p77 = por %p75, %p76
      %p78 = scmp.ne.s32.totalorder %s66, %s67
      %p79 = scmp.eq.s32.totalorder %s36, 1
      %p80 = por %p78, %p79
      %p82 = scmp.ne.s32.totalorder %s67, %s81
      %p83 = scmp.eq.s32.totalorder %s36, 0
      %p84 = por %p82, %p83
      %s86 = sadd.s32 %s85, 1
      %p89 = scmp.eq.s32.totalorder %s30, 1
      %p90 = scmp.ne.s32.totalorder %s85, %s87
      %p91 = scmp.eq.s32.totalorder %s30, 0
      %p92 = por %p90, %p91
      %p93 = scmp.ne.s32.totalorder %s85, %s87
      %p94 = scmp.eq.s32.totalorder %s35, 1
      %p95 = por %p93, %p94
      %p96 = scmp.ne.s32.totalorder %s87, %s88
      %p97 = scmp.eq.s32.totalorder %s35, 0
      %p98 = por %p96, %p97
      %p99 = scmp.ne.s32.totalorder %s87, %s88
      %p100 = scmp.eq.s32.totalorder %s36, 1
      %p101 = por %p99, %p100
      %p103 = scmp.ne.s32.totalorder %s88, %s102
      %p104 = scmp.eq.s32.totalorder %s36, 0
      %p105 = por %p103, %p104
      %s107 = sadd.s32 %s106, 1
      %p110 = scmp.eq.s32.totalorder %s30, 1
      %p111 = scmp.ne.s32.totalorder %s106, %s108
      %p112 = scmp.eq.s32.totalorder %s30, 0
      %p113 = por %p111, %p112
      %p114 = scmp.ne.s32.totalorder %s106, %s108
      %p115 = scmp.eq.s32.totalorder %s35, 1
      %p116 = por %p114, %p115
      %p117 = scmp.ne.s32.totalorder %s108, %s109
      %p118 = scmp.eq.s32.totalorder %s35, 0
      %p119 = por %p117, %p118
      %p120 = scmp.ne.s32.totalorder %s108, %s109
      %p121 = scmp.eq.s32.totalorder %s36, 1
      %p122 = por %p120, %p121
      %p124 = scmp.ne.s32.totalorder %s109, %s123
      %p125 = scmp.eq.s32.totalorder %s36, 0
      %p126 = por %p124, %p125
      %s128 = sadd.s32 %s127, 1
      %p131 = scmp.eq.s32.totalorder %s30, 1
      %p132 = scmp.ne.s32.totalorder %s127, %s129
      %p133 = scmp.eq.s32.totalorder %s30, 0
      %p134 = por %p132, %p133
      %p135 = scmp.ne.s32.totalorder %s127, %s129
      %p136 = scmp.eq.s32.totalorder %s35, 1
      %p137 = por %p135, %p136
      %p138 = scmp.ne.s32.totalorder %s129, %s130
      %p139 = scmp.eq.s32.totalorder %s35, 0
      %p140 = por %p138, %p139
      %p141 = scmp.ne.s32.totalorder %s129, %s130
      %p142 = scmp.eq.s32.totalorder %s36, 1
      %p143 = por %p141, %p142
      %p145 = scmp.ne.s32.totalorder %s130, %s144
      %p146 = scmp.eq.s32.totalorder %s36, 0
      %p147 = por %p145, %p146
      %s149 = sadd.s32 %s148, 1
      %p152 = scmp.eq.s32.totalorder %s30, 1
      %p153 = scmp.ne.s32.totalorder %s148, %s150
      %p154 = scmp.eq.s32.totalorder %s30, 0
      %p155 = por %p153, %p154
      %p156 = scmp.ne.s32.totalorder %s148, %s150
      %p157 = scmp.eq.s32.totalorder %s35, 1
      %p158 = por %p156, %p157
      %p159 = scmp.ne.s32.totalorder %s150, %s151
      %p160 = scmp.eq.s32.totalorder %s35, 0
      %p161 = por %p159, %p160
      %p162 = scmp.ne.s32.totalorder %s150, %s151
      %p163 = scmp.eq.s32.totalorder %s36, 1
      %p164 = por %p162, %p163
      %p166 = scmp.ne.s32.totalorder %s151, %s165
      %p167 = scmp.eq.s32.totalorder %s36, 0
      %p168 = por %p166, %p167
      %s170 = sadd.s32 %s169, 1
      %p173 = scmp.eq.s32.totalorder %s30, 1
      %p174 = scmp.ne.s32.totalorder %s169, %s171
      %p175 = scmp.eq.s32.totalorder %s30, 0
      %p176 = por %p174, %p175
      %p177 = scmp.ne.s32.totalorder %s169, %s171
      %p178 = scmp.eq.s32.totalorder %s35, 1
      %p179 = por %p177, %p178
      %p180 = scmp.ne.s32.totalorder %s171, %s172
      %p181 = scmp.eq.s32.totalorder %s35, 0
      %p182 = por %p180, %p181
      %p183 = scmp.ne.s32.totalorder %s171, %s172
      %p184 = scmp.eq.s32.totalorder %s36, 1
      %p185 = por %p183, %p184
      %p187 = scmp.ne.s32.totalorder %s172, %s186
      %p188 = scmp.eq.s32.totalorder %s36, 0
      %p189 = por %p187, %p188
      %s191 = sadd.s32 %s190, 1
      %p194 = scmp.eq.s32.totalorder %s30, 1
      %p195 = scmp.ne.s32.totalorder %s190, %s192
      %p196 = scmp.eq.s32.totalorder %s30, 0
      %p197 = por %p195, %p196
      %p198 = scmp.ne.s32.totalorder %s190, %s192
      %p199 = scmp.eq.s32.totalorder %s35, 1
      %p200 = por %p198, %p199
      %p201 = scmp.ne.s32.totalorder %s192, %s193
      %p202 = scmp.eq.s32.totalorder %s35, 0
      %p203 = por %p201, %p202
      %p204 = scmp.ne.s32.totalorder %s192, %s193
      %p205 = scmp.eq.s32.totalorder %s36, 1
      %p206 = por %p204, %p205
      %p208 = scmp.ne.s32.totalorder %s193, %s207
      %p209 = scmp.eq.s32.totalorder %s36, 0
      %p210 = por %p208, %p209
      %s212 = sadd.s32 %s211, 1
      %p215 = scmp.eq.s32.totalorder %s30, 1
      %p216 = scmp.ne.s32.totalorder %s211, %s213
      %p217 = scmp.eq.s32.totalorder %s30, 0
      %p218 = por %p216, %p217
      %p219 = scmp.ne.s32.totalorder %s211, %s213
      %p220 = scmp.eq.s32.totalorder %s35, 1
      %p221 = por %p219, %p220
      %p222 = scmp.ne.s32.totalorder %s213, %s214
      %p223 = scmp.eq.s32.totalorder %s35, 0
      %p224 = por %p222, %p223
      %p225 = scmp.ne.s32.totalorder %s213, %s214
      %p226 = scmp.eq.s32.totalorder %s36, 1
      %p227 = por %p225, %p226
      %p229 = scmp.ne.s32.totalorder %s214, %s228
      %p230 = scmp.eq.s32.totalorder %s36, 0
      %p231 = por %p229, %p230
      %s233 = sadd.s32 %s232, 1
      %p236 = scmp.eq.s32.totalorder %s30, 1
      %p237 = scmp.ne.s32.totalorder %s232, %s234
      %p238 = scmp.eq.s32.totalorder %s30, 0
      %p239 = por %p237, %p238
      %p240 = scmp.ne.s32.totalorder %s232, %s234
      %p241 = scmp.eq.s32.totalorder %s35, 1
      %p242 = por %p240, %p241
      %p243 = scmp.ne.s32.totalorder %s234, %s235
      %p244 = scmp.eq.s32.totalorder %s35, 0
      %p245 = por %p243, %p244
      %p246 = scmp.ne.s32.totalorder %s234, %s235
      %p247 = scmp.eq.s32.totalorder %s36, 1
      %p248 = por %p246, %p247
      %p250 = scmp.ne.s32.totalorder %s235, %s249
      %p251 = scmp.eq.s32.totalorder %s36, 0
      %p252 = por %p250, %p251
      %s254 = sadd.s32 %s253, 1
      %p257 = scmp.eq.s32.totalorder %s30, 1
      %p258 = scmp.ne.s32.totalorder %s253, %s255
      %p259 = scmp.eq.s32.totalorder %s30, 0
      %p260 = por %p258, %p259
      %p261 = scmp.ne.s32.totalorder %s253, %s255
      %p262 = scmp.eq.s32.totalorder %s35, 1
      %p263 = por %p261, %p262
      %p264 = scmp.ne.s32.totalorder %s255, %s256
      %p265 = scmp.eq.s32.totalorder %s35, 0
      %p266 = por %p264, %p265
      %p267 = scmp.ne.s32.totalorder %s255, %s256
      %p268 = scmp.eq.s32.totalorder %s36, 1
      %p269 = por %p267, %p268
      %p271 = scmp.ne.s32.totalorder %s256, %s270
      %p272 = scmp.eq.s32.totalorder %s36, 0
      %p273 = por %p271, %p272
      %s275 = sadd.s32 %s274, 1
      %p278 = scmp.eq.s32.totalorder %s30, 1
      %p279 = scmp.ne.s32.totalorder %s274, %s276
      %p280 = scmp.eq.s32.totalorder %s30, 0
      %p281 = por %p279, %p280
      %p282 = scmp.ne.s32.totalorder %s274, %s276
      %p283 = scmp.eq.s32.totalorder %s35, 1
      %p284 = por %p282, %p283
      %p285 = scmp.ne.s32.totalorder %s276, %s277
      %p286 = scmp.eq.s32.totalorder %s35, 0
      %p287 = por %p285, %p286
      %p288 = scmp.ne.s32.totalorder %s276, %s277
      %p289 = scmp.eq.s32.totalorder %s36, 1
      %p290 = por %p288, %p289
      %p292 = scmp.ne.s32.totalorder %s277, %s291
      %p293 = scmp.eq.s32.totalorder %s36, 0
      %p294 = por %p292, %p293
      %s296 = sadd.s32 %s295, 1
      %p299 = scmp.eq.s32.totalorder %s30, 1
      %p300 = scmp.ne.s32.totalorder %s295, %s297
      %p301 = scmp.eq.s32.totalorder %s30, 0
      %p302 = por %p300, %p301
      %p303 = scmp.ne.s32.totalorder %s295, %s297
      %p304 = scmp.eq.s32.totalorder %s35, 1
      %p305 = por %p303, %p304
      %p306 = scmp.ne.s32.totalorder %s297, %s298
      %p307 = scmp.eq.s32.totalorder %s35, 0
      %p308 = por %p306, %p307
      %p309 = scmp.ne.s32.totalorder %s297, %s298
      %p310 = scmp.eq.s32.totalorder %s36, 1
      %p311 = por %p309, %p310
      %p313 = scmp.ne.s32.totalorder %s298, %s312
      %p314 = scmp.eq.s32.totalorder %s36, 0
      %p315 = por %p313, %p314
      %s317 = sadd.s32 %s316, 1
      %p320 = scmp.eq.s32.totalorder %s30, 1
      %p321 = scmp.ne.s32.totalorder %s316, %s318
      %p322 = scmp.eq.s32.totalorder %s30, 0
      %p323 = por %p321, %p322
      %p324 = scmp.ne.s32.totalorder %s316, %s318
      %p325 = scmp.eq.s32.totalorder %s35, 1
      %p326 = por %p324, %p325
      %p327 = scmp.ne.s32.totalorder %s318, %s319
      %p328 = scmp.eq.s32.totalorder %s35, 0
      %p329 = por %p327, %p328
      %p330 = scmp.ne.s32.totalorder %s318, %s319
      %p331 = scmp.eq.s32.totalorder %s36, 1
      %p332 = por %p330, %p331
      %p334 = scmp.ne.s32.totalorder %s319, %s333
      %p335 = scmp.eq.s32.totalorder %s36, 0
      %p336 = por %p334, %p335
      %s338 = sadd.s32 %s337, 1
      %p341 = scmp.eq.s32.totalorder %s30, 1
      %p342 = scmp.ne.s32.totalorder %s337, %s339
      %p343 = scmp.eq.s32.totalorder %s30, 0
      %p344 = por %p342, %p343
      %p345 = scmp.ne.s32.totalorder %s337, %s339
      %p346 = scmp.eq.s32.totalorder %s35, 1
      %p347 = por %p345, %p346
      %p348 = scmp.ne.s32.totalorder %s339, %s340
      %p349 = scmp.eq.s32.totalorder %s35, 0
      %p350 = por %p348, %p349
      %p351 = scmp.ne.s32.totalorder %s339, %s340
      %p352 = scmp.eq.s32.totalorder %s36, 1
      %p353 = por %p351, %p352
      %p355 = scmp.ne.s32.totalorder %s340, %s354
      %p356 = scmp.eq.s32.totalorder %s36, 0
      %p357 = por %p355, %p356
      %s358 = ssub.s32 %s30, %s37
      %p359 = scmp.eq.s32.totalorder %s358, 0
      %s361 = sadd.s32 %s360, 1
      %s362 = scalar_select %p359, %s360, %s361
      %p365 = pneg %p359
      %p366 = scmp.eq.s32.totalorder %s30, 1
      %p367 = por %p365, %p366
      %p368 = scmp.ne.s32.totalorder %s360, %s363
      %p369 = scmp.eq.s32.totalorder %s30, 0
      %p370 = por %p368, %p369
      %p371 = scmp.ne.s32.totalorder %s360, %s363
      %p372 = scmp.eq.s32.totalorder %s35, 1
      %p373 = por %p371, %p372
      %p374 = scmp.ne.s32.totalorder %s363, %s364
      %p375 = scmp.eq.s32.totalorder %s35, 0
      %p376 = por %p374, %p375
      %p377 = scmp.ne.s32.totalorder %s363, %s364
      %p378 = scmp.eq.s32.totalorder %s36, 1
      %p379 = por %p377, %p378
      %p381 = scmp.ne.s32.totalorder %s364, %s380
      %p382 = scmp.eq.s32.totalorder %s36, 0
      %p383 = por %p381, %p382
      %p384 = scmp.le.s32.totalorder 1, %s30
      %p385 = scmp.lt.s32.totalorder %s30, 3
      %p386 = pnand %p384, %p385
      %p387 = pneg %p386
      // Predicated region
      $region9: #{tpu_custom_call.1} parent=5 // pred_check
        _
      $region10: #{tpu_custom_call.1} parent=5 // pred_check_branch
        %389 = sbr.rel (%p386) target = $region12
      $region11: #{tpu_custom_call.1} parent=5 // pred_region
        %s390 = ssub.s32 %s30, 1
        // Predicated region
        $region13: #{tpu_custom_call.1} parent=11 // pred_check
          %p391 = pneg %p77
        $region14: #{tpu_custom_call.1} parent=11 // pred_check_branch
          %393 = sbr.rel (%p391) target = $region16
        $region15: #{tpu_custom_call.1} parent=11 // pred_region
          %s395 = ssub.s32 2048, 2048
          %396 = vsyncadd [#allocation6], %s395
          %s397 = sshll.u32 [#allocation5], 4
          %s398 = int_to_ptr.vmem [resolvable:$true] %s397
          %403 = dma.hbm_to_vmem [thread:$0]  %s1, 2048, %s398, [#allocation6], 128, 128, 8
        $region16: #{tpu_custom_call.1} parent=11 // pred_fallthru
          _
        // Predicated region
        $region17: #{tpu_custom_call.1} parent=11 // pred_check
          %p404 = pneg %p98
        $region18: #{tpu_custom_call.1} parent=11 // pred_check_branch
          %406 = sbr.rel (%p404) target = $region20
        $region19: #{tpu_custom_call.1} parent=11 // pred_region
          _
        $region20: #{tpu_custom_call.1} parent=11 // pred_fallthru
          _
        // Predicated region
        $region21: #{tpu_custom_call.1} parent=11 // pred_check
          %p407 = pneg %p119
        $region22: #{tpu_custom_call.1} parent=11 // pred_check_branch
          %409 = sbr.rel (%p407) target = $region24
        $region23: #{tpu_custom_call.1} parent=11 // pred_region
          %s411 = ssub.s32 2048, 2048
          %412 = vsyncadd [#allocation6], %s411
          %s413 = sshll.u32 [#allocation7], 4
          %s414 = int_to_ptr.vmem [resolvable:$true] %s413
          %419 = dma.hbm_to_vmem [thread:$0]  %s3, 2048, %s414, [#allocation6], 128, 128, 8
        $region24: #{tpu_custom_call.1} parent=11 // pred_fallthru
          _
        // Predicated region
        $region25: #{tpu_custom_call.1} parent=11 // pred_check
          %p420 = pneg %p140
        $region26: #{tpu_custom_call.1} parent=11 // pred_check_branch
          %422 = sbr.rel (%p420) target = $region28
        $region27: #{tpu_custom_call.1} parent=11 // pred_region
          _
        $region28: #{tpu_custom_call.1} parent=11 // pred_fallthru
          _
        // Predicated region
        $region29: #{tpu_custom_call.1} parent=11 // pred_check
          %p423 = pneg %p161
        $region30: #{tpu_custom_call.1} parent=11 // pred_check_branch
          %425 = sbr.rel (%p423) target = $region32
        $region31: #{tpu_custom_call.1} parent=11 // pred_region
          %s427 = ssub.s32 2048, 2048
          %428 = vsyncadd [#allocation9], %s427
          %s429 = sshll.u32 [#allocation8], 4
          %s430 = int_to_ptr.vmem [resolvable:$true] %s429
          %435 = dma.hbm_to_vmem [thread:$0]  %s5, 2048, %s430, [#allocation9], 128, 128, 8
        $region32: #{tpu_custom_call.1} parent=11 // pred_fallthru
          _
        // Predicated region
        $region33: #{tpu_custom_call.1} parent=11 // pred_check
          %p436 = pneg %p182
        $region34: #{tpu_custom_call.1} parent=11 // pred_check_branch
          %438 = sbr.rel (%p436) target = $region36
        $region35: #{tpu_custom_call.1} parent=11 // pred_region
          _
        $region36: #{tpu_custom_call.1} parent=11 // pred_fallthru
          _
        // Predicated region
        $region37: #{tpu_custom_call.1} parent=11 // pred_check
          %p439 = pneg %p203
        $region38: #{tpu_custom_call.1} parent=11 // pred_check_branch
          %441 = sbr.rel (%p439) target = $region40
        $region39: #{tpu_custom_call.1} parent=11 // pred_region
          %s443 = ssub.s32 2048, 2048
          %444 = vsyncadd [#allocation9], %s443
          %s445 = sshll.u32 [#allocation10], 4
          %s446 = int_to_ptr.vmem [resolvable:$true] %s445
          %451 = dma.hbm_to_vmem [thread:$0]  %s7, 2048, %s446, [#allocation9], 128, 128, 8
        $region40: #{tpu_custom_call.1} parent=11 // pred_fallthru
          _
        // Predicated region
        $region41: #{tpu_custom_call.1} parent=11 // pred_check
          %p452 = pneg %p224
        $region42: #{tpu_custom_call.1} parent=11 // pred_check_branch
          %454 = sbr.rel (%p452) target = $region44
        $region43: #{tpu_custom_call.1} parent=11 // pred_region
          _
        $region44: #{tpu_custom_call.1} parent=11 // pred_fallthru
          _
        // Predicated region
        $region45: #{tpu_custom_call.1} parent=11 // pred_check
          %p455 = pneg %p245
        $region46: #{tpu_custom_call.1} parent=11 // pred_check_branch
          %457 = sbr.rel (%p455) target = $region48
        $region47: #{tpu_custom_call.1} parent=11 // pred_region
          %s459 = ssub.s32 2048, 2048
          %460 = vsyncadd [#allocation12], %s459
          %s461 = sshll.u32 [#allocation11], 4
          %s462 = int_to_ptr.vmem [resolvable:$true] %s461
          %467 = dma.hbm_to_vmem [thread:$0]  %s9, 2048, %s462, [#allocation12], 128, 128, 8
        $region48: #{tpu_custom_call.1} parent=11 // pred_fallthru
          _
        // Predicated region
        $region49: #{tpu_custom_call.1} parent=11 // pred_check
          %p468 = pneg %p266
        $region50: #{tpu_custom_call.1} parent=11 // pred_check_branch
          %470 = sbr.rel (%p468) target = $region52
        $region51: #{tpu_custom_call.1} parent=11 // pred_region
          _
        $region52: #{tpu_custom_call.1} parent=11 // pred_fallthru
          _
        // Predicated region
        $region53: #{tpu_custom_call.1} parent=11 // pred_check
          %p471 = pneg %p287
        $region54: #{tpu_custom_call.1} parent=11 // pred_check_branch
          %473 = sbr.rel (%p471) target = $region56
        $region55: #{tpu_custom_call.1} parent=11 // pred_region
          %s475 = ssub.s32 2048, 2048
          %476 = vsyncadd [#allocation12], %s475
          %s477 = sshll.u32 [#allocation13], 4
          %s478 = int_to_ptr.vmem [resolvable:$true] %s477
          %483 = dma.hbm_to_vmem [thread:$0]  %s11, 2048, %s478, [#allocation12], 128, 128, 8
        $region56: #{tpu_custom_call.1} parent=11 // pred_fallthru
          _
        // Predicated region
        $region57: #{tpu_custom_call.1} parent=11 // pred_check
          %p484 = pneg %p308
        $region58: #{tpu_custom_call.1} parent=11 // pred_check_branch
          %486 = sbr.rel (%p484) target = $region60
        $region59: #{tpu_custom_call.1} parent=11 // pred_region
          _
        $region60: #{tpu_custom_call.1} parent=11 // pred_fallthru
          _
        // Predicated region
        $region61: #{tpu_custom_call.1} parent=11 // pred_check
          %p487 = pneg %p329
        $region62: #{tpu_custom_call.1} parent=11 // pred_check_branch
          %489 = sbr.rel (%p487) target = $region64
        $region63: #{tpu_custom_call.1} parent=11 // pred_region
          _
        $region64: #{tpu_custom_call.1} parent=11 // pred_fallthru
          _
        // Predicated region
        $region65: #{tpu_custom_call.1} parent=11 // pred_check
          %p490 = pneg %p350
        $region66: #{tpu_custom_call.1} parent=11 // pred_check_branch
          %492 = sbr.rel (%p490) target = $region68
        $region67: #{tpu_custom_call.1} parent=11 // pred_region
          _
        $region68: #{tpu_custom_call.1} parent=11 // pred_fallthru
          _
      $region12: #{tpu_custom_call.1} parent=5 // pred_fallthru
        _
      %p493 = scmp.lt.s32.totalorder %s30, 2
      // Predicated region
      $region69: #{tpu_custom_call.1} parent=5 // pred_check
        %p494 = pneg %p493
      $region70: #{tpu_custom_call.1} parent=5 // pred_check_branch
        %496 = sbr.rel (%p494) target = $region72
      $region71: #{tpu_custom_call.1} parent=5 // pred_region
        // Predicated region
        $region73: #{tpu_custom_call.1} parent=71 // pred_check
          %p497 = pneg %p50
        $region74: #{tpu_custom_call.1} parent=71 // pred_check_branch
          %499 = sbr.rel (%p497) target = $region76
        $region75: #{tpu_custom_call.1} parent=71 // pred_region
          %s500 = sand.u32 %s40, 1
          %s501 = scalar_lea.sflag [#allocation3], %s500
          %s502 = sand.u32 %s40, 1
          %s503 = smul.addr %s502, 8
          %s504 = scalar_lea.vmem [#allocation2], %s503
          %s506 = ssub.s32 128, 128
          %507 = vsyncadd %s501, %s506
          %s508 = smul.addr %s30, 128
          %s509 = scalar_lea.hbm %s0, %s508
          %s511 = sshll.u32 %s504, 4
          %s512 = int_to_ptr.vmem [resolvable:$true] %s511
          %514 = dma.hbm_to_vmem [thread:$0]  %s509, 128, %s512, %s501
        $region76: #{tpu_custom_call.1} parent=71 // pred_fallthru
          _
      $region72: #{tpu_custom_call.1} parent=5 // pred_fallthru
        _
      %p515 = scmp.le.s32.totalorder 1, %s30
      %p516 = scmp.lt.s32.totalorder %s30, 3
      %p517 = pnand %p515, %p516
      %p518 = pneg %p517
      // Predicated region
      $region77: #{tpu_custom_call.1} parent=5 // pred_check
        _
      $region78: #{tpu_custom_call.1} parent=5 // pred_check_branch
        %520 = sbr.rel (%p517) target = $region80
      $region79: #{tpu_custom_call.1} parent=5 // pred_region
        %s521 = ssub.s32 %s30, 1
        %s522 = sand.u32 %s43, 1
        %s523 = scalar_lea.sflag [#allocation3], %s522
        %s524 = sand.u32 %s43, 1
        %s525 = smul.addr %s524, 8
        %s526 = scalar_lea.vmem [#allocation2], %s525
        // Predicated region
        $region81: #{tpu_custom_call.1} parent=79 // pred_check
          %p527 = pneg %p56
        $region82: #{tpu_custom_call.1} parent=79 // pred_check_branch
          %529 = sbr.rel (%p527) target = $region84
        $region83: #{tpu_custom_call.1} parent=79 // pred_region
          %530 = dma.done %s523, 128
        $region84: #{tpu_custom_call.1} parent=79 // pred_fallthru
          _
        // Predicated region
        $region85: #{tpu_custom_call.1} parent=79 // pred_check
          %p531 = pneg %p77
        $region86: #{tpu_custom_call.1} parent=79 // pred_check_branch
          %533 = sbr.rel (%p531) target = $region88
        $region87: #{tpu_custom_call.1} parent=79 // pred_region
          %534 = dma.done [#allocation6], 2048
        $region88: #{tpu_custom_call.1} parent=79 // pred_fallthru
          _
        // Predicated region
        $region89: #{tpu_custom_call.1} parent=79 // pred_check
          %p535 = pneg %p119
        $region90: #{tpu_custom_call.1} parent=79 // pred_check_branch
          %537 = sbr.rel (%p535) target = $region92
        $region91: #{tpu_custom_call.1} parent=79 // pred_region
          %538 = dma.done [#allocation6], 2048
        $region92: #{tpu_custom_call.1} parent=79 // pred_fallthru
          _
        // Predicated region
        $region93: #{tpu_custom_call.1} parent=79 // pred_check
          %p539 = pneg %p161
        $region94: #{tpu_custom_call.1} parent=79 // pred_check_branch
          %541 = sbr.rel (%p539) target = $region96
        $region95: #{tpu_custom_call.1} parent=79 // pred_region
          %542 = dma.done [#allocation9], 2048
        $region96: #{tpu_custom_call.1} parent=79 // pred_fallthru
          _
        // Predicated region
        $region97: #{tpu_custom_call.1} parent=79 // pred_check
          %p543 = pneg %p203
        $region98: #{tpu_custom_call.1} parent=79 // pred_check_branch
          %545 = sbr.rel (%p543) target = $region100
        $region99: #{tpu_custom_call.1} parent=79 // pred_region
          %546 = dma.done [#allocation9], 2048
        $region100: #{tpu_custom_call.1} parent=79 // pred_fallthru
          _
        // Predicated region
        $region101: #{tpu_custom_call.1} parent=79 // pred_check
          %p547 = pneg %p245
        $region102: #{tpu_custom_call.1} parent=79 // pred_check_branch
          %549 = sbr.rel (%p547) target = $region104
        $region103: #{tpu_custom_call.1} parent=79 // pred_region
          %550 = dma.done [#allocation12], 2048
        $region104: #{tpu_custom_call.1} parent=79 // pred_fallthru
          _
        // Predicated region
        $region105: #{tpu_custom_call.1} parent=79 // pred_check
          %p551 = pneg %p287
        $region106: #{tpu_custom_call.1} parent=79 // pred_check_branch
          %553 = sbr.rel (%p551) target = $region108
        $region107: #{tpu_custom_call.1} parent=79 // pred_region
          %554 = dma.done [#allocation12], 2048
        $region108: #{tpu_custom_call.1} parent=79 // pred_fallthru
          _
        %s555 = sand.u32 %s43, 1
        %s556 = scalar_lea.sflag [#allocation3], %s555
        %s557 = sand.u32 %s43, 1
        %s558 = smul.addr %s557, 8
        %s559 = scalar_lea.vmem [#allocation2], %s558
        %p560 = pneg %p56
        %p561 = pneg %p53
        %p562 = pneg %p77
        %p563 = pneg %p74
        %p564 = pneg %p98
        %p565 = pneg %p95
        %p566 = pneg %p119
        %p567 = pneg %p116
        %p568 = pneg %p140
        %p569 = pneg %p137
        %p570 = pneg %p161
        %p571 = pneg %p158
        %p572 = pneg %p182
        %p573 = pneg %p179
        %p574 = pneg %p203
        %p575 = pneg %p200
        %p576 = pneg %p224
        %p577 = pneg %p221
        %p578 = pneg %p245
        %p579 = pneg %p242
        %p580 = pneg %p266
        %p581 = pneg %p263
        %p582 = pneg %p287
        %p583 = pneg %p284
        %p584 = pneg %p308
        %p585 = pneg %p305
        %p586 = pneg %p329
        %p587 = pneg %p326
        %p588 = pneg %p350
        %p589 = pneg %p347
        %p590 = pneg %p376
        %p591 = pneg %p373
        %s592 = sand.u32 %s363, 1
        %s593 = scalar_lea.sflag [#allocation4], %s592
        %s594 = sand.u32 %s363, 1
        %s595 = smul.addr %s594, 8
        %s596 = scalar_lea.vmem [#allocation14], %s595
        %v597 = vld [vmem:[%s526] sm:$0xff]
        %v598 = vld [vmem:[#allocation8] sm:$0xff]
        %v599 = vld [vmem:[#allocation8 + $0x8] sm:$0xff]
        %v600 = vld [vmem:[#allocation8 + $0x10] sm:$0xff]
        %v601 = vld [vmem:[#allocation8 + $0x18] sm:$0xff]
        %v602 = vld [vmem:[#allocation8 + $0x20] sm:$0xff]
        %v603 = vld [vmem:[#allocation8 + $0x28] sm:$0xff]
        %v604 = vld [vmem:[#allocation8 + $0x30] sm:$0xff]
        %v605 = vld [vmem:[#allocation8 + $0x38] sm:$0xff]
        %v606 = vld [vmem:[#allocation8 + $0x40] sm:$0xff]
        %v607 = vld [vmem:[#allocation8 + $0x48] sm:$0xff]
        %v608 = vld [vmem:[#allocation8 + $0x50] sm:$0xff]
        %v609 = vld [vmem:[#allocation8 + $0x58] sm:$0xff]
        %v610 = vld [vmem:[#allocation8 + $0x60] sm:$0xff]
        %v611 = vld [vmem:[#allocation8 + $0x68] sm:$0xff]
        %v612 = vld [vmem:[#allocation8 + $0x70] sm:$0xff]
        %v613 = vld [vmem:[#allocation8 + $0x78] sm:$0xff]
        %v614 = vld [vmem:[%s6] sm:$0x1]
        %v616 = vlaneseq
        %v617 = vshrl.u32 %v616, 7
        %v618 = vsub.s32 0, %v617
        %v619 = vrot.slane %v614, %v618
        %621 = vmatprep.subr.mxu0 0.0
        %622 = vmatpush1.msra.mxu0 %v598
        %623 = vmatprep.subr.mxu0 0.0
        %624 = vmatpush1.msra.mxu0 %v599
        %625 = vmatprep.subr.mxu0 0.0
        %626 = vmatpush1.msra.mxu0 %v600
        %627 = vmatprep.subr.mxu0 0.0
        %628 = vmatpush1.msra.mxu0 %v601
        %629 = vmatprep.subr.mxu0 0.0
        %630 = vmatpush1.msra.mxu0 %v602
        %631 = vmatprep.subr.mxu0 0.0
        %632 = vmatpush1.msra.mxu0 %v603
        %633 = vmatprep.subr.mxu0 0.0
        %634 = vmatpush1.msra.mxu0 %v604
        %635 = vmatprep.subr.mxu0 0.0
        %636 = vmatpush1.msra.mxu0 %v605
        %637 = vmatprep.subr.mxu0 0.0
        %638 = vmatpush1.msra.mxu0 %v606
        %639 = vmatprep.subr.mxu0 0.0
        %640 = vmatpush1.msra.mxu0 %v607
        %641 = vmatprep.subr.mxu0 0.0
        %642 = vmatpush1.msra.mxu0 %v608
        %643 = vmatprep.subr.mxu0 0.0
        %644 = vmatpush1.msra.mxu0 %v609
        %645 = vmatprep.subr.mxu0 0.0
        %646 = vmatpush1.msra.mxu0 %v610
        %647 = vmatprep.subr.mxu0 0.0
        %648 = vmatpush1.msra.mxu0 %v611
        %649 = vmatprep.subr.mxu0 0.0
        %650 = vmatpush1.msra.mxu0 %v612
        %651 = vmatprep.subr.mxu0 0.0
        %652 = vmatpush1.msra.mxu0 %v613
        %653 = vmatprep.subr.mxu0 0.0
        %654 = vmatpush1.msra.mxu0 0.0
        %655 = vmatprep.subr.mxu0 0.0
        %656 = vmatpush1.msra.mxu0 0.0
        %657 = vmatprep.subr.mxu0 0.0
        %658 = vmatpush1.msra.mxu0 0.0
        %659 = vmatprep.subr.mxu0 0.0
        %660 = vmatpush1.msra.mxu0 0.0
        %661 = vmatprep.subr.mxu0 0.0
        %662 = vmatpush1.msra.mxu0 0.0
        %663 = vmatprep.subr.mxu0 0.0
        %664 = vmatpush1.msra.mxu0 0.0
        %665 = vmatprep.subr.mxu0 0.0
        %666 = vmatpush1.msra.mxu0 0.0
        %667 = vmatprep.subr.mxu0 0.0
        %668 = vmatpush1.msra.mxu0 0.0
        %669 = vmatprep.subr.mxu0 0.0
        %670 = vmatpush1.msra.mxu0 0.0
        %671 = vmatprep.subr.mxu0 0.0
        %672 = vmatpush1.msra.mxu0 0.0
        %673 = vmatprep.subr.mxu0 0.0
        %674 = vmatpush1.msra.mxu0 0.0
        %675 = vmatprep.subr.mxu0 0.0
        %676 = vmatpush1.msra.mxu0 0.0
        %677 = vmatprep.subr.mxu0 0.0
        %678 = vmatpush1.msra.mxu0 0.0
        %679 = vmatprep.subr.mxu0 0.0
        %680 = vmatpush1.msra.mxu0 0.0
        %681 = vmatprep.subr.mxu0 0.0
        %682 = vmatpush1.msra.mxu0 0.0
        %683 = vmatprep.subr.mxu0 0.0
        %684 = vmatpush1.msra.mxu0 0.0
        %685 = vmatprep.mubr.f32.mxu0 0.0
        %686 = vmatmul.mubr.f32.gmra.mrb[0].mxu0 %v597
        %v687 = vpop.f32.mrb[0].mxu0
        %v688 = vadd.f32 %v619, %v687
        %v689 = vpop.f32.mrb[0].mxu0
        %690 = vdwg.mxu0
        %v691 = vld [vmem:[#allocation5] sm:$0xff]
        %v692 = vld [vmem:[#allocation5 + $0x8] sm:$0xff]
        %v693 = vld [vmem:[#allocation5 + $0x10] sm:$0xff]
        %v694 = vld [vmem:[#allocation5 + $0x18] sm:$0xff]
        %v695 = vld [vmem:[#allocation5 + $0x20] sm:$0xff]
        %v696 = vld [vmem:[#allocation5 + $0x28] sm:$0xff]
        %v697 = vld [vmem:[#allocation5 + $0x30] sm:$0xff]
        %v698 = vld [vmem:[#allocation5 + $0x38] sm:$0xff]
        %v699 = vld [vmem:[#allocation5 + $0x40] sm:$0xff]
        %v700 = vld [vmem:[#allocation5 + $0x48] sm:$0xff]
        %v701 = vld [vmem:[#allocation5 + $0x50] sm:$0xff]
        %v702 = vld [vmem:[#allocation5 + $0x58] sm:$0xff]
        %v703 = vld [vmem:[#allocation5 + $0x60] sm:$0xff]
        %v704 = vld [vmem:[#allocation5 + $0x68] sm:$0xff]
        %v705 = vld [vmem:[#allocation5 + $0x70] sm:$0xff]
        %v706 = vld [vmem:[#allocation5 + $0x78] sm:$0xff]
        %v707 = vld [vmem:[%s2] sm:$0x1]
        %v709 = vlaneseq
        %v710 = vshrl.u32 %v709, 7
        %v711 = vsub.s32 0, %v710
        %v712 = vrot.slane %v707, %v711
        %714 = vmatprep.subr.mxu0 0.0
        %715 = vmatpush1.msra.mxu0 %v691
        %716 = vmatprep.subr.mxu0 0.0
        %717 = vmatpush1.msra.mxu0 %v692
        %718 = vmatprep.subr.mxu0 0.0
        %719 = vmatpush1.msra.mxu0 %v693
        %720 = vmatprep.subr.mxu0 0.0
        %721 = vmatpush1.msra.mxu0 %v694
        %722 = vmatprep.subr.mxu0 0.0
        %723 = vmatpush1.msra.mxu0 %v695
        %724 = vmatprep.subr.mxu0 0.0
        %725 = vmatpush1.msra.mxu0 %v696
        %726 = vmatprep.subr.mxu0 0.0
        %727 = vmatpush1.msra.mxu0 %v697
        %728 = vmatprep.subr.mxu0 0.0
        %729 = vmatpush1.msra.mxu0 %v698
        %730 = vmatprep.subr.mxu0 0.0
        %731 = vmatpush1.msra.mxu0 %v699
        %732 = vmatprep.subr.mxu0 0.0
        %733 = vmatpush1.msra.mxu0 %v700
        %734 = vmatprep.subr.mxu0 0.0
        %735 = vmatpush1.msra.mxu0 %v701
        %736 = vmatprep.subr.mxu0 0.0
        %737 = vmatpush1.msra.mxu0 %v702
        %738 = vmatprep.subr.mxu0 0.0
        %739 = vmatpush1.msra.mxu0 %v703
        %740 = vmatprep.subr.mxu0 0.0
        %741 = vmatpush1.msra.mxu0 %v704
        %742 = vmatprep.subr.mxu0 0.0
        %743 = vmatpush1.msra.mxu0 %v705
        %744 = vmatprep.subr.mxu0 0.0
        %745 = vmatpush1.msra.mxu0 %v706
        %746 = vmatprep.subr.mxu0 0.0
        %747 = vmatpush1.msra.mxu0 0.0
        %748 = vmatprep.subr.mxu0 0.0
        %749 = vmatpush1.msra.mxu0 0.0
        %750 = vmatprep.subr.mxu0 0.0
        %751 = vmatpush1.msra.mxu0 0.0
        %752 = vmatprep.subr.mxu0 0.0
        %753 = vmatpush1.msra.mxu0 0.0
        %754 = vmatprep.subr.mxu0 0.0
        %755 = vmatpush1.msra.mxu0 0.0
        %756 = vmatprep.subr.mxu0 0.0
        %757 = vmatpush1.msra.mxu0 0.0
        %758 = vmatprep.subr.mxu0 0.0
        %759 = vmatpush1.msra.mxu0 0.0
        %760 = vmatprep.subr.mxu0 0.0
        %761 = vmatpush1.msra.mxu0 0.0
        %762 = vmatprep.subr.mxu0 0.0
        %763 = vmatpush1.msra.mxu0 0.0
        %764 = vmatprep.subr.mxu0 0.0
        %765 = vmatpush1.msra.mxu0 0.0
        %766 = vmatprep.subr.mxu0 0.0
        %767 = vmatpush1.msra.mxu0 0.0
        %768 = vmatprep.subr.mxu0 0.0
        %769 = vmatpush1.msra.mxu0 0.0
        %770 = vmatprep.subr.mxu0 0.0
        %771 = vmatpush1.msra.mxu0 0.0
        %772 = vmatprep.subr.mxu0 0.0
        %773 = vmatpush1.msra.mxu0 0.0
        %774 = vmatprep.subr.mxu0 0.0
        %775 = vmatpush1.msra.mxu0 0.0
        %776 = vmatprep.subr.mxu0 0.0
        %777 = vmatpush1.msra.mxu0 0.0
        %778 = vmatprep.mubr.f32.mxu0 0.0
        %779 = vmatmul.mubr.f32.gmra.mrb[0].mxu0 %v597
        %v780 = vpop.f32.mrb[0].mxu0
        %v781 = vadd.f32 %v712, %v780
        %v782 = vpop.f32.mrb[0].mxu0
        %783 = vdwg.mxu0
        %v784 = vld [vmem:[#allocation7] sm:$0xff]
        %v785 = vld [vmem:[#allocation7 + $0x8] sm:$0xff]
        %v786 = vld [vmem:[#allocation7 + $0x10] sm:$0xff]
        %v787 = vld [vmem:[#allocation7 + $0x18] sm:$0xff]
        %v788 = vld [vmem:[#allocation7 + $0x20] sm:$0xff]
        %v789 = vld [vmem:[#allocation7 + $0x28] sm:$0xff]
        %v790 = vld [vmem:[#allocation7 + $0x30] sm:$0xff]
        %v791 = vld [vmem:[#allocation7 + $0x38] sm:$0xff]
        %v792 = vld [vmem:[#allocation7 + $0x40] sm:$0xff]
        %v793 = vld [vmem:[#allocation7 + $0x48] sm:$0xff]
        %v794 = vld [vmem:[#allocation7 + $0x50] sm:$0xff]
        %v795 = vld [vmem:[#allocation7 + $0x58] sm:$0xff]
        %v796 = vld [vmem:[#allocation7 + $0x60] sm:$0xff]
        %v797 = vld [vmem:[#allocation7 + $0x68] sm:$0xff]
        %v798 = vld [vmem:[#allocation7 + $0x70] sm:$0xff]
        %v799 = vld [vmem:[#allocation7 + $0x78] sm:$0xff]
        %v800 = vld [vmem:[%s4] sm:$0x1]
        %v802 = vlaneseq
        %v803 = vshrl.u32 %v802, 7
        %v804 = vsub.s32 0, %v803
        %v805 = vrot.slane %v800, %v804
        %807 = vmatprep.subr.mxu0 0.0
        %808 = vmatpush1.msra.mxu0 %v784
        %809 = vmatprep.subr.mxu0 0.0
        %810 = vmatpush1.msra.mxu0 %v785
        %811 = vmatprep.subr.mxu0 0.0
        %812 = vmatpush1.msra.mxu0 %v786
        %813 = vmatprep.subr.mxu0 0.0
        %814 = vmatpush1.msra.mxu0 %v787
        %815 = vmatprep.subr.mxu0 0.0
        %816 = vmatpush1.msra.mxu0 %v788
        %817 = vmatprep.subr.mxu0 0.0
        %818 = vmatpush1.msra.mxu0 %v789
        %819 = vmatprep.subr.mxu0 0.0
        %820 = vmatpush1.msra.mxu0 %v790
        %821 = vmatprep.subr.mxu0 0.0
        %822 = vmatpush1.msra.mxu0 %v791
        %823 = vmatprep.subr.mxu0 0.0
        %824 = vmatpush1.msra.mxu0 %v792
        %825 = vmatprep.subr.mxu0 0.0
        %826 = vmatpush1.msra.mxu0 %v793
        %827 = vmatprep.subr.mxu0 0.0
        %828 = vmatpush1.msra.mxu0 %v794
        %829 = vmatprep.subr.mxu0 0.0
        %830 = vmatpush1.msra.mxu0 %v795
        %831 = vmatprep.subr.mxu0 0.0
        %832 = vmatpush1.msra.mxu0 %v796
        %833 = vmatprep.subr.mxu0 0.0
        %834 = vmatpush1.msra.mxu0 %v797
        %835 = vmatprep.subr.mxu0 0.0
        %836 = vmatpush1.msra.mxu0 %v798
        %837 = vmatprep.subr.mxu0 0.0
        %838 = vmatpush1.msra.mxu0 %v799
        %839 = vmatprep.subr.mxu0 0.0
        %840 = vmatpush1.msra.mxu0 0.0
        %841 = vmatprep.subr.mxu0 0.0
        %842 = vmatpush1.msra.mxu0 0.0
        %843 = vmatprep.subr.mxu0 0.0
        %844 = vmatpush1.msra.mxu0 0.0
        %845 = vmatprep.subr.mxu0 0.0
        %846 = vmatpush1.msra.mxu0 0.0
        %847 = vmatprep.subr.mxu0 0.0
        %848 = vmatpush1.msra.mxu0 0.0
        %849 = vmatprep.subr.mxu0 0.0
        %850 = vmatpush1.msra.mxu0 0.0
        %851 = vmatprep.subr.mxu0 0.0
        %852 = vmatpush1.msra.mxu0 0.0
        %853 = vmatprep.subr.mxu0 0.0
        %854 = vmatpush1.msra.mxu0 0.0
        %855 = vmatprep.subr.mxu0 0.0
        %856 = vmatpush1.msra.mxu0 0.0
        %857 = vmatprep.subr.mxu0 0.0
        %858 = vmatpush1.msra.mxu0 0.0
        %859 = vmatprep.subr.mxu0 0.0
        %860 = vmatpush1.msra.mxu0 0.0
        %861 = vmatprep.subr.mxu0 0.0
        %862 = vmatpush1.msra.mxu0 0.0
        %863 = vmatprep.subr.mxu0 0.0
        %864 = vmatpush1.msra.mxu0 0.0
        %865 = vmatprep.subr.mxu0 0.0
        %866 = vmatpush1.msra.mxu0 0.0
        %867 = vmatprep.subr.mxu0 0.0
        %868 = vmatpush1.msra.mxu0 0.0
        %869 = vmatprep.subr.mxu0 0.0
        %870 = vmatpush1.msra.mxu0 0.0
        %871 = vmatprep.mubr.f32.mxu0 0.0
        %872 = vmatmul.mubr.f32.gmra.mrb[0].mxu0 %v597
        %v873 = vpop.f32.mrb[0].mxu0
        %v874 = vadd.f32 %v805, %v873
        %v875 = vpop.f32.mrb[0].mxu0
        %876 = vdwg.mxu0
        %vm877 = vcmask 64512
        %v879 = vsel %vm877, %v781, 0
        %v882 = vsel %vm877, %v874, 0
        %884 = vmatprep.subr.mxu0 0.0
        %885 = vmatpush1.xpose.msra.mxu0 %v882
        %886 = vmatprep.subr.mxu0 0.0
        %887 = vmatpush1.xpose.msra.mxu0 0.0
        %888 = vmatprep.subr.mxu0 0.0
        %889 = vmatpush1.xpose.msra.mxu0 0.0
        %890 = vmatprep.subr.mxu0 0.0
        %891 = vmatpush1.xpose.msra.mxu0 0.0
        %892 = vmatprep.subr.mxu0 0.0
        %893 = vmatpush1.xpose.msra.mxu0 0.0
        %894 = vmatprep.subr.mxu0 0.0
        %895 = vmatpush1.xpose.msra.mxu0 0.0
        %896 = vmatprep.subr.mxu0 0.0
        %897 = vmatpush1.xpose.msra.mxu0 0.0
        %898 = vmatprep.subr.mxu0 0.0
        %899 = vmatpush1.xpose.msra.mxu0 0.0
        %900 = vmatprep.subr.mxu0 0.0
        %901 = vmatpush1.xpose.msra.mxu0 0.0
        %902 = vmatprep.subr.mxu0 0.0
        %903 = vmatpush1.xpose.msra.mxu0 0.0
        %904 = vmatprep.subr.mxu0 0.0
        %905 = vmatpush1.xpose.msra.mxu0 0.0
        %906 = vmatprep.subr.mxu0 0.0
        %907 = vmatpush1.xpose.msra.mxu0 0.0
        %908 = vmatprep.subr.mxu0 0.0
        %909 = vmatpush1.xpose.msra.mxu0 0.0
        %910 = vmatprep.subr.mxu0 0.0
        %911 = vmatpush1.xpose.msra.mxu0 0.0
        %912 = vmatprep.subr.mxu0 0.0
        %913 = vmatpush1.xpose.msra.mxu0 0.0
        %914 = vmatprep.subr.mxu0 0.0
        %915 = vmatpush1.xpose.msra.mxu0 0.0
        %916 = vmatprep.subr.mxu0 0.0
        %917 = vmatpush1.xpose.msra.mxu0 0.0
        %918 = vmatprep.subr.mxu0 0.0
        %919 = vmatpush1.xpose.msra.mxu0 0.0
        %920 = vmatprep.subr.mxu0 0.0
        %921 = vmatpush1.xpose.msra.mxu0 0.0
        %922 = vmatprep.subr.mxu0 0.0
        %923 = vmatpush1.xpose.msra.mxu0 0.0
        %924 = vmatprep.subr.mxu0 0.0
        %925 = vmatpush1.xpose.msra.mxu0 0.0
        %926 = vmatprep.subr.mxu0 0.0
        %927 = vmatpush1.xpose.msra.mxu0 0.0
        %928 = vmatprep.subr.mxu0 0.0
        %929 = vmatpush1.xpose.msra.mxu0 0.0
        %930 = vmatprep.subr.mxu0 0.0
        %931 = vmatpush1.xpose.msra.mxu0 0.0
        %932 = vmatprep.subr.mxu0 0.0
        %933 = vmatpush1.xpose.msra.mxu0 0.0
        %934 = vmatprep.subr.mxu0 0.0
        %935 = vmatpush1.xpose.msra.mxu0 0.0
        %936 = vmatprep.subr.mxu0 0.0
        %937 = vmatpush1.xpose.msra.mxu0 0.0
        %938 = vmatprep.subr.mxu0 0.0
        %939 = vmatpush1.xpose.msra.mxu0 0.0
        %940 = vmatprep.subr.mxu0 0.0
        %941 = vmatpush1.xpose.msra.mxu0 0.0
        %942 = vmatprep.subr.mxu0 0.0
        %943 = vmatpush1.xpose.msra.mxu0 0.0
        %944 = vmatprep.subr.mxu0 0.0
        %945 = vmatpush1.xpose.msra.mxu0 0.0
        %946 = vmatprep.subr.mxu0 0.0
        %947 = vmatpush1.xpose.msra.mxu0 0.0
        %948 = vmatprep.mubr.f32.mxu0 0.0
        %949 = vmatmul.mubr.f32.gmra.mrb[0].mxu0 %v879
        %v950 = vpop.f32.mrb[0].mxu0
        %v951 = vadd.f32 0.0, %v950
        %v952 = vpop.f32.mrb[0].mxu0
        %953 = vdwg.mxu0
        %v954 = vsel %vm877, %v951, -inf
        %955 = vmax.xlane.f32.xlu0 %v954
        %v956 = vpop.xlane.xlu0 %955
        %v957 = vsub.f32 %v951, %v956
        %v958 = vmul.f32 %v957, 1.442695
        %v959 = vpow.pop %v958
        %v960 = vsel %vm877, %v959, 0.0
        %961 = vadd.xlane.f32.xlu0 %v960
        %v962 = vpop.xlane.xlu0 %961
        %v963 = vrcp.pop %v962
        %v964 = vmul.f32 %v959, %v963
        %v966 = vsel %vm877, %v964, 0
        %968 = vmatprep.subr.mxu0 0.0
        %969 = vmatpush1.msra.mxu0 %v688
        %970 = vmatprep.subr.mxu0 0.0
        %971 = vmatpush1.msra.mxu0 0.0
        %972 = vmatprep.subr.mxu0 0.0
        %973 = vmatpush1.msra.mxu0 0.0
        %974 = vmatprep.subr.mxu0 0.0
        %975 = vmatpush1.msra.mxu0 0.0
        %976 = vmatprep.subr.mxu0 0.0
        %977 = vmatpush1.msra.mxu0 0.0
        %978 = vmatprep.subr.mxu0 0.0
        %979 = vmatpush1.msra.mxu0 0.0
        %980 = vmatprep.subr.mxu0 0.0
        %981 = vmatpush1.msra.mxu0 0.0
        %982 = vmatprep.subr.mxu0 0.0
        %983 = vmatpush1.msra.mxu0 0.0
        %984 = vmatprep.subr.mxu0 0.0
        %985 = vmatpush1.msra.mxu0 0.0
        %986 = vmatprep.subr.mxu0 0.0
        %987 = vmatpush1.msra.mxu0 0.0
        %988 = vmatprep.subr.mxu0 0.0
        %989 = vmatpush1.msra.mxu0 0.0
        %990 = vmatprep.subr.mxu0 0.0
        %991 = vmatpush1.msra.mxu0 0.0
        %992 = vmatprep.subr.mxu0 0.0
        %993 = vmatpush1.msra.mxu0 0.0
        %994 = vmatprep.subr.mxu0 0.0
        %995 = vmatpush1.msra.mxu0 0.0
        %996 = vmatprep.subr.mxu0 0.0
        %997 = vmatpush1.msra.mxu0 0.0
        %998 = vmatprep.subr.mxu0 0.0
        %999 = vmatpush1.msra.mxu0 0.0
        %1000 = vmatprep.subr.mxu0 0.0
        %1001 = vmatpush1.msra.mxu0 0.0
        %1002 = vmatprep.subr.mxu0 0.0
        %1003 = vmatpush1.msra.mxu0 0.0
        %1004 = vmatprep.subr.mxu0 0.0
        %1005 = vmatpush1.msra.mxu0 0.0
        %1006 = vmatprep.subr.mxu0 0.0
        %1007 = vmatpush1.msra.mxu0 0.0
        %1008 = vmatprep.subr.mxu0 0.0
        %1009 = vmatpush1.msra.mxu0 0.0
        %1010 = vmatprep.subr.mxu0 0.0
        %1011 = vmatpush1.msra.mxu0 0.0
        %1012 = vmatprep.subr.mxu0 0.0
        %1013 = vmatpush1.msra.mxu0 0.0
        %1014 = vmatprep.subr.mxu0 0.0
        %1015 = vmatpush1.msra.mxu0 0.0
        %1016 = vmatprep.subr.mxu0 0.0
        %1017 = vmatpush1.msra.mxu0 0.0
        %1018 = vmatprep.subr.mxu0 0.0
        %1019 = vmatpush1.msra.mxu0 0.0
        %1020 = vmatprep.subr.mxu0 0.0
        %1021 = vmatpush1.msra.mxu0 0.0
        %1022 = vmatprep.subr.mxu0 0.0
        %1023 = vmatpush1.msra.mxu0 0.0
        %1024 = vmatprep.subr.mxu0 0.0
        %1025 = vmatpush1.msra.mxu0 0.0
        %1026 = vmatprep.subr.mxu0 0.0
        %1027 = vmatpush1.msra.mxu0 0.0
        %1028 = vmatprep.subr.mxu0 0.0
        %1029 = vmatpush1.msra.mxu0 0.0
        %1030 = vmatprep.subr.mxu0 0.0
        %1031 = vmatpush1.msra.mxu0 0.0
        %1032 = vmatprep.mubr.f32.mxu0 0.0
        %1033 = vmatmul.mubr.f32.gmra.mrb[0].mxu0 %v966
        %v1034 = vpop.f32.mrb[0].mxu0
        %v1035 = vadd.f32 0.0, %v1034
        %v1036 = vpop.f32.mrb[0].mxu0
        %1037 = vdwg.mxu0
        %1038 = vrot.lane.b32.xlu0 %v781, 120
        %v1039 = vpop.permute.xlu0 %1038
        %1040 = vrot.lane.b32.xlu0 %v874, 120
        %v1041 = vpop.permute.xlu0 %1040
        %v1042 = vsel %vm877, %v1039, 0
        %v1044 = vsel %vm877, %v1041, 0
        %1046 = vmatprep.subr.mxu0 0.0
        %1047 = vmatpush1.xpose.msra.mxu0 %v1044
        %1048 = vmatprep.subr.mxu0 0.0
        %1049 = vmatpush1.xpose.msra.mxu0 0.0
        %1050 = vmatprep.subr.mxu0 0.0
        %1051 = vmatpush1.xpose.msra.mxu0 0.0
        %1052 = vmatprep.subr.mxu0 0.0
        %1053 = vmatpush1.xpose.msra.mxu0 0.0
        %1054 = vmatprep.subr.mxu0 0.0
        %1055 = vmatpush1.xpose.msra.mxu0 0.0
        %1056 = vmatprep.subr.mxu0 0.0
        %1057 = vmatpush1.xpose.msra.mxu0 0.0
        %1058 = vmatprep.subr.mxu0 0.0
        %1059 = vmatpush1.xpose.msra.mxu0 0.0
        %1060 = vmatprep.subr.mxu0 0.0
        %1061 = vmatpush1.xpose.msra.mxu0 0.0
        %1062 = vmatprep.subr.mxu0 0.0
        %1063 = vmatpush1.xpose.msra.mxu0 0.0
        %1064 = vmatprep.subr.mxu0 0.0
        %1065 = vmatpush1.xpose.msra.mxu0 0.0
        %1066 = vmatprep.subr.mxu0 0.0
        %1067 = vmatpush1.xpose.msra.mxu0 0.0
        %1068 = vmatprep.subr.mxu0 0.0
        %1069 = vmatpush1.xpose.msra.mxu0 0.0
        %1070 = vmatprep.subr.mxu0 0.0
        %1071 = vmatpush1.xpose.msra.mxu0 0.0
        %1072 = vmatprep.subr.mxu0 0.0
        %1073 = vmatpush1.xpose.msra.mxu0 0.0
        %1074 = vmatprep.subr.mxu0 0.0
        %1075 = vmatpush1.xpose.msra.mxu0 0.0
        %1076 = vmatprep.subr.mxu0 0.0
        %1077 = vmatpush1.xpose.msra.mxu0 0.0
        %1078 = vmatprep.subr.mxu0 0.0
        %1079 = vmatpush1.xpose.msra.mxu0 0.0
        %1080 = vmatprep.subr.mxu0 0.0
        %1081 = vmatpush1.xpose.msra.mxu0 0.0
        %1082 = vmatprep.subr.mxu0 0.0
        %1083 = vmatpush1.xpose.msra.mxu0 0.0
        %1084 = vmatprep.subr.mxu0 0.0
        %1085 = vmatpush1.xpose.msra.mxu0 0.0
        %1086 = vmatprep.subr.mxu0 0.0
        %1087 = vmatpush1.xpose.msra.mxu0 0.0
        %1088 = vmatprep.subr.mxu0 0.0
        %1089 = vmatpush1.xpose.msra.mxu0 0.0
        %1090 = vmatprep.subr.mxu0 0.0
        %1091 = vmatpush1.xpose.msra.mxu0 0.0
        %1092 = vmatprep.subr.mxu0 0.0
        %1093 = vmatpush1.xpose.msra.mxu0 0.0
        %1094 = vmatprep.subr.mxu0 0.0
        %1095 = vmatpush1.xpose.msra.mxu0 0.0
        %1096 = vmatprep.subr.mxu0 0.0
        %1097 = vmatpush1.xpose.msra.mxu0 0.0
        %1098 = vmatprep.subr.mxu0 0.0
        %1099 = vmatpush1.xpose.msra.mxu0 0.0
        %1100 = vmatprep.subr.mxu0 0.0
        %1101 = vmatpush1.xpose.msra.mxu0 0.0
        %1102 = vmatprep.subr.mxu0 0.0
        %1103 = vmatpush1.xpose.msra.mxu0 0.0
        %1104 = vmatprep.subr.mxu0 0.0
        %1105 = vmatpush1.xpose.msra.mxu0 0.0
        %1106 = vmatprep.subr.mxu0 0.0
        %1107 = vmatpush1.xpose.msra.mxu0 0.0
        %1108 = vmatprep.subr.mxu0 0.0
        %1109 = vmatpush1.xpose.msra.mxu0 0.0
        %1110 = vmatprep.mubr.f32.mxu0 0.0
        %1111 = vmatmul.mubr.f32.gmra.mrb[0].mxu0 %v1042
        %v1112 = vpop.f32.mrb[0].mxu0
        %v1113 = vadd.f32 0.0, %v1112
        %v1114 = vpop.f32.mrb[0].mxu0
        %1115 = vdwg.mxu0
        %v1116 = vsel %vm877, %v1113, -inf
        %1117 = vmax.xlane.f32.xlu0 %v1116
        %v1118 = vpop.xlane.xlu0 %1117
        %v1119 = vsub.f32 %v1113, %v1118
        %v1120 = vmul.f32 %v1119, 1.442695
        %v1121 = vpow.pop %v1120
        %v1122 = vsel %vm877, %v1121, 0.0
        %1123 = vadd.xlane.f32.xlu0 %v1122
        %v1124 = vpop.xlane.xlu0 %1123
        %v1125 = vrcp.pop %v1124
        %v1126 = vmul.f32 %v1121, %v1125
        %1128 = vrot.lane.b32.xlu0 %v688, 120
        %v1129 = vpop.permute.xlu0 %1128
        %v1132 = vsel %vm877, %v1126, 0
        %1134 = vmatprep.subr.mxu0 0.0
        %1135 = vmatpush1.msra.mxu0 %v1129
        %1136 = vmatprep.subr.mxu0 0.0
        %1137 = vmatpush1.msra.mxu0 0.0
        %1138 = vmatprep.subr.mxu0 0.0
        %1139 = vmatpush1.msra.mxu0 0.0
        %1140 = vmatprep.subr.mxu0 0.0
        %1141 = vmatpush1.msra.mxu0 0.0
        %1142 = vmatprep.subr.mxu0 0.0
        %1143 = vmatpush1.msra.mxu0 0.0
        %1144 = vmatprep.subr.mxu0 0.0
        %1145 = vmatpush1.msra.mxu0 0.0
        %1146 = vmatprep.subr.mxu0 0.0
        %1147 = vmatpush1.msra.mxu0 0.0
        %1148 = vmatprep.subr.mxu0 0.0
        %1149 = vmatpush1.msra.mxu0 0.0
        %1150 = vmatprep.subr.mxu0 0.0
        %1151 = vmatpush1.msra.mxu0 0.0
        %1152 = vmatprep.subr.mxu0 0.0
        %1153 = vmatpush1.msra.mxu0 0.0
        %1154 = vmatprep.subr.mxu0 0.0
        %1155 = vmatpush1.msra.mxu0 0.0
        %1156 = vmatprep.subr.mxu0 0.0
        %1157 = vmatpush1.msra.mxu0 0.0
        %1158 = vmatprep.subr.mxu0 0.0
        %1159 = vmatpush1.msra.mxu0 0.0
        %1160 = vmatprep.subr.mxu0 0.0
        %1161 = vmatpush1.msra.mxu0 0.0
        %1162 = vmatprep.subr.mxu0 0.0
        %1163 = vmatpush1.msra.mxu0 0.0
        %1164 = vmatprep.subr.mxu0 0.0
        %1165 = vmatpush1.msra.mxu0 0.0
        %1166 = vmatprep.subr.mxu0 0.0
        %1167 = vmatpush1.msra.mxu0 0.0
        %1168 = vmatprep.subr.mxu0 0.0
        %1169 = vmatpush1.msra.mxu0 0.0
        %1170 = vmatprep.subr.mxu0 0.0
        %1171 = vmatpush1.msra.mxu0 0.0
        %1172 = vmatprep.subr.mxu0 0.0
        %1173 = vmatpush1.msra.mxu0 0.0
        %1174 = vmatprep.subr.mxu0 0.0
        %1175 = vmatpush1.msra.mxu0 0.0
        %1176 = vmatprep.subr.mxu0 0.0
        %1177 = vmatpush1.msra.mxu0 0.0
        %1178 = vmatprep.subr.mxu0 0.0
        %1179 = vmatpush1.msra.mxu0 0.0
        %1180 = vmatprep.subr.mxu0 0.0
        %1181 = vmatpush1.msra.mxu0 0.0
        %1182 = vmatprep.subr.mxu0 0.0
        %1183 = vmatpush1.msra.mxu0 0.0
        %1184 = vmatprep.subr.mxu0 0.0
        %1185 = vmatpush1.msra.mxu0 0.0
        %1186 = vmatprep.subr.mxu0 0.0
        %1187 = vmatpush1.msra.mxu0 0.0
        %1188 = vmatprep.subr.mxu0 0.0
        %1189 = vmatpush1.msra.mxu0 0.0
        %1190 = vmatprep.subr.mxu0 0.0
        %1191 = vmatpush1.msra.mxu0 0.0
        %1192 = vmatprep.subr.mxu0 0.0
        %1193 = vmatpush1.msra.mxu0 0.0
        %1194 = vmatprep.subr.mxu0 0.0
        %1195 = vmatpush1.msra.mxu0 0.0
        %1196 = vmatprep.subr.mxu0 0.0
        %1197 = vmatpush1.msra.mxu0 0.0
        %1198 = vmatprep.mubr.f32.mxu0 0.0
        %1199 = vmatmul.mubr.f32.gmra.mrb[0].mxu0 %v1132
        %v1200 = vpop.f32.mrb[0].mxu0
        %v1201 = vadd.f32 0.0, %v1200
        %v1202 = vpop.f32.mrb[0].mxu0
        %1203 = vdwg.mxu0
        %1204 = vrot.lane.b32.xlu0 %v781, 112
        %v1205 = vpop.permute.xlu0 %1204
        %1206 = vrot.lane.b32.xlu0 %v874, 112
        %v1207 = vpop.permute.xlu0 %1206
        %v1208 = vsel %vm877, %v1205, 0
        %v1210 = vsel %vm877, %v1207, 0
        %1212 = vmatprep.subr.mxu0 0.0
        %1213 = vmatpush1.xpose.msra.mxu0 %v1210
        %1214 = vmatprep.subr.mxu0 0.0
        %1215 = vmatpush1.xpose.msra.mxu0 0.0
        %1216 = vmatprep.subr.mxu0 0.0
        %1217 = vmatpush1.xpose.msra.mxu0 0.0
        %1218 = vmatprep.subr.mxu0 0.0
        %1219 = vmatpush1.xpose.msra.mxu0 0.0
        %1220 = vmatprep.subr.mxu0 0.0
        %1221 = vmatpush1.xpose.msra.mxu0 0.0
        %1222 = vmatprep.subr.mxu0 0.0
        %1223 = vmatpush1.xpose.msra.mxu0 0.0
        %1224 = vmatprep.subr.mxu0 0.0
        %1225 = vmatpush1.xpose.msra.mxu0 0.0
        %1226 = vmatprep.subr.mxu0 0.0
        %1227 = vmatpush1.xpose.msra.mxu0 0.0
        %1228 = vmatprep.subr.mxu0 0.0
        %1229 = vmatpush1.xpose.msra.mxu0 0.0
        %1230 = vmatprep.subr.mxu0 0.0
        %1231 = vmatpush1.xpose.msra.mxu0 0.0
        %1232 = vmatprep.subr.mxu0 0.0
        %1233 = vmatpush1.xpose.msra.mxu0 0.0
        %1234 = vmatprep.subr.mxu0 0.0
        %1235 = vmatpush1.xpose.msra.mxu0 0.0
        %1236 = vmatprep.subr.mxu0 0.0
        %1237 = vmatpush1.xpose.msra.mxu0 0.0
        %1238 = vmatprep.subr.mxu0 0.0
        %1239 = vmatpush1.xpose.msra.mxu0 0.0
        %1240 = vmatprep.subr.mxu0 0.0
        %1241 = vmatpush1.xpose.msra.mxu0 0.0
        %1242 = vmatprep.subr.mxu0 0.0
        %1243 = vmatpush1.xpose.msra.mxu0 0.0
        %1244 = vmatprep.subr.mxu0 0.0
        %1245 = vmatpush1.xpose.msra.mxu0 0.0
        %1246 = vmatprep.subr.mxu0 0.0
        %1247 = vmatpush1.xpose.msra.mxu0 0.0
        %1248 = vmatprep.subr.mxu0 0.0
        %1249 = vmatpush1.xpose.msra.mxu0 0.0
        %1250 = vmatprep.subr.mxu0 0.0
        %1251 = vmatpush1.xpose.msra.mxu0 0.0
        %1252 = vmatprep.subr.mxu0 0.0
        %1253 = vmatpush1.xpose.msra.mxu0 0.0
        %1254 = vmatprep.subr.mxu0 0.0
        %1255 = vmatpush1.xpose.msra.mxu0 0.0
        %1256 = vmatprep.subr.mxu0 0.0
        %1257 = vmatpush1.xpose.msra.mxu0 0.0
        %1258 = vmatprep.subr.mxu0 0.0
        %1259 = vmatpush1.xpose.msra.mxu0 0.0
        %1260 = vmatprep.subr.mxu0 0.0
        %1261 = vmatpush1.xpose.msra.mxu0 0.0
        %1262 = vmatprep.subr.mxu0 0.0
        %1263 = vmatpush1.xpose.msra.mxu0 0.0
        %1264 = vmatprep.subr.mxu0 0.0
        %1265 = vmatpush1.xpose.msra.mxu0 0.0
        %1266 = vmatprep.subr.mxu0 0.0
        %1267 = vmatpush1.xpose.msra.mxu0 0.0
        %1268 = vmatprep.subr.mxu0 0.0
        %1269 = vmatpush1.xpose.msra.mxu0 0.0
        %1270 = vmatprep.subr.mxu0 0.0
        %1271 = vmatpush1.xpose.msra.mxu0 0.0
        %1272 = vmatprep.subr.mxu0 0.0
        %1273 = vmatpush1.xpose.msra.mxu0 0.0
        %1274 = vmatprep.subr.mxu0 0.0
        %1275 = vmatpush1.xpose.msra.mxu0 0.0
        %1276 = vmatprep.mubr.f32.mxu0 0.0
        %1277 = vmatmul.mubr.f32.gmra.mrb[0].mxu0 %v1208
        %v1278 = vpop.f32.mrb[0].mxu0
        %v1279 = vadd.f32 0.0, %v1278
        %v1280 = vpop.f32.mrb[0].mxu0
        %1281 = vdwg.mxu0
        %v1282 = vsel %vm877, %v1279, -inf
        %1283 = vmax.xlane.f32.xlu0 %v1282
        %v1284 = vpop.xlane.xlu0 %1283
        %v1285 = vsub.f32 %v1279, %v1284
        %v1286 = vmul.f32 %v1285, 1.442695
        %v1287 = vpow.pop %v1286
        %v1288 = vsel %vm877, %v1287, 0.0
        %1289 = vadd.xlane.f32.xlu0 %v1288
        %v1290 = vpop.xlane.xlu0 %1289
        %v1291 = vrcp.pop %v1290
        %v1292 = vmul.f32 %v1287, %v1291
        %1293 = vrot.lane.b32.xlu0 %v688, 112
        %v1294 = vpop.permute.xlu0 %1293
        %v1297 = vsel %vm877, %v1292, 0
        %1299 = vmatprep.subr.mxu0 0.0
        %1300 = vmatpush1.msra.mxu0 %v1294
        %1301 = vmatprep.subr.mxu0 0.0
        %1302 = vmatpush1.msra.mxu0 0.0
        %1303 = vmatprep.subr.mxu0 0.0
        %1304 = vmatpush1.msra.mxu0 0.0
        %1305 = vmatprep.subr.mxu0 0.0
        %1306 = vmatpush1.msra.mxu0 0.0
        %1307 = vmatprep.subr.mxu0 0.0
        %1308 = vmatpush1.msra.mxu0 0.0
        %1309 = vmatprep.subr.mxu0 0.0
        %1310 = vmatpush1.msra.mxu0 0.0
        %1311 = vmatprep.subr.mxu0 0.0
        %1312 = vmatpush1.msra.mxu0 0.0
        %1313 = vmatprep.subr.mxu0 0.0
        %1314 = vmatpush1.msra.mxu0 0.0
        %1315 = vmatprep.subr.mxu0 0.0
        %1316 = vmatpush1.msra.mxu0 0.0
        %1317 = vmatprep.subr.mxu0 0.0
        %1318 = vmatpush1.msra.mxu0 0.0
        %1319 = vmatprep.subr.mxu0 0.0
        %1320 = vmatpush1.msra.mxu0 0.0
        %1321 = vmatprep.subr.mxu0 0.0
        %1322 = vmatpush1.msra.mxu0 0.0
        %1323 = vmatprep.subr.mxu0 0.0
        %1324 = vmatpush1.msra.mxu0 0.0
        %1325 = vmatprep.subr.mxu0 0.0
        %1326 = vmatpush1.msra.mxu0 0.0
        %1327 = vmatprep.subr.mxu0 0.0
        %1328 = vmatpush1.msra.mxu0 0.0
        %1329 = vmatprep.subr.mxu0 0.0
        %1330 = vmatpush1.msra.mxu0 0.0
        %1331 = vmatprep.subr.mxu0 0.0
        %1332 = vmatpush1.msra.mxu0 0.0
        %1333 = vmatprep.subr.mxu0 0.0
        %1334 = vmatpush1.msra.mxu0 0.0
        %1335 = vmatprep.subr.mxu0 0.0
        %1336 = vmatpush1.msra.mxu0 0.0
        %1337 = vmatprep.subr.mxu0 0.0
        %1338 = vmatpush1.msra.mxu0 0.0
        %1339 = vmatprep.subr.mxu0 0.0
        %1340 = vmatpush1.msra.mxu0 0.0
        %1341 = vmatprep.subr.mxu0 0.0
        %1342 = vmatpush1.msra.mxu0 0.0
        %1343 = vmatprep.subr.mxu0 0.0
        %1344 = vmatpush1.msra.mxu0 0.0
        %1345 = vmatprep.subr.mxu0 0.0
        %1346 = vmatpush1.msra.mxu0 0.0
        %1347 = vmatprep.subr.mxu0 0.0
        %1348 = vmatpush1.msra.mxu0 0.0
        %1349 = vmatprep.subr.mxu0 0.0
        %1350 = vmatpush1.msra.mxu0 0.0
        %1351 = vmatprep.subr.mxu0 0.0
        %1352 = vmatpush1.msra.mxu0 0.0
        %1353 = vmatprep.subr.mxu0 0.0
        %1354 = vmatpush1.msra.mxu0 0.0
        %1355 = vmatprep.subr.mxu0 0.0
        %1356 = vmatpush1.msra.mxu0 0.0
        %1357 = vmatprep.subr.mxu0 0.0
        %1358 = vmatpush1.msra.mxu0 0.0
        %1359 = vmatprep.subr.mxu0 0.0
        %1360 = vmatpush1.msra.mxu0 0.0
        %1361 = vmatprep.subr.mxu0 0.0
        %1362 = vmatpush1.msra.mxu0 0.0
        %1363 = vmatprep.mubr.f32.mxu0 0.0
        %1364 = vmatmul.mubr.f32.gmra.mrb[0].mxu0 %v1297
        %v1365 = vpop.f32.mrb[0].mxu0
        %v1366 = vadd.f32 0.0, %v1365
        %v1367 = vpop.f32.mrb[0].mxu0
        %1368 = vdwg.mxu0
        %1369 = vrot.lane.b32.xlu0 %v781, 104
        %v1370 = vpop.permute.xlu0 %1369
        %1371 = vrot.lane.b32.xlu0 %v874, 104
        %v1372 = vpop.permute.xlu0 %1371
        %v1373 = vsel %vm877, %v1370, 0
        %v1375 = vsel %vm877, %v1372, 0
        %1377 = vmatprep.subr.mxu0 0.0
        %1378 = vmatpush1.xpose.msra.mxu0 %v1375
        %1379 = vmatprep.subr.mxu0 0.0
        %1380 = vmatpush1.xpose.msra.mxu0 0.0
        %1381 = vmatprep.subr.mxu0 0.0
        %1382 = vmatpush1.xpose.msra.mxu0 0.0
        %1383 = vmatprep.subr.mxu0 0.0
        %1384 = vmatpush1.xpose.msra.mxu0 0.0
        %1385 = vmatprep.subr.mxu0 0.0
        %1386 = vmatpush1.xpose.msra.mxu0 0.0
        %1387 = vmatprep.subr.mxu0 0.0
        %1388 = vmatpush1.xpose.msra.mxu0 0.0
        %1389 = vmatprep.subr.mxu0 0.0
        %1390 = vmatpush1.xpose.msra.mxu0 0.0
        %1391 = vmatprep.subr.mxu0 0.0
        %1392 = vmatpush1.xpose.msra.mxu0 0.0
        %1393 = vmatprep.subr.mxu0 0.0
        %1394 = vmatpush1.xpose.msra.mxu0 0.0
        %1395 = vmatprep.subr.mxu0 0.0
        %1396 = vmatpush1.xpose.msra.mxu0 0.0
        %1397 = vmatprep.subr.mxu0 0.0
        %1398 = vmatpush1.xpose.msra.mxu0 0.0
        %1399 = vmatprep.subr.mxu0 0.0
        %1400 = vmatpush1.xpose.msra.mxu0 0.0
        %1401 = vmatprep.subr.mxu0 0.0
        %1402 = vmatpush1.xpose.msra.mxu0 0.0
        %1403 = vmatprep.subr.mxu0 0.0
        %1404 = vmatpush1.xpose.msra.mxu0 0.0
        %1405 = vmatprep.subr.mxu0 0.0
        %1406 = vmatpush1.xpose.msra.mxu0 0.0
        %1407 = vmatprep.subr.mxu0 0.0
        %1408 = vmatpush1.xpose.msra.mxu0 0.0
        %1409 = vmatprep.subr.mxu0 0.0
        %1410 = vmatpush1.xpose.msra.mxu0 0.0
        %1411 = vmatprep.subr.mxu0 0.0
        %1412 = vmatpush1.xpose.msra.mxu0 0.0
        %1413 = vmatprep.subr.mxu0 0.0
        %1414 = vmatpush1.xpose.msra.mxu0 0.0
        %1415 = vmatprep.subr.mxu0 0.0
        %1416 = vmatpush1.xpose.msra.mxu0 0.0
        %1417 = vmatprep.subr.mxu0 0.0
        %1418 = vmatpush1.xpose.msra.mxu0 0.0
        %1419 = vmatprep.subr.mxu0 0.0
        %1420 = vmatpush1.xpose.msra.mxu0 0.0
        %1421 = vmatprep.subr.mxu0 0.0
        %1422 = vmatpush1.xpose.msra.mxu0 0.0
        %1423 = vmatprep.subr.mxu0 0.0
        %1424 = vmatpush1.xpose.msra.mxu0 0.0
        %1425 = vmatprep.subr.mxu0 0.0
        %1426 = vmatpush1.xpose.msra.mxu0 0.0
        %1427 = vmatprep.subr.mxu0 0.0
        %1428 = vmatpush1.xpose.msra.mxu0 0.0
        %1429 = vmatprep.subr.mxu0 0.0
        %1430 = vmatpush1.xpose.msra.mxu0 0.0
        %1431 = vmatprep.subr.mxu0 0.0
        %1432 = vmatpush1.xpose.msra.mxu0 0.0
        %1433 = vmatprep.subr.mxu0 0.0
        %1434 = vmatpush1.xpose.msra.mxu0 0.0
        %1435 = vmatprep.subr.mxu0 0.0
        %1436 = vmatpush1.xpose.msra.mxu0 0.0
        %1437 = vmatprep.subr.mxu0 0.0
        %1438 = vmatpush1.xpose.msra.mxu0 0.0
        %1439 = vmatprep.subr.mxu0 0.0
        %1440 = vmatpush1.xpose.msra.mxu0 0.0
        %1441 = vmatprep.mubr.f32.mxu0 0.0
        %1442 = vmatmul.mubr.f32.gmra.mrb[0].mxu0 %v1373
        %v1443 = vpop.f32.mrb[0].mxu0
        %v1444 = vadd.f32 0.0, %v1443
        %v1445 = vpop.f32.mrb[0].mxu0
        %1446 = vdwg.mxu0
        %v1447 = vsel %vm877, %v1444, -inf
        %1448 = vmax.xlane.f32.xlu0 %v1447
        %v1449 = vpop.xlane.xlu0 %1448
        %v1450 = vsub.f32 %v1444, %v1449
        %v1451 = vmul.f32 %v1450, 1.442695
        %v1452 = vpow.pop %v1451
        %v1453 = vsel %vm877, %v1452, 0.0
        %1454 = vadd.xlane.f32.xlu0 %v1453
        %v1455 = vpop.xlane.xlu0 %1454
        %v1456 = vrcp.pop %v1455
        %v1457 = vmul.f32 %v1452, %v1456
        %1458 = vrot.lane.b32.xlu0 %v688, 104
        %v1459 = vpop.permute.xlu0 %1458
        %v1462 = vsel %vm877, %v1457, 0
        %1464 = vmatprep.subr.mxu0 0.0
        %1465 = vmatpush1.msra.mxu0 %v1459
        %1466 = vmatprep.subr.mxu0 0.0
        %1467 = vmatpush1.msra.mxu0 0.0
        %1468 = vmatprep.subr.mxu0 0.0
        %1469 = vmatpush1.msra.mxu0 0.0
        %1470 = vmatprep.subr.mxu0 0.0
        %1471 = vmatpush1.msra.mxu0 0.0
        %1472 = vmatprep.subr.mxu0 0.0
        %1473 = vmatpush1.msra.mxu0 0.0
        %1474 = vmatprep.subr.mxu0 0.0
        %1475 = vmatpush1.msra.mxu0 0.0
        %1476 = vmatprep.subr.mxu0 0.0
        %1477 = vmatpush1.msra.mxu0 0.0
        %1478 = vmatprep.subr.mxu0 0.0
        %1479 = vmatpush1.msra.mxu0 0.0
        %1480 = vmatprep.subr.mxu0 0.0
        %1481 = vmatpush1.msra.mxu0 0.0
        %1482 = vmatprep.subr.mxu0 0.0
        %1483 = vmatpush1.msra.mxu0 0.0
        %1484 = vmatprep.subr.mxu0 0.0
        %1485 = vmatpush1.msra.mxu0 0.0
        %1486 = vmatprep.subr.mxu0 0.0
        %1487 = vmatpush1.msra.mxu0 0.0
        %1488 = vmatprep.subr.mxu0 0.0
        %1489 = vmatpush1.msra.mxu0 0.0
        %1490 = vmatprep.subr.mxu0 0.0
        %1491 = vmatpush1.msra.mxu0 0.0
        %1492 = vmatprep.subr.mxu0 0.0
        %1493 = vmatpush1.msra.mxu0 0.0
        %1494 = vmatprep.subr.mxu0 0.0
        %1495 = vmatpush1.msra.mxu0 0.0
        %1496 = vmatprep.subr.mxu0 0.0
        %1497 = vmatpush1.msra.mxu0 0.0
        %1498 = vmatprep.subr.mxu0 0.0
        %1499 = vmatpush1.msra.mxu0 0.0
        %1500 = vmatprep.subr.mxu0 0.0
        %1501 = vmatpush1.msra.mxu0 0.0
        %1502 = vmatprep.subr.mxu0 0.0
        %1503 = vmatpush1.msra.mxu0 0.0
        %1504 = vmatprep.subr.mxu0 0.0
        %1505 = vmatpush1.msra.mxu0 0.0
        %1506 = vmatprep.subr.mxu0 0.0
        %1507 = vmatpush1.msra.mxu0 0.0
        %1508 = vmatprep.subr.mxu0 0.0
        %1509 = vmatpush1.msra.mxu0 0.0
        %1510 = vmatprep.subr.mxu0 0.0
        %1511 = vmatpush1.msra.mxu0 0.0
        %1512 = vmatprep.subr.mxu0 0.0
        %1513 = vmatpush1.msra.mxu0 0.0
        %1514 = vmatprep.subr.mxu0 0.0
        %1515 = vmatpush1.msra.mxu0 0.0
        %1516 = vmatprep.subr.mxu0 0.0
        %1517 = vmatpush1.msra.mxu0 0.0
        %1518 = vmatprep.subr.mxu0 0.0
        %1519 = vmatpush1.msra.mxu0 0.0
        %1520 = vmatprep.subr.mxu0 0.0
        %1521 = vmatpush1.msra.mxu0 0.0
        %1522 = vmatprep.subr.mxu0 0.0
        %1523 = vmatpush1.msra.mxu0 0.0
        %1524 = vmatprep.subr.mxu0 0.0
        %1525 = vmatpush1.msra.mxu0 0.0
        %1526 = vmatprep.subr.mxu0 0.0
        %1527 = vmatpush1.msra.mxu0 0.0
        %1528 = vmatprep.mubr.f32.mxu0 0.0
        %1529 = vmatmul.mubr.f32.gmra.mrb[0].mxu0 %v1462
        %v1530 = vpop.f32.mrb[0].mxu0
        %v1531 = vadd.f32 0.0, %v1530
        %v1532 = vpop.f32.mrb[0].mxu0
        %1533 = vdwg.mxu0
        %1535 = vrot.lane.b32.xlu0 %v1201, 8
        %v1536 = vpop.permute.xlu0 %1535
        %1539 = vrot.lane.b32.xlu0 %v1366, 16
        %v1540 = vpop.permute.xlu0 %1539
        %1543 = vrot.lane.b32.xlu0 %v1531, 24
        %v1544 = vpop.permute.xlu0 %1543
        %v1546 = vsel %vm877, %v1035, %v1536
        %vm1547 = vcmask 130048
        %v1548 = vsel %vm1547, %v1546, %v1540
        %vm1549 = vcmask 195584
        %v1550 = vsel %vm1549, %v1548, %v1544
        %vm1551 = vcmask 261120
        %v1552 = vsel %vm1551, %v1550, 0.0
        %v1553 = vld [vmem:[#allocation10] sm:$0xff]
        %v1554 = vld [vmem:[#allocation10 + $0x8] sm:$0xff]
        %v1555 = vld [vmem:[#allocation10 + $0x10] sm:$0xff]
        %v1556 = vld [vmem:[#allocation10 + $0x18] sm:$0xff]
        %v1557 = vld [vmem:[#allocation10 + $0x20] sm:$0xff]
        %v1558 = vld [vmem:[#allocation10 + $0x28] sm:$0xff]
        %v1559 = vld [vmem:[#allocation10 + $0x30] sm:$0xff]
        %v1560 = vld [vmem:[#allocation10 + $0x38] sm:$0xff]
        %v1561 = vld [vmem:[#allocation10 + $0x40] sm:$0xff]
        %v1562 = vld [vmem:[#allocation10 + $0x48] sm:$0xff]
        %v1563 = vld [vmem:[#allocation10 + $0x50] sm:$0xff]
        %v1564 = vld [vmem:[#allocation10 + $0x58] sm:$0xff]
        %v1565 = vld [vmem:[#allocation10 + $0x60] sm:$0xff]
        %v1566 = vld [vmem:[#allocation10 + $0x68] sm:$0xff]
        %v1567 = vld [vmem:[#allocation10 + $0x70] sm:$0xff]
        %v1568 = vld [vmem:[#allocation10 + $0x78] sm:$0xff]
        %v1569 = vld [vmem:[%s8] sm:$0x1]
        %v1571 = vlaneseq
        %v1572 = vshrl.u32 %v1571, 7
        %v1573 = vsub.s32 0, %v1572
        %v1574 = vrot.slane %v1569, %v1573
        %1576 = vmatprep.subr.mxu0 0.0
        %1577 = vmatpush1.msra.mxu0 %v1553
        %1578 = vmatprep.subr.mxu0 0.0
        %1579 = vmatpush1.msra.mxu0 %v1554
        %1580 = vmatprep.subr.mxu0 0.0
        %1581 = vmatpush1.msra.mxu0 %v1555
        %1582 = vmatprep.subr.mxu0 0.0
        %1583 = vmatpush1.msra.mxu0 %v1556
        %1584 = vmatprep.subr.mxu0 0.0
        %1585 = vmatpush1.msra.mxu0 %v1557
        %1586 = vmatprep.subr.mxu0 0.0
        %1587 = vmatpush1.msra.mxu0 %v1558
        %1588 = vmatprep.subr.mxu0 0.0
        %1589 = vmatpush1.msra.mxu0 %v1559
        %1590 = vmatprep.subr.mxu0 0.0
        %1591 = vmatpush1.msra.mxu0 %v1560
        %1592 = vmatprep.subr.mxu0 0.0
        %1593 = vmatpush1.msra.mxu0 %v1561
        %1594 = vmatprep.subr.mxu0 0.0
        %1595 = vmatpush1.msra.mxu0 %v1562
        %1596 = vmatprep.subr.mxu0 0.0
        %1597 = vmatpush1.msra.mxu0 %v1563
        %1598 = vmatprep.subr.mxu0 0.0
        %1599 = vmatpush1.msra.mxu0 %v1564
        %1600 = vmatprep.subr.mxu0 0.0
        %1601 = vmatpush1.msra.mxu0 %v1565
        %1602 = vmatprep.subr.mxu0 0.0
        %1603 = vmatpush1.msra.mxu0 %v1566
        %1604 = vmatprep.subr.mxu0 0.0
        %1605 = vmatpush1.msra.mxu0 %v1567
        %1606 = vmatprep.subr.mxu0 0.0
        %1607 = vmatpush1.msra.mxu0 %v1568
        %1608 = vmatprep.subr.mxu0 0.0
        %1609 = vmatpush1.msra.mxu0 0.0
        %1610 = vmatprep.subr.mxu0 0.0
        %1611 = vmatpush1.msra.mxu0 0.0
        %1612 = vmatprep.subr.mxu0 0.0
        %1613 = vmatpush1.msra.mxu0 0.0
        %1614 = vmatprep.subr.mxu0 0.0
        %1615 = vmatpush1.msra.mxu0 0.0
        %1616 = vmatprep.subr.mxu0 0.0
        %1617 = vmatpush1.msra.mxu0 0.0
        %1618 = vmatprep.subr.mxu0 0.0
        %1619 = vmatpush1.msra.mxu0 0.0
        %1620 = vmatprep.subr.mxu0 0.0
        %1621 = vmatpush1.msra.mxu0 0.0
        %1622 = vmatprep.subr.mxu0 0.0
        %1623 = vmatpush1.msra.mxu0 0.0
        %1624 = vmatprep.subr.mxu0 0.0
        %1625 = vmatpush1.msra.mxu0 0.0
        %1626 = vmatprep.subr.mxu0 0.0
        %1627 = vmatpush1.msra.mxu0 0.0
        %1628 = vmatprep.subr.mxu0 0.0
        %1629 = vmatpush1.msra.mxu0 0.0
        %1630 = vmatprep.subr.mxu0 0.0
        %1631 = vmatpush1.msra.mxu0 0.0
        %1632 = vmatprep.subr.mxu0 0.0
        %1633 = vmatpush1.msra.mxu0 0.0
        %1634 = vmatprep.subr.mxu0 0.0
        %1635 = vmatpush1.msra.mxu0 0.0
        %1636 = vmatprep.subr.mxu0 0.0
        %1637 = vmatpush1.msra.mxu0 0.0
        %1638 = vmatprep.subr.mxu0 0.0
        %1639 = vmatpush1.msra.mxu0 0.0
        %1640 = vmatprep.mubr.f32.mxu0 0.0
        %1641 = vmatmul.mubr.f32.gmra.mrb[0].mxu0 %v1552
        %v1642 = vpop.f32.mrb[0].mxu0
        %v1643 = vadd.f32 %v1574, %v1642
        %v1644 = vpop.f32.mrb[0].mxu0
        %1645 = vdwg.mxu0
        %v1646 = vlaneseq
        %v1647 = vand.u32 %v1646, 127
        %vm1648 = vcmp.lt.s32.totalorder %v1647, 32
        %v1649 = vsel %vm1648, 1, 0
        %v1650 = vcvt.s32.f32 %v1649
        %v1651 = vld [vmem:[%s13] sm:$0x1]
        %v1652 = vld [vmem:[%s14] sm:$0x1]
        %v1653 = vadd.f32 %v1643, %v597
        %1654 = vadd.xlane.f32.xlu0 %v1653
        %v1655 = vpop.xlane.xlu0 %1654
        %v1656 = vmul.f32 %v1655, 0.03125
        %v1657 = vsub.f32 %v1653, %v1656
        %v1658 = vmul.f32 %v1657, %v1650
        %v1659 = vmul.f32 %v1658, %v1658
        %1660 = vadd.xlane.f32.xlu0 %v1659
        %v1661 = vpop.xlane.xlu0 %1660
        %v1662 = vmul.f32 %v1661, 0.03125
        %v1663 = vadd.f32 %v1662, 1e-05
        %v1664 = vrsqrt.pop %v1663
        %v1665 = vmul.f32 %v1658, %v1664
        %v1667 = vlaneseq
        %v1668 = vshrl.u32 %v1667, 7
        %v1669 = vsub.s32 0, %v1668
        %v1670 = vrot.slane %v1651, %v1669
        %v1672 = vmul.f32 %v1665, %v1670
        %v1674 = vlaneseq
        %v1675 = vshrl.u32 %v1674, 7
        %v1676 = vsub.s32 0, %v1675
        %v1677 = vrot.slane %v1652, %v1676
        %v1679 = vadd.f32 %v1672, %v1677
        %v1680 = vld [vmem:[#allocation11] sm:$0xff]
        %v1681 = vld [vmem:[#allocation11 + $0x8] sm:$0xff]
        %v1682 = vld [vmem:[#allocation11 + $0x10] sm:$0xff]
        %v1683 = vld [vmem:[#allocation11 + $0x18] sm:$0xff]
        %v1684 = vld [vmem:[#allocation11 + $0x20] sm:$0xff]
        %v1685 = vld [vmem:[#allocation11 + $0x28] sm:$0xff]
        %v1686 = vld [vmem:[#allocation11 + $0x30] sm:$0xff]
        %v1687 = vld [vmem:[#allocation11 + $0x38] sm:$0xff]
        %v1688 = vld [vmem:[#allocation11 + $0x40] sm:$0xff]
        %v1689 = vld [vmem:[#allocation11 + $0x48] sm:$0xff]
        %v1690 = vld [vmem:[#allocation11 + $0x50] sm:$0xff]
        %v1691 = vld [vmem:[#allocation11 + $0x58] sm:$0xff]
        %v1692 = vld [vmem:[#allocation11 + $0x60] sm:$0xff]
        %v1693 = vld [vmem:[#allocation11 + $0x68] sm:$0xff]
        %v1694 = vld [vmem:[#allocation11 + $0x70] sm:$0xff]
        %v1695 = vld [vmem:[#allocation11 + $0x78] sm:$0xff]
        %v1696 = vld [vmem:[%s10] sm:$0x1]
        %v1698 = vlaneseq
        %v1699 = vshrl.u32 %v1698, 7
        %v1700 = vsub.s32 0, %v1699
        %v1701 = vrot.slane %v1696, %v1700
        %1703 = vmatprep.subr.mxu0 0.0
        %1704 = vmatpush1.msra.mxu0 %v1680
        %1705 = vmatprep.subr.mxu0 0.0
        %1706 = vmatpush1.msra.mxu0 %v1681
        %1707 = vmatprep.subr.mxu0 0.0
        %1708 = vmatpush1.msra.mxu0 %v1682
        %1709 = vmatprep.subr.mxu0 0.0
        %1710 = vmatpush1.msra.mxu0 %v1683
        %1711 = vmatprep.subr.mxu0 0.0
        %1712 = vmatpush1.msra.mxu0 %v1684
        %1713 = vmatprep.subr.mxu0 0.0
        %1714 = vmatpush1.msra.mxu0 %v1685
        %1715 = vmatprep.subr.mxu0 0.0
        %1716 = vmatpush1.msra.mxu0 %v1686
        %1717 = vmatprep.subr.mxu0 0.0
        %1718 = vmatpush1.msra.mxu0 %v1687
        %1719 = vmatprep.subr.mxu0 0.0
        %1720 = vmatpush1.msra.mxu0 %v1688
        %1721 = vmatprep.subr.mxu0 0.0
        %1722 = vmatpush1.msra.mxu0 %v1689
        %1723 = vmatprep.subr.mxu0 0.0
        %1724 = vmatpush1.msra.mxu0 %v1690
        %1725 = vmatprep.subr.mxu0 0.0
        %1726 = vmatpush1.msra.mxu0 %v1691
        %1727 = vmatprep.subr.mxu0 0.0
        %1728 = vmatpush1.msra.mxu0 %v1692
        %1729 = vmatprep.subr.mxu0 0.0
        %1730 = vmatpush1.msra.mxu0 %v1693
        %1731 = vmatprep.subr.mxu0 0.0
        %1732 = vmatpush1.msra.mxu0 %v1694
        %1733 = vmatprep.subr.mxu0 0.0
        %1734 = vmatpush1.msra.mxu0 %v1695
        %1735 = vmatprep.subr.mxu0 0.0
        %1736 = vmatpush1.msra.mxu0 0.0
        %1737 = vmatprep.subr.mxu0 0.0
        %1738 = vmatpush1.msra.mxu0 0.0
        %1739 = vmatprep.subr.mxu0 0.0
        %1740 = vmatpush1.msra.mxu0 0.0
        %1741 = vmatprep.subr.mxu0 0.0
        %1742 = vmatpush1.msra.mxu0 0.0
        %1743 = vmatprep.subr.mxu0 0.0
        %1744 = vmatpush1.msra.mxu0 0.0
        %1745 = vmatprep.subr.mxu0 0.0
        %1746 = vmatpush1.msra.mxu0 0.0
        %1747 = vmatprep.subr.mxu0 0.0
        %1748 = vmatpush1.msra.mxu0 0.0
        %1749 = vmatprep.subr.mxu0 0.0
        %1750 = vmatpush1.msra.mxu0 0.0
        %1751 = vmatprep.subr.mxu0 0.0
        %1752 = vmatpush1.msra.mxu0 0.0
        %1753 = vmatprep.subr.mxu0 0.0
        %1754 = vmatpush1.msra.mxu0 0.0
        %1755 = vmatprep.subr.mxu0 0.0
        %1756 = vmatpush1.msra.mxu0 0.0
        %1757 = vmatprep.subr.mxu0 0.0
        %1758 = vmatpush1.msra.mxu0 0.0
        %1759 = vmatprep.subr.mxu0 0.0
        %1760 = vmatpush1.msra.mxu0 0.0
        %1761 = vmatprep.subr.mxu0 0.0
        %1762 = vmatpush1.msra.mxu0 0.0
        %1763 = vmatprep.subr.mxu0 0.0
        %1764 = vmatpush1.msra.mxu0 0.0
        %1765 = vmatprep.subr.mxu0 0.0
        %1766 = vmatpush1.msra.mxu0 0.0
        %1767 = vmatprep.mubr.f32.mxu0 0.0
        %1768 = vmatmul.mubr.f32.gmra.mrb[0].mxu0 %v1679
        %v1769 = vpop.f32.mrb[0].mxu0
        %v1770 = vadd.f32 %v1701, %v1769
        %v1771 = vpop.f32.mrb[0].mxu0
        %1772 = vdwg.mxu0
        %v1773 = vmax.f32 %v1770, 0.0
        %v1774 = vld [vmem:[#allocation13] sm:$0xff]
        %v1775 = vld [vmem:[#allocation13 + $0x8] sm:$0xff]
        %v1776 = vld [vmem:[#allocation13 + $0x10] sm:$0xff]
        %v1777 = vld [vmem:[#allocation13 + $0x18] sm:$0xff]
        %v1778 = vld [vmem:[#allocation13 + $0x20] sm:$0xff]
        %v1779 = vld [vmem:[#allocation13 + $0x28] sm:$0xff]
        %v1780 = vld [vmem:[#allocation13 + $0x30] sm:$0xff]
        %v1781 = vld [vmem:[#allocation13 + $0x38] sm:$0xff]
        %v1782 = vld [vmem:[#allocation13 + $0x40] sm:$0xff]
        %v1783 = vld [vmem:[#allocation13 + $0x48] sm:$0xff]
        %v1784 = vld [vmem:[#allocation13 + $0x50] sm:$0xff]
        %v1785 = vld [vmem:[#allocation13 + $0x58] sm:$0xff]
        %v1786 = vld [vmem:[#allocation13 + $0x60] sm:$0xff]
        %v1787 = vld [vmem:[#allocation13 + $0x68] sm:$0xff]
        %v1788 = vld [vmem:[#allocation13 + $0x70] sm:$0xff]
        %v1789 = vld [vmem:[#allocation13 + $0x78] sm:$0xff]
        %v1790 = vld [vmem:[%s12] sm:$0x1]
        %v1792 = vlaneseq
        %v1793 = vshrl.u32 %v1792, 7
        %v1794 = vsub.s32 0, %v1793
        %v1795 = vrot.slane %v1790, %v1794
        %1797 = vmatprep.subr.mxu0 0.0
        %1798 = vmatpush1.msra.mxu0 %v1774
        %1799 = vmatprep.subr.mxu0 0.0
        %1800 = vmatpush1.msra.mxu0 %v1775
        %1801 = vmatprep.subr.mxu0 0.0
        %1802 = vmatpush1.msra.mxu0 %v1776
        %1803 = vmatprep.subr.mxu0 0.0
        %1804 = vmatpush1.msra.mxu0 %v1777
        %1805 = vmatprep.subr.mxu0 0.0
        %1806 = vmatpush1.msra.mxu0 %v1778
        %1807 = vmatprep.subr.mxu0 0.0
        %1808 = vmatpush1.msra.mxu0 %v1779
        %1809 = vmatprep.subr.mxu0 0.0
        %1810 = vmatpush1.msra.mxu0 %v1780
        %1811 = vmatprep.subr.mxu0 0.0
        %1812 = vmatpush1.msra.mxu0 %v1781
        %1813 = vmatprep.subr.mxu0 0.0
        %1814 = vmatpush1.msra.mxu0 %v1782
        %1815 = vmatprep.subr.mxu0 0.0
        %1816 = vmatpush1.msra.mxu0 %v1783
        %1817 = vmatprep.subr.mxu0 0.0
        %1818 = vmatpush1.msra.mxu0 %v1784
        %1819 = vmatprep.subr.mxu0 0.0
        %1820 = vmatpush1.msra.mxu0 %v1785
        %1821 = vmatprep.subr.mxu0 0.0
        %1822 = vmatpush1.msra.mxu0 %v1786
        %1823 = vmatprep.subr.mxu0 0.0
        %1824 = vmatpush1.msra.mxu0 %v1787
        %1825 = vmatprep.subr.mxu0 0.0
        %1826 = vmatpush1.msra.mxu0 %v1788
        %1827 = vmatprep.subr.mxu0 0.0
        %1828 = vmatpush1.msra.mxu0 %v1789
        %1829 = vmatprep.subr.mxu0 0.0
        %1830 = vmatpush1.msra.mxu0 0.0
        %1831 = vmatprep.subr.mxu0 0.0
        %1832 = vmatpush1.msra.mxu0 0.0
        %1833 = vmatprep.subr.mxu0 0.0
        %1834 = vmatpush1.msra.mxu0 0.0
        %1835 = vmatprep.subr.mxu0 0.0
        %1836 = vmatpush1.msra.mxu0 0.0
        %1837 = vmatprep.subr.mxu0 0.0
        %1838 = vmatpush1.msra.mxu0 0.0
        %1839 = vmatprep.subr.mxu0 0.0
        %1840 = vmatpush1.msra.mxu0 0.0
        %1841 = vmatprep.subr.mxu0 0.0
        %1842 = vmatpush1.msra.mxu0 0.0
        %1843 = vmatprep.subr.mxu0 0.0
        %1844 = vmatpush1.msra.mxu0 0.0
        %1845 = vmatprep.subr.mxu0 0.0
        %1846 = vmatpush1.msra.mxu0 0.0
        %1847 = vmatprep.subr.mxu0 0.0
        %1848 = vmatpush1.msra.mxu0 0.0
        %1849 = vmatprep.subr.mxu0 0.0
        %1850 = vmatpush1.msra.mxu0 0.0
        %1851 = vmatprep.subr.mxu0 0.0
        %1852 = vmatpush1.msra.mxu0 0.0
        %1853 = vmatprep.subr.mxu0 0.0
        %1854 = vmatpush1.msra.mxu0 0.0
        %1855 = vmatprep.subr.mxu0 0.0
        %1856 = vmatpush1.msra.mxu0 0.0
        %1857 = vmatprep.subr.mxu0 0.0
        %1858 = vmatpush1.msra.mxu0 0.0
        %1859 = vmatprep.subr.mxu0 0.0
        %1860 = vmatpush1.msra.mxu0 0.0
        %1861 = vmatprep.mubr.f32.mxu0 0.0
        %1862 = vmatmul.mubr.f32.gmra.mrb[0].mxu0 %v1773
        %v1863 = vpop.f32.mrb[0].mxu0
        %v1864 = vadd.f32 %v1795, %v1863
        %v1865 = vpop.f32.mrb[0].mxu0
        %1866 = vdwg.mxu0
        %v1867 = vadd.f32 %v1864, %v1679
        %1868 = vadd.xlane.f32.xlu0 %v1867
        %v1869 = vpop.xlane.xlu0 %1868
        %v1870 = vmul.f32 %v1869, 0.03125
        %v1871 = vsub.f32 %v1867, %v1870
        %v1872 = vmul.f32 %v1871, %v1650
        %v1873 = vmul.f32 %v1872, %v1872
        %1874 = vadd.xlane.f32.xlu0 %v1873
        %v1875 = vpop.xlane.xlu0 %1874
        %v1876 = vmul.f32 %v1875, 0.03125
        %v1877 = vadd.f32 %v1876, 1e-05
        %v1878 = vrsqrt.pop %v1877
        %v1879 = vmul.f32 %v1872, %v1878
        %v1880 = vmul.f32 %v1879, %v1670
        %v1881 = vadd.f32 %v1880, %v1677
        %1882 = vst [vmem:[%s596] sm:$0xff] %v1881
        %s1883 = sand.u32 %s363, 1
        %s1884 = scalar_lea.sflag [#allocation4], %s1883
        %s1885 = sand.u32 %s363, 1
        %s1886 = smul.addr %s1885, 8
        %s1887 = scalar_lea.vmem [#allocation14], %s1886
        // Predicated region
        $region109: #{tpu_custom_call.1} parent=79 // pred_check
          %p1888 = pneg %p373
        $region110: #{tpu_custom_call.1} parent=79 // pred_check_branch
          %1890 = sbr.rel (%p1888) target = $region112
        $region111: #{tpu_custom_call.1} parent=79 // pred_region
          %s1892 = ssub.s32 128, 128
          %1893 = vsyncadd %s1884, %s1892
          %s1894 = smul.addr %s35, 128
          %s1895 = scalar_lea.hbm %s15, %s1894
          %s1897 = sshll.u32 %s1887, 4
          %s1898 = int_to_ptr.vmem [resolvable:$true] %s1897
          %1900 = dma.vmem_to_hbm [thread:$0]  %s1898, 128, %s1895, %s1884
        $region112: #{tpu_custom_call.1} parent=79 // pred_fallthru
          _
      $region80: #{tpu_custom_call.1} parent=5 // pred_fallthru
        _
      %p1901 = scmp.le.s32.totalorder 2, %s30
      // Predicated region
      $region113: #{tpu_custom_call.1} parent=5 // pred_check
        %p1902 = pneg %p1901
      $region114: #{tpu_custom_call.1} parent=5 // pred_check_branch
        %1904 = sbr.rel (%p1902) target = $region116
      $region115: #{tpu_custom_call.1} parent=5 // pred_region
        %s1905 = ssub.s32 %s30, 2
        // Predicated region
        $region117: #{tpu_custom_call.1} parent=115 // pred_check
          %p1906 = pneg %p379
        $region118: #{tpu_custom_call.1} parent=115 // pred_check_branch
          %1908 = sbr.rel (%p1906) target = $region120
        $region119: #{tpu_custom_call.1} parent=115 // pred_region
          %s1909 = sand.u32 %s364, 1
          %s1910 = scalar_lea.sflag [#allocation4], %s1909
          %s1911 = sand.u32 %s364, 1
          %s1912 = smul.addr %s1911, 8
          %s1913 = scalar_lea.vmem [#allocation14], %s1912
          %1914 = dma.done %s1910, 128
        $region120: #{tpu_custom_call.1} parent=115 // pred_fallthru
          _
      $region116: #{tpu_custom_call.1} parent=5 // pred_fallthru
        _
    $region6: #{tpu_custom_call.1} parent=1 // loop_footer
      %s34 = sadd.s32 1, %s30
    $region7: #{tpu_custom_call.1} parent=1 // loop_footer_branch
      %29 = sbr.rel target = $region3
    $region8: #{tpu_custom_call.1} parent=1 // loop_exit
      _
    %1915 = vsyncpa [#allocation3], 1
    %s1916 = scalar_lea.sflag [#allocation3], 1
    %1917 = vsyncpa %s1916, 1
    %1918 = vsyncpa [#allocation6], 1
    %1919 = vsyncpa [#allocation9], 1
    %1920 = vsyncpa [#allocation12], 1
    %1921 = vsyncpa [#allocation4], 1
    %s1922 = scalar_lea.sflag [#allocation4], 1
    %1923 = vsyncpa %s1922, 1

// kernel: tpu_custom_call.1
$region0: #{tpu_custom_call.1}
  #allocation0 [shape = 'u32[]', space=smem, size = 0x4, offset = 0x4, fixed_abs, tag = 'smem constant byte address 0x4 - core index']
  #allocation1 [shape = 'u32[144,128]{1,0:T(1,128)}', space=vmem, size = 0x12000, scoped, tag = 'internal scratch']
  %s0 = inlined_call_operand.hbm [shape: f32[2,8,128], index: 0, kind: input, shape index: {}]
  %s1 = inlined_call_operand.hbm [shape: f32[128,128], index: 1, kind: input, shape index: {}]
  %s2 = inlined_call_operand.vmem [shape: f32[1,128], index: 2, kind: input, shape index: {}]
  %s3 = inlined_call_operand.hbm [shape: f32[128,128], index: 3, kind: input, shape index: {}]
  %s4 = inlined_call_operand.vmem [shape: f32[1,128], index: 4, kind: input, shape index: {}]
  %s5 = inlined_call_operand.hbm [shape: f32[128,128], index: 5, kind: input, shape index: {}]
  %s6 = inlined_call_operand.vmem [shape: f32[1,128], index: 6, kind: input, shape index: {}]
  %s7 = inlined_call_operand.hbm [shape: f32[128,128], index: 7, kind: input, shape index: {}]
  %s8 = inlined_call_operand.vmem [shape: f32[1,128], index: 8, kind: input, shape index: {}]
  %s9 = inlined_call_operand.hbm [shape: f32[128,128], index: 9, kind: input, shape index: {}]
  %s10 = inlined_call_operand.vmem [shape: f32[1,128], index: 10, kind: input, shape index: {}]
  %s11 = inlined_call_operand.hbm [shape: f32[128,128], index: 11, kind: input, shape index: {}]
  %s12 = inlined_call_operand.vmem [shape: f32[1,128], index: 12, kind: input, shape index: {}]
  %s13 = inlined_call_operand.vmem [shape: f32[1,128], index: 13, kind: input, shape index: {}]
  %s14 = inlined_call_operand.vmem [shape: f32[1,128], index: 14, kind: input, shape index: {}]
  %s15 = inlined_call_operand.hbm [shape: f32[2,8,128], index: 15, kind: output, shape index: {}]
  %s16 = sld [smem:[#allocation0]]
  $region121: #{tpu_custom_call.1} parent=0
    _
  %s18 = ssub.s32 1, %s16
  %s19 = scalar_select 0, %s18, %s16
  $region1: #{tpu_custom_call.1} parent=0
    #allocation2 [shape = 'u8[8192]{0}', space=vmem, size = 0x2000, scoped, tag = 'input window, operand 0']
    #allocation3 [shape = 's32[2]{0}', space=sflag, size = 0x8, scoped, tag = 'scoped memory for tpu_custom_call.1']
    #allocation4 [shape = 's32[2]{0}', space=sflag, size = 0x8, scoped, tag = 'scoped memory for tpu_custom_call.1']
    #allocation5 [shape = 'u8[65536]{0}', space=vmem, size = 0x10000, scoped, tag = 'input window, operand 1, single buffered']
    #allocation6 [shape = 's32[1]{0}', space=sflag, size = 0x4, scoped, tag = 'scoped memory for tpu_custom_call.1']
    #allocation7 [shape = 'u8[65536]{0}', space=vmem, size = 0x10000, scoped, tag = 'input window, operand 3, single buffered']
    #allocation8 [shape = 'u8[65536]{0}', space=vmem, size = 0x10000, scoped, tag = 'input window, operand 5, single buffered']
    #allocation9 [shape = 's32[1]{0}', space=sflag, size = 0x4, scoped, tag = 'scoped memory for tpu_custom_call.1']
    #allocation10 [shape = 'u8[65536]{0}', space=vmem, size = 0x10000, scoped, tag = 'input window, operand 7, single buffered']
    #allocation11 [shape = 'u8[65536]{0}', space=vmem, size = 0x10000, scoped, tag = 'input window, operand 9, single buffered']
    #allocation12 [shape = 's32[1]{0}', space=sflag, size = 0x4, scoped, tag = 'scoped memory for tpu_custom_call.1']
    #allocation13 [shape = 'u8[65536]{0}', space=vmem, size = 0x10000, scoped, tag = 'input window, operand 11, single buffered']
    #allocation14 [shape = 'u8[8192]{0}', space=vmem, size = 0x2000, scoped, tag = 'output window, operand 0']
    %20 = vsyncpa [#allocation3], 0
    %s21 = scalar_lea.sflag [#allocation3], 1
    %22 = vsyncpa %s21, 0
    %23 = vsyncpa [#allocation6], 0
    %24 = vsyncpa [#allocation9], 0
    %25 = vsyncpa [#allocation12], 0
    %26 = vsyncpa [#allocation4], 0
    %s27 = scalar_lea.sflag [#allocation4], 1
    %28 = vsyncpa %s27, 0
    loop: start=0, step=1, limit=4
    $region2: #{tpu_custom_call.1} parent=1 // loop_pre_header
      _
    $region3: #{tpu_custom_call.1} parent=1 // loop_header
      %s30 = sphi 0, %s34
      %p31 = scmp.ge.s32.totalorder %s30, 4
      %s40 = sphi 0, %s42
      %s43 = sphi 0, %s40
      %s44 = sphi 0, %s43
      %s60 = sphi 0, %s44
      %s64 = sphi 0, %s64
      %s66 = sphi 0, %s64
      %s67 = sphi 0, %s66
      %s81 = sphi 0, %s67
      %s85 = sphi 0, %s85
      %s87 = sphi 0, %s85
      %s88 = sphi 0, %s87
      %s102 = sphi 0, %s88
      %s106 = sphi 0, %s106
      %s108 = sphi 0, %s106
      %s109 = sphi 0, %s108
      %s123 = sphi 0, %s109
      %s127 = sphi 0, %s127
      %s129 = sphi 0, %s127
      %s130 = sphi 0, %s129
      %s144 = sphi 0, %s130
      %s148 = sphi 0, %s148
      %s150 = sphi 0, %s148
      %s151 = sphi 0, %s150
      %s165 = sphi 0, %s151
      %s169 = sphi 0, %s169
      %s171 = sphi 0, %s169
      %s172 = sphi 0, %s171
      %s186 = sphi 0, %s172
      %s190 = sphi 0, %s190
      %s192 = sphi 0, %s190
      %s193 = sphi 0, %s192
      %s207 = sphi 0, %s193
      %s211 = sphi 0, %s211
      %s213 = sphi 0, %s211
      %s214 = sphi 0, %s213
      %s228 = sphi 0, %s214
      %s232 = sphi 0, %s232
      %s234 = sphi 0, %s232
      %s235 = sphi 0, %s234
      %s249 = sphi 0, %s235
      %s253 = sphi 0, %s253
      %s255 = sphi 0, %s253
      %s256 = sphi 0, %s255
      %s270 = sphi 0, %s256
      %s274 = sphi 0, %s274
      %s276 = sphi 0, %s274
      %s277 = sphi 0, %s276
      %s291 = sphi 0, %s277
      %s295 = sphi 0, %s295
      %s297 = sphi 0, %s295
      %s298 = sphi 0, %s297
      %s312 = sphi 0, %s298
      %s316 = sphi 0, %s316
      %s318 = sphi 0, %s316
      %s319 = sphi 0, %s318
      %s333 = sphi 0, %s319
      %s337 = sphi 0, %s337
      %s339 = sphi 0, %s337
      %s340 = sphi 0, %s339
      %s354 = sphi 0, %s340
      %s360 = sphi 0, %s362
      %s363 = sphi 0, %s360
      %s364 = sphi 0, %s363
      %s380 = sphi 0, %s364
    $region4: #{tpu_custom_call.1} parent=1 // loop_header_branch
      %33 = sbr.rel (%p31) target = $region8
    $region5: #{tpu_custom_call.1} parent=1 // loop_body
      %s35 = ssub.s32 %s30, 1
      %s36 = ssub.s32 %s30, 2
      %s37 = sadd.s32 %s30, 1
      %s38 = ssub.s32 %s30, %s37
      %p39 = scmp.eq.s32.totalorder %s38, 0
      %s41 = sadd.s32 %s40, 1
      %s42 = scalar_select %p39, %s40, %s41
      %p45 = pneg %p39
      %p46 = scmp.eq.s32.totalorder %s30, 1
      %p47 = por %p45, %p46
      %p48 = scmp.ne.s32.totalorder %s40, %s43
      %p49 = scmp.eq.s32.totalorder %s30, 0
      %p50 = por %p48, %p49
      %p51 = scmp.ne.s32.totalorder %s40, %s43
      %p52 = scmp.eq.s32.totalorder %s35, 1
      %p53 = por %p51, %p52
      %p54 = scmp.ne.s32.totalorder %s43, %s44
      %p55 = scmp.eq.s32.totalorder %s35, 0
      %p56 = por %p54, %p55
      %p57 = scmp.ne.s32.totalorder %s43, %s44
      %p58 = scmp.eq.s32.totalorder %s36, 1
      %p59 = por %p57, %p58
      %p61 = scmp.ne.s32.totalorder %s44, %s60
      %p62 = scmp.eq.s32.totalorder %s36, 0
      %p63 = por %p61, %p62
      %s65 = sadd.s32 %s64, 1
      %p68 = scmp.eq.s32.totalorder %s30, 1
      %p69 = scmp.ne.s32.totalorder %s64, %s66
      %p70 = scmp.eq.s32.totalorder %s30, 0
      %p71 = por %p69, %p70
      %p72 = scmp.ne.s32.totalorder %s64, %s66
      %p73 = scmp.eq.s32.totalorder %s35, 1
      %p74 = por %p72, %p73
      %p75 = scmp.ne.s32.totalorder %s66, %s67
      %p76 = scmp.eq.s32.totalorder %s35, 0
      %p77 = por %p75, %p76
      %p78 = scmp.ne.s32.totalorder %s66, %s67
      %p79 = scmp.eq.s32.totalorder %s36, 1
      %p80 = por %p78, %p79
      %p82 = scmp.ne.s32.totalorder %s67, %s81
      %p83 = scmp.eq.s32.totalorder %s36, 0
      %p84 = por %p82, %p83
      %s86 = sadd.s32 %s85, 1
      %p89 = scmp.eq.s32.totalorder %s30, 1
      %p90 = scmp.ne.s32.totalorder %s85, %s87
      %p91 = scmp.eq.s32.totalorder %s30, 0
      %p92 = por %p90, %p91
      %p93 = scmp.ne.s32.totalorder %s85, %s87
      %p94 = scmp.eq.s32.totalorder %s35, 1
      %p95 = por %p93, %p94
      %p96 = scmp.ne.s32.totalorder %s87, %s88
      %p97 = scmp.eq.s32.totalorder %s35, 0
      %p98 = por %p96, %p97
      %p99 = scmp.ne.s32.totalorder %s87, %s88
      %p100 = scmp.eq.s32.totalorder %s36, 1
      %p101 = por %p99, %p100
      %p103 = scmp.ne.s32.totalorder %s88, %s102
      %p104 = scmp.eq.s32.totalorder %s36, 0
      %p105 = por %p103, %p104
      %s107 = sadd.s32 %s106, 1
      %p110 = scmp.eq.s32.totalorder %s30, 1
      %p111 = scmp.ne.s32.totalorder %s106, %s108
      %p112 = scmp.eq.s32.totalorder %s30, 0
      %p113 = por %p111, %p112
      %p114 = scmp.ne.s32.totalorder %s106, %s108
      %p115 = scmp.eq.s32.totalorder %s35, 1
      %p116 = por %p114, %p115
      %p117 = scmp.ne.s32.totalorder %s108, %s109
      %p118 = scmp.eq.s32.totalorder %s35, 0
      %p119 = por %p117, %p118
      %p120 = scmp.ne.s32.totalorder %s108, %s109
      %p121 = scmp.eq.s32.totalorder %s36, 1
      %p122 = por %p120, %p121
      %p124 = scmp.ne.s32.totalorder %s109, %s123
      %p125 = scmp.eq.s32.totalorder %s36, 0
      %p126 = por %p124, %p125
      %s128 = sadd.s32 %s127, 1
      %p131 = scmp.eq.s32.totalorder %s30, 1
      %p132 = scmp.ne.s32.totalorder %s127, %s129
      %p133 = scmp.eq.s32.totalorder %s30, 0
      %p134 = por %p132, %p133
      %p135 = scmp.ne.s32.totalorder %s127, %s129
      %p136 = scmp.eq.s32.totalorder %s35, 1
      %p137 = por %p135, %p136
      %p138 = scmp.ne.s32.totalorder %s129, %s130
      %p139 = scmp.eq.s32.totalorder %s35, 0
      %p140 = por %p138, %p139
      %p141 = scmp.ne.s32.totalorder %s129, %s130
      %p142 = scmp.eq.s32.totalorder %s36, 1
      %p143 = por %p141, %p142
      %p145 = scmp.ne.s32.totalorder %s130, %s144
      %p146 = scmp.eq.s32.totalorder %s36, 0
      %p147 = por %p145, %p146
      %s149 = sadd.s32 %s148, 1
      %p152 = scmp.eq.s32.totalorder %s30, 1
      %p153 = scmp.ne.s32.totalorder %s148, %s150
      %p154 = scmp.eq.s32.totalorder %s30, 0
      %p155 = por %p153, %p154
      %p156 = scmp.ne.s32.totalorder %s148, %s150
      %p157 = scmp.eq.s32.totalorder %s35, 1
      %p158 = por %p156, %p157
      %p159 = scmp.ne.s32.totalorder %s150, %s151
      %p160 = scmp.eq.s32.totalorder %s35, 0
      %p161 = por %p159, %p160
      %p162 = scmp.ne.s32.totalorder %s150, %s151
      %p163 = scmp.eq.s32.totalorder %s36, 1
      %p164 = por %p162, %p163
      %p166 = scmp.ne.s32.totalorder %s151, %s165
      %p167 = scmp.eq.s32.totalorder %s36, 0
      %p168 = por %p166, %p167
      %s170 = sadd.s32 %s169, 1
      %p173 = scmp.eq.s32.totalorder %s30, 1
      %p174 = scmp.ne.s32.totalorder %s169, %s171
      %p175 = scmp.eq.s32.totalorder %s30, 0
      %p176 = por %p174, %p175
      %p177 = scmp.ne.s32.totalorder %s169, %s171
      %p178 = scmp.eq.s32.totalorder %s35, 1
      %p179 = por %p177, %p178
      %p180 = scmp.ne.s32.totalorder %s171, %s172
      %p181 = scmp.eq.s32.totalorder %s35, 0
      %p182 = por %p180, %p181
      %p183 = scmp.ne.s32.totalorder %s171, %s172
      %p184 = scmp.eq.s32.totalorder %s36, 1
      %p185 = por %p183, %p184
      %p187 = scmp.ne.s32.totalorder %s172, %s186
      %p188 = scmp.eq.s32.totalorder %s36, 0
      %p189 = por %p187, %p188
      %s191 = sadd.s32 %s190, 1
      %p194 = scmp.eq.s32.totalorder %s30, 1
      %p195 = scmp.ne.s32.totalorder %s190, %s192
      %p196 = scmp.eq.s32.totalorder %s30, 0
      %p197 = por %p195, %p196
      %p198 = scmp.ne.s32.totalorder %s190, %s192
      %p199 = scmp.eq.s32.totalorder %s35, 1
      %p200 = por %p198, %p199
      %p201 = scmp.ne.s32.totalorder %s192, %s193
      %p202 = scmp.eq.s32.totalorder %s35, 0
      %p203 = por %p201, %p202
      %p204 = scmp.ne.s32.totalorder %s192, %s193
      %p205 = scmp.eq.s32.totalorder %s36, 1
      %p206 = por %p204, %p205
      %p208 = scmp.ne.s32.totalorder %s193, %s207
      %p209 = scmp.eq.s32.totalorder %s36, 0
      %p210 = por %p208, %p209
      %s212 = sadd.s32 %s211, 1
      %p215 = scmp.eq.s32.totalorder %s30, 1
      %p216 = scmp.ne.s32.totalorder %s211, %s213
      %p217 = scmp.eq.s32.totalorder %s30, 0
      %p218 = por %p216, %p217
      %p219 = scmp.ne.s32.totalorder %s211, %s213
      %p220 = scmp.eq.s32.totalorder %s35, 1
      %p221 = por %p219, %p220
      %p222 = scmp.ne.s32.totalorder %s213, %s214
      %p223 = scmp.eq.s32.totalorder %s35, 0
      %p224 = por %p222, %p223
      %p225 = scmp.ne.s32.totalorder %s213, %s214
      %p226 = scmp.eq.s32.totalorder %s36, 1
      %p227 = por %p225, %p226
      %p229 = scmp.ne.s32.totalorder %s214, %s228
      %p230 = scmp.eq.s32.totalorder %s36, 0
      %p231 = por %p229, %p230
      %s233 = sadd.s32 %s232, 1
      %p236 = scmp.eq.s32.totalorder %s30, 1
      %p237 = scmp.ne.s32.totalorder %s232, %s234
      %p238 = scmp.eq.s32.totalorder %s30, 0
      %p239 = por %p237, %p238
      %p240 = scmp.ne.s32.totalorder %s232, %s234
      %p241 = scmp.eq.s32.totalorder %s35, 1
      %p242 = por %p240, %p241
      %p243 = scmp.ne.s32.totalorder %s234, %s235
      %p244 = scmp.eq.s32.totalorder %s35, 0
      %p245 = por %p243, %p244
      %p246 = scmp.ne.s32.totalorder %s234, %s235
      %p247 = scmp.eq.s32.totalorder %s36, 1
      %p248 = por %p246, %p247
      %p250 = scmp.ne.s32.totalorder %s235, %s249
      %p251 = scmp.eq.s32.totalorder %s36, 0
      %p252 = por %p250, %p251
      %s254 = sadd.s32 %s253, 1
      %p257 = scmp.eq.s32.totalorder %s30, 1
      %p258 = scmp.ne.s32.totalorder %s253, %s255
      %p259 = scmp.eq.s32.totalorder %s30, 0
      %p260 = por %p258, %p259
      %p261 = scmp.ne.s32.totalorder %s253, %s255
      %p262 = scmp.eq.s32.totalorder %s35, 1
      %p263 = por %p261, %p262
      %p264 = scmp.ne.s32.totalorder %s255, %s256
      %p265 = scmp.eq.s32.totalorder %s35, 0
      %p266 = por %p264, %p265
      %p267 = scmp.ne.s32.totalorder %s255, %s256
      %p268 = scmp.eq.s32.totalorder %s36, 1
      %p269 = por %p267, %p268
      %p271 = scmp.ne.s32.totalorder %s256, %s270
      %p272 = scmp.eq.s32.totalorder %s36, 0
      %p273 = por %p271, %p272
      %s275 = sadd.s32 %s274, 1
      %p278 = scmp.eq.s32.totalorder %s30, 1
      %p279 = scmp.ne.s32.totalorder %s274, %s276
      %p280 = scmp.eq.s32.totalorder %s30, 0
      %p281 = por %p279, %p280
      %p282 = scmp.ne.s32.totalorder %s274, %s276
      %p283 = scmp.eq.s32.totalorder %s35, 1
      %p284 = por %p282, %p283
      %p285 = scmp.ne.s32.totalorder %s276, %s277
      %p286 = scmp.eq.s32.totalorder %s35, 0
      %p287 = por %p285, %p286
      %p288 = scmp.ne.s32.totalorder %s276, %s277
      %p289 = scmp.eq.s32.totalorder %s36, 1
      %p290 = por %p288, %p289
      %p292 = scmp.ne.s32.totalorder %s277, %s291
      %p293 = scmp.eq.s32.totalorder %s36, 0
      %p294 = por %p292, %p293
      %s296 = sadd.s32 %s295, 1
      %p299 = scmp.eq.s32.totalorder %s30, 1
      %p300 = scmp.ne.s32.totalorder %s295, %s297
      %p301 = scmp.eq.s32.totalorder %s30, 0
      %p302 = por %p300, %p301
      %p303 = scmp.ne.s32.totalorder %s295, %s297
      %p304 = scmp.eq.s32.totalorder %s35, 1
      %p305 = por %p303, %p304
      %p306 = scmp.ne.s32.totalorder %s297, %s298
      %p307 = scmp.eq.s32.totalorder %s35, 0
      %p308 = por %p306, %p307
      %p309 = scmp.ne.s32.totalorder %s297, %s298
      %p310 = scmp.eq.s32.totalorder %s36, 1
      %p311 = por %p309, %p310
      %p313 = scmp.ne.s32.totalorder %s298, %s312
      %p314 = scmp.eq.s32.totalorder %s36, 0
      %p315 = por %p313, %p314
      %s317 = sadd.s32 %s316, 1
      %p320 = scmp.eq.s32.totalorder %s30, 1
      %p321 = scmp.ne.s32.totalorder %s316, %s318
      %p322 = scmp.eq.s32.totalorder %s30, 0
      %p323 = por %p321, %p322
      %p324 = scmp.ne.s32.totalorder %s316, %s318
      %p325 = scmp.eq.s32.totalorder %s35, 1
      %p326 = por %p324, %p325
      %p327 = scmp.ne.s32.totalorder %s318, %s319
      %p328 = scmp.eq.s32.totalorder %s35, 0
      %p329 = por %p327, %p328
      %p330 = scmp.ne.s32.totalorder %s318, %s319
      %p331 = scmp.eq.s32.totalorder %s36, 1
      %p332 = por %p330, %p331
      %p334 = scmp.ne.s32.totalorder %s319, %s333
      %p335 = scmp.eq.s32.totalorder %s36, 0
      %p336 = por %p334, %p335
      %s338 = sadd.s32 %s337, 1
      %p341 = scmp.eq.s32.totalorder %s30, 1
      %p342 = scmp.ne.s32.totalorder %s337, %s339
      %p343 = scmp.eq.s32.totalorder %s30, 0
      %p344 = por %p342, %p343
      %p345 = scmp.ne.s32.totalorder %s337, %s339
      %p346 = scmp.eq.s32.totalorder %s35, 1
      %p347 = por %p345, %p346
      %p348 = scmp.ne.s32.totalorder %s339, %s340
      %p349 = scmp.eq.s32.totalorder %s35, 0
      %p350 = por %p348, %p349
      %p351 = scmp.ne.s32.totalorder %s339, %s340
      %p352 = scmp.eq.s32.totalorder %s36, 1
      %p353 = por %p351, %p352
      %p355 = scmp.ne.s32.totalorder %s340, %s354
      %p356 = scmp.eq.s32.totalorder %s36, 0
      %p357 = por %p355, %p356
      %s358 = ssub.s32 %s30, %s37
      %p359 = scmp.eq.s32.totalorder %s358, 0
      %s361 = sadd.s32 %s360, 1
      %s362 = scalar_select %p359, %s360, %s361
      %p365 = pneg %p359
      %p366 = scmp.eq.s32.totalorder %s30, 1
      %p367 = por %p365, %p366
      %p368 = scmp.ne.s32.totalorder %s360, %s363
      %p369 = scmp.eq.s32.totalorder %s30, 0
      %p370 = por %p368, %p369
      %p371 = scmp.ne.s32.totalorder %s360, %s363
      %p372 = scmp.eq.s32.totalorder %s35, 1
      %p373 = por %p371, %p372
      %p374 = scmp.ne.s32.totalorder %s363, %s364
      %p375 = scmp.eq.s32.totalorder %s35, 0
      %p376 = por %p374, %p375
      %p377 = scmp.ne.s32.totalorder %s363, %s364
      %p378 = scmp.eq.s32.totalorder %s36, 1
      %p379 = por %p377, %p378
      %p381 = scmp.ne.s32.totalorder %s364, %s380
      %p382 = scmp.eq.s32.totalorder %s36, 0
      %p383 = por %p381, %p382
      %p384 = scmp.le.s32.totalorder 1, %s30
      %p385 = scmp.lt.s32.totalorder %s30, 3
      %p386 = pnand %p384, %p385
      %p387 = pneg %p386
      // Predicated region
      $region9: #{tpu_custom_call.1} parent=5 // pred_check
        _
      $region10: #{tpu_custom_call.1} parent=5 // pred_check_branch
        %389 = sbr.rel (%p386) target = $region12
      $region11: #{tpu_custom_call.1} parent=5 // pred_region
        %s390 = ssub.s32 %s30, 1
        // Predicated region
        $region13: #{tpu_custom_call.1} parent=11 // pred_check
          %p391 = pneg %p77
        $region14: #{tpu_custom_call.1} parent=11 // pred_check_branch
          %393 = sbr.rel (%p391) target = $region16
        $region15: #{tpu_custom_call.1} parent=11 // pred_region
          %s395 = ssub.s32 2048, 2048
          %396 = vsyncadd [#allocation6], %s395
          %s397 = sshll.u32 [#allocation5], 4
          %s398 = int_to_ptr.vmem [resolvable:$true] %s397
          %403 = dma.hbm_to_vmem [thread:$0]  %s1, 2048, %s398, [#allocation6], 128, 128, 8
        $region16: #{tpu_custom_call.1} parent=11 // pred_fallthru
          _
        // Predicated region
        $region17: #{tpu_custom_call.1} parent=11 // pred_check
          %p404 = pneg %p98
        $region18: #{tpu_custom_call.1} parent=11 // pred_check_branch
          %406 = sbr.rel (%p404) target = $region20
        $region19: #{tpu_custom_call.1} parent=11 // pred_region
          _
        $region20: #{tpu_custom_call.1} parent=11 // pred_fallthru
          _
        // Predicated region
        $region21: #{tpu_custom_call.1} parent=11 // pred_check
          %p407 = pneg %p119
        $region22: #{tpu_custom_call.1} parent=11 // pred_check_branch
          %409 = sbr.rel (%p407) target = $region24
        $region23: #{tpu_custom_call.1} parent=11 // pred_region
          %s411 = ssub.s32 2048, 2048
          %412 = vsyncadd [#allocation6], %s411
          %s413 = sshll.u32 [#allocation7], 4
          %s414 = int_to_ptr.vmem [resolvable:$true] %s413
          %419 = dma.hbm_to_vmem [thread:$0]  %s3, 2048, %s414, [#allocation6], 128, 128, 8
        $region24: #{tpu_custom_call.1} parent=11 // pred_fallthru
          _
        // Predicated region
        $region25: #{tpu_custom_call.1} parent=11 // pred_check
          %p420 = pneg %p140
        $region26: #{tpu_custom_call.1} parent=11 // pred_check_branch
          %422 = sbr.rel (%p420) target = $region28
        $region27: #{tpu_custom_call.1} parent=11 // pred_region
          _
        $region28: #{tpu_custom_call.1} parent=11 // pred_fallthru
          _
        // Predicated region
        $region29: #{tpu_custom_call.1} parent=11 // pred_check
          %p423 = pneg %p161
        $region30: #{tpu_custom_call.1} parent=11 // pred_check_branch
          %425 = sbr.rel (%p423) target = $region32
        $region31: #{tpu_custom_call.1} parent=11 // pred_region
          %s427 = ssub.s32 2048, 2048
          %428 = vsyncadd [#allocation9], %s427
          %s429 = sshll.u32 [#allocation8], 4
          %s430 = int_to_ptr.vmem [resolvable:$true] %s429
          %435 = dma.hbm_to_vmem [thread:$0]  %s5, 2048, %s430, [#allocation9], 128, 128, 8
        $region32: #{tpu_custom_call.1} parent=11 // pred_fallthru
          _
        // Predicated region
        $region33: #{tpu_custom_call.1} parent=11 // pred_check
          %p436 = pneg %p182
        $region34: #{tpu_custom_call.1} parent=11 // pred_check_branch
          %438 = sbr.rel (%p436) target = $region36
        $region35: #{tpu_custom_call.1} parent=11 // pred_region
          _
        $region36: #{tpu_custom_call.1} parent=11 // pred_fallthru
          _
        // Predicated region
        $region37: #{tpu_custom_call.1} parent=11 // pred_check
          %p439 = pneg %p203
        $region38: #{tpu_custom_call.1} parent=11 // pred_check_branch
          %441 = sbr.rel (%p439) target = $region40
        $region39: #{tpu_custom_call.1} parent=11 // pred_region
          %s443 = ssub.s32 2048, 2048
          %444 = vsyncadd [#allocation9], %s443
          %s445 = sshll.u32 [#allocation10], 4
          %s446 = int_to_ptr.vmem [resolvable:$true] %s445
          %451 = dma.hbm_to_vmem [thread:$0]  %s7, 2048, %s446, [#allocation9], 128, 128, 8
        $region40: #{tpu_custom_call.1} parent=11 // pred_fallthru
          _
        // Predicated region
        $region41: #{tpu_custom_call.1} parent=11 // pred_check
          %p452 = pneg %p224
        $region42: #{tpu_custom_call.1} parent=11 // pred_check_branch
          %454 = sbr.rel (%p452) target = $region44
        $region43: #{tpu_custom_call.1} parent=11 // pred_region
          _
        $region44: #{tpu_custom_call.1} parent=11 // pred_fallthru
          _
        // Predicated region
        $region45: #{tpu_custom_call.1} parent=11 // pred_check
          %p455 = pneg %p245
        $region46: #{tpu_custom_call.1} parent=11 // pred_check_branch
          %457 = sbr.rel (%p455) target = $region48
        $region47: #{tpu_custom_call.1} parent=11 // pred_region
          %s459 = ssub.s32 2048, 2048
          %460 = vsyncadd [#allocation12], %s459
          %s461 = sshll.u32 [#allocation11], 4
          %s462 = int_to_ptr.vmem [resolvable:$true] %s461
          %467 = dma.hbm_to_vmem [thread:$0]  %s9, 2048, %s462, [#allocation12], 128, 128, 8
        $region48: #{tpu_custom_call.1} parent=11 // pred_fallthru
          _
        // Predicated region
        $region49: #{tpu_custom_call.1} parent=11 // pred_check
          %p468 = pneg %p266
        $region50: #{tpu_custom_call.1} parent=11 // pred_check_branch
          %470 = sbr.rel (%p468) target = $region52
        $region51: #{tpu_custom_call.1} parent=11 // pred_region
          _
        $region52: #{tpu_custom_call.1} parent=11 // pred_fallthru
          _
        // Predicated region
        $region53: #{tpu_custom_call.1} parent=11 // pred_check
          %p471 = pneg %p287
        $region54: #{tpu_custom_call.1} parent=11 // pred_check_branch
          %473 = sbr.rel (%p471) target = $region56
        $region55: #{tpu_custom_call.1} parent=11 // pred_region
          %s475 = ssub.s32 2048, 2048
          %476 = vsyncadd [#allocation12], %s475
          %s477 = sshll.u32 [#allocation13], 4
          %s478 = int_to_ptr.vmem [resolvable:$true] %s477
          %483 = dma.hbm_to_vmem [thread:$0]  %s11, 2048, %s478, [#allocation12], 128, 128, 8
        $region56: #{tpu_custom_call.1} parent=11 // pred_fallthru
          _
        // Predicated region
        $region57: #{tpu_custom_call.1} parent=11 // pred_check
          %p484 = pneg %p308
        $region58: #{tpu_custom_call.1} parent=11 // pred_check_branch
          %486 = sbr.rel (%p484) target = $region60
        $region59: #{tpu_custom_call.1} parent=11 // pred_region
          _
        $region60: #{tpu_custom_call.1} parent=11 // pred_fallthru
          _
        // Predicated region
        $region61: #{tpu_custom_call.1} parent=11 // pred_check
          %p487 = pneg %p329
        $region62: #{tpu_custom_call.1} parent=11 // pred_check_branch
          %489 = sbr.rel (%p487) target = $region64
        $region63: #{tpu_custom_call.1} parent=11 // pred_region
          _
        $region64: #{tpu_custom_call.1} parent=11 // pred_fallthru
          _
        // Predicated region
        $region65: #{tpu_custom_call.1} parent=11 // pred_check
          %p490 = pneg %p350
        $region66: #{tpu_custom_call.1} parent=11 // pred_check_branch
          %492 = sbr.rel (%p490) target = $region68
        $region67: #{tpu_custom_call.1} parent=11 // pred_region
          _
        $region68: #{tpu_custom_call.1} parent=11 // pred_fallthru
          _
      $region12: #{tpu_custom_call.1} parent=5 // pred_fallthru
        _
      %p493 = scmp.lt.s32.totalorder %s30, 2
      // Predicated region
      $region69: #{tpu_custom_call.1} parent=5 // pred_check
        %p494 = pneg %p493
      $region70: #{tpu_custom_call.1} parent=5 // pred_check_branch
        %496 = sbr.rel (%p494) target = $region72
      $region71: #{tpu_custom_call.1} parent=5 // pred_region
        // Predicated region
        $region73: #{tpu_custom_call.1} parent=71 // pred_check
          %p497 = pneg %p50
        $region74: #{tpu_custom_call.1} parent=71 // pred_check_branch
          %499 = sbr.rel (%p497) target = $region76
        $region75: #{tpu_custom_call.1} parent=71 // pred_region
          %s500 = sand.u32 %s40, 1
          %s501 = scalar_lea.sflag [#allocation3], %s500
          %s502 = sand.u32 %s40, 1
          %s503 = smul.addr %s502, 8
          %s504 = scalar_lea.vmem [#allocation2], %s503
          %s506 = ssub.s32 128, 128
          %507 = vsyncadd %s501, %s506
          %s508 = smul.addr %s30, 128
          %s509 = scalar_lea.hbm %s0, %s508
          %s511 = sshll.u32 %s504, 4
          %s512 = int_to_ptr.vmem [resolvable:$true] %s511
          %514 = dma.hbm_to_vmem [thread:$0]  %s509, 128, %s512, %s501
        $region76: #{tpu_custom_call.1} parent=71 // pred_fallthru
          _
      $region72: #{tpu_custom_call.1} parent=5 // pred_fallthru
        _
      %p515 = scmp.le.s32.totalorder 1, %s30
      %p516 = scmp.lt.s32.totalorder %s30, 3
      %p517 = pnand %p515, %p516
      %p518 = pneg %p517
      // Predicated region
      $region77: #{tpu_custom_call.1} parent=5 // pred_check
        _
      $region78: #{tpu_custom_call.1} parent=5 // pred_check_branch
        %520 = sbr.rel (%p517) target = $region80
      $region79: #{tpu_custom_call.1} parent=5 // pred_region
        %s521 = ssub.s32 %s30, 1
        %s522 = sand.u32 %s43, 1
        %s523 = scalar_lea.sflag [#allocation3], %s522
        %s524 = sand.u32 %s43, 1
        %s525 = smul.addr %s524, 8
        %s526 = scalar_lea.vmem [#allocation2], %s525
        // Predicated region
        $region81: #{tpu_custom_call.1} parent=79 // pred_check
          %p527 = pneg %p56
        $region82: #{tpu_custom_call.1} parent=79 // pred_check_branch
          %529 = sbr.rel (%p527) target = $region84
        $region83: #{tpu_custom_call.1} parent=79 // pred_region
          %530 = dma.done %s523, 128
        $region84: #{tpu_custom_call.1} parent=79 // pred_fallthru
          _
        // Predicated region
        $region85: #{tpu_custom_call.1} parent=79 // pred_check
          %p531 = pneg %p77
        $region86: #{tpu_custom_call.1} parent=79 // pred_check_branch
          %533 = sbr.rel (%p531) target = $region88
        $region87: #{tpu_custom_call.1} parent=79 // pred_region
          %534 = dma.done [#allocation6], 2048
        $region88: #{tpu_custom_call.1} parent=79 // pred_fallthru
          _
        // Predicated region
        $region89: #{tpu_custom_call.1} parent=79 // pred_check
          %p535 = pneg %p119
        $region90: #{tpu_custom_call.1} parent=79 // pred_check_branch
          %537 = sbr.rel (%p535) target = $region92
        $region91: #{tpu_custom_call.1} parent=79 // pred_region
          %538 = dma.done [#allocation6], 2048
        $region92: #{tpu_custom_call.1} parent=79 // pred_fallthru
          _
        // Predicated region
        $region93: #{tpu_custom_call.1} parent=79 // pred_check
          %p539 = pneg %p161
        $region94: #{tpu_custom_call.1} parent=79 // pred_check_branch
          %541 = sbr.rel (%p539) target = $region96
        $region95: #{tpu_custom_call.1} parent=79 // pred_region
          %542 = dma.done [#allocation9], 2048
        $region96: #{tpu_custom_call.1} parent=79 // pred_fallthru
          _
        // Predicated region
        $region97: #{tpu_custom_call.1} parent=79 // pred_check
          %p543 = pneg %p203
        $region98: #{tpu_custom_call.1} parent=79 // pred_check_branch
          %545 = sbr.rel (%p543) target = $region100
        $region99: #{tpu_custom_call.1} parent=79 // pred_region
          %546 = dma.done [#allocation9], 2048
        $region100: #{tpu_custom_call.1} parent=79 // pred_fallthru
          _
        // Predicated region
        $region101: #{tpu_custom_call.1} parent=79 // pred_check
          %p547 = pneg %p245
        $region102: #{tpu_custom_call.1} parent=79 // pred_check_branch
          %549 = sbr.rel (%p547) target = $region104
        $region103: #{tpu_custom_call.1} parent=79 // pred_region
          %550 = dma.done [#allocation12], 2048
        $region104: #{tpu_custom_call.1} parent=79 // pred_fallthru
          _
        // Predicated region
        $region105: #{tpu_custom_call.1} parent=79 // pred_check
          %p551 = pneg %p287
        $region106: #{tpu_custom_call.1} parent=79 // pred_check_branch
          %553 = sbr.rel (%p551) target = $region108
        $region107: #{tpu_custom_call.1} parent=79 // pred_region
          %554 = dma.done [#allocation12], 2048
        $region108: #{tpu_custom_call.1} parent=79 // pred_fallthru
          _
        %s555 = sand.u32 %s43, 1
        %s556 = scalar_lea.sflag [#allocation3], %s555
        %s557 = sand.u32 %s43, 1
        %s558 = smul.addr %s557, 8
        %s559 = scalar_lea.vmem [#allocation2], %s558
        %p560 = pneg %p56
        %p561 = pneg %p53
        %p562 = pneg %p77
        %p563 = pneg %p74
        %p564 = pneg %p98
        %p565 = pneg %p95
        %p566 = pneg %p119
        %p567 = pneg %p116
        %p568 = pneg %p140
        %p569 = pneg %p137
        %p570 = pneg %p161
        %p571 = pneg %p158
        %p572 = pneg %p182
        %p573 = pneg %p179
        %p574 = pneg %p203
        %p575 = pneg %p200
        %p576 = pneg %p224
        %p577 = pneg %p221
        %p578 = pneg %p245
        %p579 = pneg %p242
        %p580 = pneg %p266
        %p581 = pneg %p263
        %p582 = pneg %p287
        %p583 = pneg %p284
        %p584 = pneg %p308
        %p585 = pneg %p305
        %p586 = pneg %p329
        %p587 = pneg %p326
        %p588 = pneg %p350
        %p589 = pneg %p347
        %p590 = pneg %p376
        %p591 = pneg %p373
        %s592 = sand.u32 %s363, 1
        %s593 = scalar_lea.sflag [#allocation4], %s592
        %s594 = sand.u32 %s363, 1
        %s595 = smul.addr %s594, 8
        %s596 = scalar_lea.vmem [#allocation14], %s595
        %v597 = vld [vmem:[%s526] sm:$0xff]
        %v598 = vld [vmem:[#allocation8] sm:$0xff]
        %v599 = vld [vmem:[#allocation8 + $0x8] sm:$0xff]
        %v600 = vld [vmem:[#allocation8 + $0x10] sm:$0xff]
        %v601 = vld [vmem:[#allocation8 + $0x18] sm:$0xff]
        %v602 = vld [vmem:[#allocation8 + $0x20] sm:$0xff]
        %v603 = vld [vmem:[#allocation8 + $0x28] sm:$0xff]
        %v604 = vld [vmem:[#allocation8 + $0x30] sm:$0xff]
        %v605 = vld [vmem:[#allocation8 + $0x38] sm:$0xff]
        %v606 = vld [vmem:[#allocation8 + $0x40] sm:$0xff]
        %v607 = vld [vmem:[#allocation8 + $0x48] sm:$0xff]
        %v608 = vld [vmem:[#allocation8 + $0x50] sm:$0xff]
        %v609 = vld [vmem:[#allocation8 + $0x58] sm:$0xff]
        %v610 = vld [vmem:[#allocation8 + $0x60] sm:$0xff]
        %v611 = vld [vmem:[#allocation8 + $0x68] sm:$0xff]
        %v612 = vld [vmem:[#allocation8 + $0x70] sm:$0xff]
        %v613 = vld [vmem:[#allocation8 + $0x78] sm:$0xff]
        %v614 = vld [vmem:[%s6] sm:$0x1]
        %v616 = vlaneseq
        %v617 = vshrl.u32 %v616, 7
        %v618 = vsub.s32 0, %v617
        %v619 = vrot.slane %v614, %v618
        %621 = vmatprep.subr.mxu0 0.0
        %622 = vmatpush1.msra.mxu0 %v598
        %623 = vmatprep.subr.mxu0 0.0
        %624 = vmatpush1.msra.mxu0 %v599
        %625 = vmatprep.subr.mxu0 0.0
        %626 = vmatpush1.msra.mxu0 %v600
        %627 = vmatprep.subr.mxu0 0.0
        %628 = vmatpush1.msra.mxu0 %v601
        %629 = vmatprep.subr.mxu0 0.0
        %630 = vmatpush1.msra.mxu0 %v602
        %631 = vmatprep.subr.mxu0 0.0
        %632 = vmatpush1.msra.mxu0 %v603
        %633 = vmatprep.subr.mxu0 0.0
        %634 = vmatpush1.msra.mxu0 %v604
        %635 = vmatprep.subr.mxu0 0.0
        %636 = vmatpush1.msra.mxu0 %v605
        %637 = vmatprep.subr.mxu0 0.0
        %638 = vmatpush1.msra.mxu0 %v606
        %639 = vmatprep.subr.mxu0 0.0
        %640 = vmatpush1.msra.mxu0 %v607
        %641 = vmatprep.subr.mxu0 0.0
        %642 = vmatpush1.msra.mxu0 %v608
        %643 = vmatprep.subr.mxu0 0.0
        %644 = vmatpush1.msra.mxu0 %v609
        %645 = vmatprep.subr.mxu0 0.0
        %646 = vmatpush1.msra.mxu0 %v610
        %647 = vmatprep.subr.mxu0 0.0
        %648 = vmatpush1.msra.mxu0 %v611
        %649 = vmatprep.subr.mxu0 0.0
        %650 = vmatpush1.msra.mxu0 %v612
        %651 = vmatprep.subr.mxu0 0.0
        %652 = vmatpush1.msra.mxu0 %v613
        %653 = vmatprep.subr.mxu0 0.0
        %654 = vmatpush1.msra.mxu0 0.0
        %655 = vmatprep.subr.mxu0 0.0
        %656 = vmatpush1.msra.mxu0 0.0
        %657 = vmatprep.subr.mxu0 0.0
        %658 = vmatpush1.msra.mxu0 0.0
        %659 = vmatprep.subr.mxu0 0.0
        %660 = vmatpush1.msra.mxu0 0.0
        %661 = vmatprep.subr.mxu0 0.0
        %662 = vmatpush1.msra.mxu0 0.0
        %663 = vmatprep.subr.mxu0 0.0
        %664 = vmatpush1.msra.mxu0 0.0
        %665 = vmatprep.subr.mxu0 0.0
        %666 = vmatpush1.msra.mxu0 0.0
        %667 = vmatprep.subr.mxu0 0.0
        %668 = vmatpush1.msra.mxu0 0.0
        %669 = vmatprep.subr.mxu0 0.0
        %670 = vmatpush1.msra.mxu0 0.0
        %671 = vmatprep.subr.mxu0 0.0
        %672 = vmatpush1.msra.mxu0 0.0
        %673 = vmatprep.subr.mxu0 0.0
        %674 = vmatpush1.msra.mxu0 0.0
        %675 = vmatprep.subr.mxu0 0.0
        %676 = vmatpush1.msra.mxu0 0.0
        %677 = vmatprep.subr.mxu0 0.0
        %678 = vmatpush1.msra.mxu0 0.0
        %679 = vmatprep.subr.mxu0 0.0
        %680 = vmatpush1.msra.mxu0 0.0
        %681 = vmatprep.subr.mxu0 0.0
        %682 = vmatpush1.msra.mxu0 0.0
        %683 = vmatprep.subr.mxu0 0.0
        %684 = vmatpush1.msra.mxu0 0.0
        %685 = vmatprep.mubr.f32.mxu0 0.0
        %686 = vmatmul.mubr.f32.gmra.mrb[0].mxu0 %v597
        %v687 = vpop.f32.mrb[0].mxu0
        %v688 = vadd.f32 %v619, %v687
        %v689 = vpop.f32.mrb[0].mxu0
        %690 = vdwg.mxu0
        %v691 = vld [vmem:[#allocation5] sm:$0xff]
        %v692 = vld [vmem:[#allocation5 + $0x8] sm:$0xff]
        %v693 = vld [vmem:[#allocation5 + $0x10] sm:$0xff]
        %v694 = vld [vmem:[#allocation5 + $0x18] sm:$0xff]
        %v695 = vld [vmem:[#allocation5 + $0x20] sm:$0xff]
        %v696 = vld [vmem:[#allocation5 + $0x28] sm:$0xff]
        %v697 = vld [vmem:[#allocation5 + $0x30] sm:$0xff]
        %v698 = vld [vmem:[#allocation5 + $0x38] sm:$0xff]
        %v699 = vld [vmem:[#allocation5 + $0x40] sm:$0xff]
        %v700 = vld [vmem:[#allocation5 + $0x48] sm:$0xff]
        %v701 = vld [vmem:[#allocation5 + $0x50] sm:$0xff]
        %v702 = vld [vmem:[#allocation5 + $0x58] sm:$0xff]
        %v703 = vld [vmem:[#allocation5 + $0x60] sm:$0xff]
        %v704 = vld [vmem:[#allocation5 + $0x68] sm:$0xff]
        %v705 = vld [vmem:[#allocation5 + $0x70] sm:$0xff]
        %v706 = vld [vmem:[#allocation5 + $0x78] sm:$0xff]
        %v707 = vld [vmem:[%s2] sm:$0x1]
        %v709 = vlaneseq
        %v710 = vshrl.u32 %v709, 7
        %v711 = vsub.s32 0, %v710
        %v712 = vrot.slane %v707, %v711
        %714 = vmatprep.subr.mxu0 0.0
        %715 = vmatpush1.msra.mxu0 %v691
        %716 = vmatprep.subr.mxu0 0.0
        %717 = vmatpush1.msra.mxu0 %v692
        %718 = vmatprep.subr.mxu0 0.0
        %719 = vmatpush1.msra.mxu0 %v693
        %720 = vmatprep.subr.mxu0 0.0
        %721 = vmatpush1.msra.mxu0 %v694
        %722 = vmatprep.subr.mxu0 0.0
        %723 = vmatpush1.msra.mxu0 %v695
        %724 = vmatprep.subr.mxu0 0.0
        %725 = vmatpush1.msra.mxu0 %v696
        %726 = vmatprep.subr.mxu0 0.0
        %727 = vmatpush1.msra.mxu0 %v697
        %728 = vmatprep.subr.mxu0 0.0
        %729 = vmatpush1.msra.mxu0 %v698
        %730 = vmatprep.subr.mxu0 0.0
        %731 = vmatpush1.msra.mxu0 %v699
        %732 = vmatprep.subr.mxu0 0.0
        %733 = vmatpush1.msra.mxu0 %v700
        %734 = vmatprep.subr.mxu0 0.0
        %735 = vmatpush1.msra.mxu0 %v701
        %736 = vmatprep.subr.mxu0 0.0
        %737 = vmatpush1.msra.mxu0 %v702
        %738 = vmatprep.subr.mxu0 0.0
        %739 = vmatpush1.msra.mxu0 %v703
        %740 = vmatprep.subr.mxu0 0.0
        %741 = vmatpush1.msra.mxu0 %v704
        %742 = vmatprep.subr.mxu0 0.0
        %743 = vmatpush1.msra.mxu0 %v705
        %744 = vmatprep.subr.mxu0 0.0
        %745 = vmatpush1.msra.mxu0 %v706
        %746 = vmatprep.subr.mxu0 0.0
        %747 = vmatpush1.msra.mxu0 0.0
        %748 = vmatprep.subr.mxu0 0.0
        %749 = vmatpush1.msra.mxu0 0.0
        %750 = vmatprep.subr.mxu0 0.0
        %751 = vmatpush1.msra.mxu0 0.0
        %752 = vmatprep.subr.mxu0 0.0
        %753 = vmatpush1.msra.mxu0 0.0
        %754 = vmatprep.subr.mxu0 0.0
        %755 = vmatpush1.msra.mxu0 0.0
        %756 = vmatprep.subr.mxu0 0.0
        %757 = vmatpush1.msra.mxu0 0.0
        %758 = vmatprep.subr.mxu0 0.0
        %759 = vmatpush1.msra.mxu0 0.0
        %760 = vmatprep.subr.mxu0 0.0
        %761 = vmatpush1.msra.mxu0 0.0
        %762 = vmatprep.subr.mxu0 0.0
        %763 = vmatpush1.msra.mxu0 0.0
        %764 = vmatprep.subr.mxu0 0.0
        %765 = vmatpush1.msra.mxu0 0.0
        %766 = vmatprep.subr.mxu0 0.0
        %767 = vmatpush1.msra.mxu0 0.0
        %768 = vmatprep.subr.mxu0 0.0
        %769 = vmatpush1.msra.mxu0 0.0
        %770 = vmatprep.subr.mxu0 0.0
        %771 = vmatpush1.msra.mxu0 0.0
        %772 = vmatprep.subr.mxu0 0.0
        %773 = vmatpush1.msra.mxu0 0.0
        %774 = vmatprep.subr.mxu0 0.0
        %775 = vmatpush1.msra.mxu0 0.0
        %776 = vmatprep.subr.mxu0 0.0
        %777 = vmatpush1.msra.mxu0 0.0
        %778 = vmatprep.mubr.f32.mxu0 0.0
        %779 = vmatmul.mubr.f32.gmra.mrb[0].mxu0 %v597
        %v780 = vpop.f32.mrb[0].mxu0
        %v781 = vadd.f32 %v712, %v780
        %v782 = vpop.f32.mrb[0].mxu0
        %783 = vdwg.mxu0
        %v784 = vld [vmem:[#allocation7] sm:$0xff]
        %v785 = vld [vmem:[#allocation7 + $0x8] sm:$0xff]
        %v786 = vld [vmem:[#allocation7 + $0x10] sm:$0xff]
        %v787 = vld [vmem:[#allocation7 + $0x18] sm:$0xff]
        %v788 = vld [vmem:[#allocation7 + $0x20] sm:$0xff]
        %v789 = vld [vmem:[#allocation7 + $0x28] sm:$0xff]
        %v790 = vld [vmem:[#allocation7 + $0x30] sm:$0xff]
        %v791 = vld [vmem:[#allocation7 + $0x38] sm:$0xff]
        %v792 = vld [vmem:[#allocation7 + $0x40] sm:$0xff]
        %v793 = vld [vmem:[#allocation7 + $0x48] sm:$0xff]
        %v794 = vld [vmem:[#allocation7 + $0x50] sm:$0xff]
        %v795 = vld [vmem:[#allocation7 + $0x58] sm:$0xff]
        %v796 = vld [vmem:[#allocation7 + $0x60] sm:$0xff]
        %v797 = vld [vmem:[#allocation7 + $0x68] sm:$0xff]
        %v798 = vld [vmem:[#allocation7 + $0x70] sm:$0xff]
        %v799 = vld [vmem:[#allocation7 + $0x78] sm:$0xff]
        %v800 = vld [vmem:[%s4] sm:$0x1]
        %v802 = vlaneseq
        %v803 = vshrl.u32 %v802, 7
        %v804 = vsub.s32 0, %v803
        %v805 = vrot.slane %v800, %v804
        %807 = vmatprep.subr.mxu0 0.0
        %808 = vmatpush1.msra.mxu0 %v784
        %809 = vmatprep.subr.mxu0 0.0
        %810 = vmatpush1.msra.mxu0 %v785
        %811 = vmatprep.subr.mxu0 0.0
        %812 = vmatpush1.msra.mxu0 %v786
        %813 = vmatprep.subr.mxu0 0.0
        %814 = vmatpush1.msra.mxu0 %v787
        %815 = vmatprep.subr.mxu0 0.0
        %816 = vmatpush1.msra.mxu0 %v788
        %817 = vmatprep.subr.mxu0 0.0
        %818 = vmatpush1.msra.mxu0 %v789
        %819 = vmatprep.subr.mxu0 0.0
        %820 = vmatpush1.msra.mxu0 %v790
        %821 = vmatprep.subr.mxu0 0.0
        %822 = vmatpush1.msra.mxu0 %v791
        %823 = vmatprep.subr.mxu0 0.0
        %824 = vmatpush1.msra.mxu0 %v792
        %825 = vmatprep.subr.mxu0 0.0
        %826 = vmatpush1.msra.mxu0 %v793
        %827 = vmatprep.subr.mxu0 0.0
        %828 = vmatpush1.msra.mxu0 %v794
        %829 = vmatprep.subr.mxu0 0.0
        %830 = vmatpush1.msra.mxu0 %v795
        %831 = vmatprep.subr.mxu0 0.0
        %832 = vmatpush1.msra.mxu0 %v796
        %833 = vmatprep.subr.mxu0 0.0
        %834 = vmatpush1.msra.mxu0 %v797
        %835 = vmatprep.subr.mxu0 0.0
        %836 = vmatpush1.msra.mxu0 %v798
        %837 = vmatprep.subr.mxu0 0.0
        %838 = vmatpush1.msra.mxu0 %v799
        %839 = vmatprep.subr.mxu0 0.0
        %840 = vmatpush1.msra.mxu0 0.0
        %841 = vmatprep.subr.mxu0 0.0
        %842 = vmatpush1.msra.mxu0 0.0
        %843 = vmatprep.subr.mxu0 0.0
        %844 = vmatpush1.msra.mxu0 0.0
        %845 = vmatprep.subr.mxu0 0.0
        %846 = vmatpush1.msra.mxu0 0.0
        %847 = vmatprep.subr.mxu0 0.0
        %848 = vmatpush1.msra.mxu0 0.0
        %849 = vmatprep.subr.mxu0 0.0
        %850 = vmatpush1.msra.mxu0 0.0
        %851 = vmatprep.subr.mxu0 0.0
        %852 = vmatpush1.msra.mxu0 0.0
        %853 = vmatprep.subr.mxu0 0.0
        %854 = vmatpush1.msra.mxu0 0.0
        %855 = vmatprep.subr.mxu0 0.0
        %856 = vmatpush1.msra.mxu0 0.0
        %857 = vmatprep.subr.mxu0 0.0
        %858 = vmatpush1.msra.mxu0 0.0
        %859 = vmatprep.subr.mxu0 0.0
        %860 = vmatpush1.msra.mxu0 0.0
        %861 = vmatprep.subr.mxu0 0.0
        %862 = vmatpush1.msra.mxu0 0.0
        %863 = vmatprep.subr.mxu0 0.0
        %864 = vmatpush1.msra.mxu0 0.0
        %865 = vmatprep.subr.mxu0 0.0
        %866 = vmatpush1.msra.mxu0 0.0
        %867 = vmatprep.subr.mxu0 0.0
        %868 = vmatpush1.msra.mxu0 0.0
        %869 = vmatprep.subr.mxu0 0.0
        %870 = vmatpush1.msra.mxu0 0.0
        %871 = vmatprep.mubr.f32.mxu0 0.0
        %872 = vmatmul.mubr.f32.gmra.mrb[0].mxu0 %v597
        %v873 = vpop.f32.mrb[0].mxu0
        %v874 = vadd.f32 %v805, %v873
        %v875 = vpop.f32.mrb[0].mxu0
        %876 = vdwg.mxu0
        %vm877 = vcmask 64512
        %v879 = vsel %vm877, %v781, 0
        %v882 = vsel %vm877, %v874, 0
        %884 = vmatprep.subr.mxu0 0.0
        %885 = vmatpush1.xpose.msra.mxu0 %v882
        %886 = vmatprep.subr.mxu0 0.0
        %887 = vmatpush1.xpose.msra.mxu0 0.0
        %888 = vmatprep.subr.mxu0 0.0
        %889 = vmatpush1.xpose.msra.mxu0 0.0
        %890 = vmatprep.subr.mxu0 0.0
        %891 = vmatpush1.xpose.msra.mxu0 0.0
        %892 = vmatprep.subr.mxu0 0.0
        %893 = vmatpush1.xpose.msra.mxu0 0.0
        %894 = vmatprep.subr.mxu0 0.0
        %895 = vmatpush1.xpose.msra.mxu0 0.0
        %896 = vmatprep.subr.mxu0 0.0
        %897 = vmatpush1.xpose.msra.mxu0 0.0
        %898 = vmatprep.subr.mxu0 0.0
        %899 = vmatpush1.xpose.msra.mxu0 0.0
        %900 = vmatprep.subr.mxu0 0.0
        %901 = vmatpush1.xpose.msra.mxu0 0.0
        %902 = vmatprep.subr.mxu0 0.0
        %903 = vmatpush1.xpose.msra.mxu0 0.0
        %904 = vmatprep.subr.mxu0 0.0
        %905 = vmatpush1.xpose.msra.mxu0 0.0
        %906 = vmatprep.subr.mxu0 0.0
        %907 = vmatpush1.xpose.msra.mxu0 0.0
        %908 = vmatprep.subr.mxu0 0.0
        %909 = vmatpush1.xpose.msra.mxu0 0.0
        %910 = vmatprep.subr.mxu0 0.0
        %911 = vmatpush1.xpose.msra.mxu0 0.0
        %912 = vmatprep.subr.mxu0 0.0
        %913 = vmatpush1.xpose.msra.mxu0 0.0
        %914 = vmatprep.subr.mxu0 0.0
        %915 = vmatpush1.xpose.msra.mxu0 0.0
        %916 = vmatprep.subr.mxu0 0.0
        %917 = vmatpush1.xpose.msra.mxu0 0.0
        %918 = vmatprep.subr.mxu0 0.0
        %919 = vmatpush1.xpose.msra.mxu0 0.0
        %920 = vmatprep.subr.mxu0 0.0
        %921 = vmatpush1.xpose.msra.mxu0 0.0
        %922 = vmatprep.subr.mxu0 0.0
        %923 = vmatpush1.xpose.msra.mxu0 0.0
        %924 = vmatprep.subr.mxu0 0.0
        %925 = vmatpush1.xpose.msra.mxu0 0.0
        %926 = vmatprep.subr.mxu0 0.0
        %927 = vmatpush1.xpose.msra.mxu0 0.0
        %928 = vmatprep.subr.mxu0 0.0
        %929 = vmatpush1.xpose.msra.mxu0 0.0
        %930 = vmatprep.subr.mxu0 0.0
        %931 = vmatpush1.xpose.msra.mxu0 0.0
        %932 = vmatprep.subr.mxu0 0.0
        %933 = vmatpush1.xpose.msra.mxu0 0.0
        %934 = vmatprep.subr.mxu0 0.0
        %935 = vmatpush1.xpose.msra.mxu0 0.0
        %936 = vmatprep.subr.mxu0 0.0
        %937 = vmatpush1.xpose.msra.mxu0 0.0
        %938 = vmatprep.subr.mxu0 0.0
        %939 = vmatpush1.xpose.msra.mxu0 0.0
        %940 = vmatprep.subr.mxu0 0.0
        %941 = vmatpush1.xpose.msra.mxu0 0.0
        %942 = vmatprep.subr.mxu0 0.0
        %943 = vmatpush1.xpose.msra.mxu0 0.0
        %944 = vmatprep.subr.mxu0 0.0
        %945 = vmatpush1.xpose.msra.mxu0 0.0
        %946 = vmatprep.subr.mxu0 0.0
        %947 = vmatpush1.xpose.msra.mxu0 0.0
        %948 = vmatprep.mubr.f32.mxu0 0.0
        %949 = vmatmul.mubr.f32.gmra.mrb[0].mxu0 %v879
        %v950 = vpop.f32.mrb[0].mxu0
        %v951 = vadd.f32 0.0, %v950
        %v952 = vpop.f32.mrb[0].mxu0
        %953 = vdwg.mxu0
        %v954 = vsel %vm877, %v951, -inf
        %955 = vmax.xlane.f32.xlu0 %v954
        %v956 = vpop.xlane.xlu0 %955
        %v957 = vsub.f32 %v951, %v956
        %v958 = vmul.f32 %v957, 1.442695
        %v959 = vpow.pop %v958
        %v960 = vsel %vm877, %v959, 0.0
        %961 = vadd.xlane.f32.xlu0 %v960
        %v962 = vpop.xlane.xlu0 %961
        %v963 = vrcp.pop %v962
        %v964 = vmul.f32 %v959, %v963
        %v966 = vsel %vm877, %v964, 0
        %968 = vmatprep.subr.mxu0 0.0
        %969 = vmatpush1.msra.mxu0 %v688
        %970 = vmatprep.subr.mxu0 0.0
        %971 = vmatpush1.msra.mxu0 0.0
        %972 = vmatprep.subr.mxu0 0.0
        %973 = vmatpush1.msra.mxu0 0.0
        %974 = vmatprep.subr.mxu0 0.0
        %975 = vmatpush1.msra.mxu0 0.0
        %976 = vmatprep.subr.mxu0 0.0
        %977 = vmatpush1.msra.mxu0 0.0
        %978 = vmatprep.subr.mxu0 0.0
        %979 = vmatpush1.msra.mxu0 0.0
        %980 = vmatprep.subr.mxu0 0.0
        %981 = vmatpush1.msra.mxu0 0.0
        %982 = vmatprep.subr.mxu0 0.0
        %983 = vmatpush1.msra.mxu0 0.0
        %984 = vmatprep.subr.mxu0 0.0
        %985 = vmatpush1.msra.mxu0 0.0
        %986 = vmatprep.subr.mxu0 0.0
        %987 = vmatpush1.msra.mxu0 0.0
        %988 = vmatprep.subr.mxu0 0.0
        %989 = vmatpush1.msra.mxu0 0.0
        %990 = vmatprep.subr.mxu0 0.0
        %991 = vmatpush1.msra.mxu0 0.0
        %992 = vmatprep.subr.mxu0 0.0
        %993 = vmatpush1.msra.mxu0 0.0
        %994 = vmatprep.subr.mxu0 0.0
        %995 = vmatpush1.msra.mxu0 0.0
        %996 = vmatprep.subr.mxu0 0.0
        %997 = vmatpush1.msra.mxu0 0.0
        %998 = vmatprep.subr.mxu0 0.0
        %999 = vmatpush1.msra.mxu0 0.0
        %1000 = vmatprep.subr.mxu0 0.0
        %1001 = vmatpush1.msra.mxu0 0.0
        %1002 = vmatprep.subr.mxu0 0.0
        %1003 = vmatpush1.msra.mxu0 0.0
        %1004 = vmatprep.subr.mxu0 0.0
        %1005 = vmatpush1.msra.mxu0 0.0
        %1006 = vmatprep.subr.mxu0 0.0
        %1007 = vmatpush1.msra.mxu0 0.0
        %1008 = vmatprep.subr.mxu0 0.0
        %1009 = vmatpush1.msra.mxu0 0.0
        %1010 = vmatprep.subr.mxu0 0.0
        %1011 = vmatpush1.msra.mxu0 0.0
        %1012 = vmatprep.subr.mxu0 0.0
        %1013 = vmatpush1.msra.mxu0 0.0
        %1014 = vmatprep.subr.mxu0 0.0
        %1015 = vmatpush1.msra.mxu0 0.0
        %1016 = vmatprep.subr.mxu0 0.0
        %1017 = vmatpush1.msra.mxu0 0.0
        %1018 = vmatprep.subr.mxu0 0.0
        %1019 = vmatpush1.msra.mxu0 0.0
        %1020 = vmatprep.subr.mxu0 0.0
        %1021 = vmatpush1.msra.mxu0 0.0
        %1022 = vmatprep.subr.mxu0 0.0
        %1023 = vmatpush1.msra.mxu0 0.0
        %1024 = vmatprep.subr.mxu0 0.0
        %1025 = vmatpush1.msra.mxu0 0.0
        %1026 = vmatprep.subr.mxu0 0.0
        %1027 = vmatpush1.msra.mxu0 0.0
        %1028 = vmatprep.subr.mxu0 0.0
        %1029 = vmatpush1.msra.mxu0 0.0
        %1030 = vmatprep.subr.mxu0 0.0
        %1031 = vmatpush1.msra.mxu0 0.0
        %1032 = vmatprep.mubr.f32.mxu0 0.0
        %1033 = vmatmul.mubr.f32.gmra.mrb[0].mxu0 %v966
        %v1034 = vpop.f32.mrb[0].mxu0
        %v1035 = vadd.f32 0.0, %v1034
        %v1036 = vpop.f32.mrb[0].mxu0
        %1037 = vdwg.mxu0
        %1038 = vrot.lane.b32.xlu0 %v781, 120
        %v1039 = vpop.permute.xlu0 %1038
        %1040 = vrot.lane.b32.xlu0 %v874, 120
        %v1041 = vpop.permute.xlu0 %1040
        %v1042 = vsel %vm877, %v1039, 0
        %v1044 = vsel %vm877, %v1041, 0
        %1046 = vmatprep.subr.mxu0 0.0
        %1047 = vmatpush1.xpose.msra.mxu0 %v1044
        %1048 = vmatprep.subr.mxu0 0.0
        %1049 = vmatpush1.xpose.msra.mxu0 0.0
        %1050 = vmatprep.subr.mxu0 0.0
        %1051 = vmatpush1.xpose.msra.mxu0 0.0
        %1052 = vmatprep.subr.mxu0 0.0
        %1053 = vmatpush1.xpose.msra.mxu0 0.0
        %1054 = vmatprep.subr.mxu0 0.0
        %1055 = vmatpush1.xpose.msra.mxu0 0.0
        %1056 = vmatprep.subr.mxu0 0.0
        %1057 = vmatpush1.xpose.msra.mxu0 0.0
        %1058 = vmatprep.subr.mxu0 0.0
        %1059 = vmatpush1.xpose.msra.mxu0 0.0
        %1060 = vmatprep.subr.mxu0 0.0
        %1061 = vmatpush1.xpose.msra.mxu0 0.0
        %1062 = vmatprep.subr.mxu0 0.0
        %1063 = vmatpush1.xpose.msra.mxu0 0.0
        %1064 = vmatprep.subr.mxu0 0.0
        %1065 = vmatpush1.xpose.msra.mxu0 0.0
        %1066 = vmatprep.subr.mxu0 0.0
        %1067 = vmatpush1.xpose.msra.mxu0 0.0
        %1068 = vmatprep.subr.mxu0 0.0
        %1069 = vmatpush1.xpose.msra.mxu0 0.0
        %1070 = vmatprep.subr.mxu0 0.0
        %1071 = vmatpush1.xpose.msra.mxu0 0.0
        %1072 = vmatprep.subr.mxu0 0.0
        %1073 = vmatpush1.xpose.msra.mxu0 0.0
        %1074 = vmatprep.subr.mxu0 0.0
        %1075 = vmatpush1.xpose.msra.mxu0 0.0
        %1076 = vmatprep.subr.mxu0 0.0
        %1077 = vmatpush1.xpose.msra.mxu0 0.0
        %1078 = vmatprep.subr.mxu0 0.0
        %1079 = vmatpush1.xpose.msra.mxu0 0.0
        %1080 = vmatprep.subr.mxu0 0.0
        %1081 = vmatpush1.xpose.msra.mxu0 0.0
        %1082 = vmatprep.subr.mxu0 0.0
        %1083 = vmatpush1.xpose.msra.mxu0 0.0
        %1084 = vmatprep.subr.mxu0 0.0
        %1085 = vmatpush1.xpose.msra.mxu0 0.0
        %1086 = vmatprep.subr.mxu0 0.0
        %1087 = vmatpush1.xpose.msra.mxu0 0.0
        %1088 = vmatprep.subr.mxu0 0.0
        %1089 = vmatpush1.xpose.msra.mxu0 0.0
        %1090 = vmatprep.subr.mxu0 0.0
        %1091 = vmatpush1.xpose.msra.mxu0 0.0
        %1092 = vmatprep.subr.mxu0 0.0
        %1093 = vmatpush1.xpose.msra.mxu0 0.0
        %1094 = vmatprep.subr.mxu0 0.0
        %1095 = vmatpush1.xpose.msra.mxu0 0.0
        %1096 = vmatprep.subr.mxu0 0.0
        %1097 = vmatpush1.xpose.msra.mxu0 0.0
        %1098 = vmatprep.subr.mxu0 0.0
        %1099 = vmatpush1.xpose.msra.mxu0 0.0
        %1100 = vmatprep.subr.mxu0 0.0
        %1101 = vmatpush1.xpose.msra.mxu0 0.0
        %1102 = vmatprep.subr.mxu0 0.0
        %1103 = vmatpush1.xpose.msra.mxu0 0.0
        %1104 = vmatprep.subr.mxu0 0.0
        %1105 = vmatpush1.xpose.msra.mxu0 0.0
        %1106 = vmatprep.subr.mxu0 0.0
        %1107 = vmatpush1.xpose.msra.mxu0 0.0
        %1108 = vmatprep.subr.mxu0 0.0
        %1109 = vmatpush1.xpose.msra.mxu0 0.0
        %1110 = vmatprep.mubr.f32.mxu0 0.0
        %1111 = vmatmul.mubr.f32.gmra.mrb[0].mxu0 %v1042
        %v1112 = vpop.f32.mrb[0].mxu0
        %v1113 = vadd.f32 0.0, %v1112
        %v1114 = vpop.f32.mrb[0].mxu0
        %1115 = vdwg.mxu0
        %v1116 = vsel %vm877, %v1113, -inf
        %1117 = vmax.xlane.f32.xlu0 %v1116
        %v1118 = vpop.xlane.xlu0 %1117
        %v1119 = vsub.f32 %v1113, %v1118
        %v1120 = vmul.f32 %v1119, 1.442695
        %v1121 = vpow.pop %v1120
        %v1122 = vsel %vm877, %v1121, 0.0
        %1123 = vadd.xlane.f32.xlu0 %v1122
        %v1124 = vpop.xlane.xlu0 %1123
        %v1125 = vrcp.pop %v1124
        %v1126 = vmul.f32 %v1121, %v1125
        %1128 = vrot.lane.b32.xlu0 %v688, 120
        %v1129 = vpop.permute.xlu0 %1128
        %v1132 = vsel %vm877, %v1126, 0
        %1134 = vmatprep.subr.mxu0 0.0
        %1135 = vmatpush1.msra.mxu0 %v1129
        %1136 = vmatprep.subr.mxu0 0.0
        %1137 = vmatpush1.msra.mxu0 0.0
        %1138 = vmatprep.subr.mxu0 0.0
        %1139 = vmatpush1.msra.mxu0 0.0
        %1140 = vmatprep.subr.mxu0 0.0
        %1141 = vmatpush1.msra.mxu0 0.0
        %1142 = vmatprep.subr.mxu0 0.0
        %1143 = vmatpush1.msra.mxu0 0.0
        %1144 = vmatprep.subr.mxu0 0.0
        %1145 = vmatpush1.msra.mxu0 0.0
        %1146 = vmatprep.subr.mxu0 0.0
        %1147 = vmatpush1.msra.mxu0 0.0
        %1148 = vmatprep.subr.mxu0 0.0
        %1149 = vmatpush1.msra.mxu0 0.0
        %1150 = vmatprep.subr.mxu0 0.0
        %1151 = vmatpush1.msra.mxu0 0.0
        %1152 = vmatprep.subr.mxu0 0.0
        %1153 = vmatpush1.msra.mxu0 0.0
        %1154 = vmatprep.subr.mxu0 0.0
        %1155 = vmatpush1.msra.mxu0 0.0
        %1156 = vmatprep.subr.mxu0 0.0
        %1157 = vmatpush1.msra.mxu0 0.0
        %1158 = vmatprep.subr.mxu0 0.0
        %1159 = vmatpush1.msra.mxu0 0.0
        %1160 = vmatprep.subr.mxu0 0.0
        %1161 = vmatpush1.msra.mxu0 0.0
        %1162 = vmatprep.subr.mxu0 0.0
        %1163 = vmatpush1.msra.mxu0 0.0
        %1164 = vmatprep.subr.mxu0 0.0
        %1165 = vmatpush1.msra.mxu0 0.0
        %1166 = vmatprep.subr.mxu0 0.0
        %1167 = vmatpush1.msra.mxu0 0.0
        %1168 = vmatprep.subr.mxu0 0.0
        %1169 = vmatpush1.msra.mxu0 0.0
        %1170 = vmatprep.subr.mxu0 0.0
        %1171 = vmatpush1.msra.mxu0 0.0
        %1172 = vmatprep.subr.mxu0 0.0
        %1173 = vmatpush1.msra.mxu0 0.0
        %1174 = vmatprep.subr.mxu0 0.0
        %1175 = vmatpush1.msra.mxu0 0.0
        %1176 = vmatprep.subr.mxu0 0.0
        %1177 = vmatpush1.msra.mxu0 0.0
        %1178 = vmatprep.subr.mxu0 0.0
        %1179 = vmatpush1.msra.mxu0 0.0
        %1180 = vmatprep.subr.mxu0 0.0
        %1181 = vmatpush1.msra.mxu0 0.0
        %1182 = vmatprep.subr.mxu0 0.0
        %1183 = vmatpush1.msra.mxu0 0.0
        %1184 = vmatprep.subr.mxu0 0.0
        %1185 = vmatpush1.msra.mxu0 0.0
        %1186 = vmatprep.subr.mxu0 0.0
        %1187 = vmatpush1.msra.mxu0 0.0
        %1188 = vmatprep.subr.mxu0 0.0
        %1189 = vmatpush1.msra.mxu0 0.0
        %1190 = vmatprep.subr.mxu0 0.0
        %1191 = vmatpush1.msra.mxu0 0.0
        %1192 = vmatprep.subr.mxu0 0.0
        %1193 = vmatpush1.msra.mxu0 0.0
        %1194 = vmatprep.subr.mxu0 0.0
        %1195 = vmatpush1.msra.mxu0 0.0
        %1196 = vmatprep.subr.mxu0 0.0
        %1197 = vmatpush1.msra.mxu0 0.0
        %1198 = vmatprep.mubr.f32.mxu0 0.0
        %1199 = vmatmul.mubr.f32.gmra.mrb[0].mxu0 %v1132
        %v1200 = vpop.f32.mrb[0].mxu0
        %v1201 = vadd.f32 0.0, %v1200
        %v1202 = vpop.f32.mrb[0].mxu0
        %1203 = vdwg.mxu0
        %1204 = vrot.lane.b32.xlu0 %v781, 112
        %v1205 = vpop.permute.xlu0 %1204
        %1206 = vrot.lane.b32.xlu0 %v874, 112
        %v1207 = vpop.permute.xlu0 %1206
        %v1208 = vsel %vm877, %v1205, 0
        %v1210 = vsel %vm877, %v1207, 0
        %1212 = vmatprep.subr.mxu0 0.0
        %1213 = vmatpush1.xpose.msra.mxu0 %v1210
        %1214 = vmatprep.subr.mxu0 0.0
        %1215 = vmatpush1.xpose.msra.mxu0 0.0
        %1216 = vmatprep.subr.mxu0 0.0
        %1217 = vmatpush1.xpose.msra.mxu0 0.0
        %1218 = vmatprep.subr.mxu0 0.0
        %1219 = vmatpush1.xpose.msra.mxu0 0.0
        %1220 = vmatprep.subr.mxu0 0.0
        %1221 = vmatpush1.xpose.msra.mxu0 0.0
        %1222 = vmatprep.subr.mxu0 0.0
        %1223 = vmatpush1.xpose.msra.mxu0 0.0
        %1224 = vmatprep.subr.mxu0 0.0
        %1225 = vmatpush1.xpose.msra.mxu0 0.0
        %1226 = vmatprep.subr.mxu0 0.0
        %1227 = vmatpush1.xpose.msra.mxu0 0.0
        %1228 = vmatprep.subr.mxu0 0.0
        %1229 = vmatpush1.xpose.msra.mxu0 0.0
        %1230 = vmatprep.subr.mxu0 0.0
        %1231 = vmatpush1.xpose.msra.mxu0 0.0
        %1232 = vmatprep.subr.mxu0 0.0
        %1233 = vmatpush1.xpose.msra.mxu0 0.0
        %1234 = vmatprep.subr.mxu0 0.0
        %1235 = vmatpush1.xpose.msra.mxu0 0.0
        %1236 = vmatprep.subr.mxu0 0.0
        %1237 = vmatpush1.xpose.msra.mxu0 0.0
        %1238 = vmatprep.subr.mxu0 0.0
        %1239 = vmatpush1.xpose.msra.mxu0 0.0
        %1240 = vmatprep.subr.mxu0 0.0
        %1241 = vmatpush1.xpose.msra.mxu0 0.0
        %1242 = vmatprep.subr.mxu0 0.0
        %1243 = vmatpush1.xpose.msra.mxu0 0.0
        %1244 = vmatprep.subr.mxu0 0.0
        %1245 = vmatpush1.xpose.msra.mxu0 0.0
        %1246 = vmatprep.subr.mxu0 0.0
        %1247 = vmatpush1.xpose.msra.mxu0 0.0
        %1248 = vmatprep.subr.mxu0 0.0
        %1249 = vmatpush1.xpose.msra.mxu0 0.0
        %1250 = vmatprep.subr.mxu0 0.0
        %1251 = vmatpush1.xpose.msra.mxu0 0.0
        %1252 = vmatprep.subr.mxu0 0.0
        %1253 = vmatpush1.xpose.msra.mxu0 0.0
        %1254 = vmatprep.subr.mxu0 0.0
        %1255 = vmatpush1.xpose.msra.mxu0 0.0
        %1256 = vmatprep.subr.mxu0 0.0
        %1257 = vmatpush1.xpose.msra.mxu0 0.0
        %1258 = vmatprep.subr.mxu0 0.0
        %1259 = vmatpush1.xpose.msra.mxu0 0.0
        %1260 = vmatprep.subr.mxu0 0.0
        %1261 = vmatpush1.xpose.msra.mxu0 0.0
        %1262 = vmatprep.subr.mxu0 0.0
        %1263 = vmatpush1.xpose.msra.mxu0 0.0
        %1264 = vmatprep.subr.mxu0 0.0
        %1265 = vmatpush1.xpose.msra.mxu0 0.0
        %1266 = vmatprep.subr.mxu0 0.0
        %1267 = vmatpush1.xpose.msra.mxu0 0.0
        %1268 = vmatprep.subr.mxu0 0.0
        %1269 = vmatpush1.xpose.msra.mxu0 0.0
        %1270 = vmatprep.subr.mxu0 0.0
        %1271 = vmatpush1.xpose.msra.mxu0 0.0
        %1272 = vmatprep.subr.mxu0 0.0
        %1273 = vmatpush1.xpose.msra.mxu0 0.0
        %1274 = vmatprep.subr.mxu0 0.0
        %1275 = vmatpush1.xpose.msra.mxu0 0.0
        %1276 = vmatprep.mubr.f32.mxu0 0.0
        %1277 = vmatmul.mubr.f32.gmra.mrb[0].mxu0 %v1208
        %v1278 = vpop.f32.mrb[0].mxu0
        %v1279 = vadd.f32 0.0, %v1278
        %v1280 = vpop.f32.mrb[0].mxu0
        %1281 = vdwg.mxu0
        %v1282 = vsel %vm877, %v1279, -inf
        %1283 = vmax.xlane.f32.xlu0 %v1282
        %v1284 = vpop.xlane.xlu0 %1283
        %v1285 = vsub.f32 %v1279, %v1284
        %v1286 = vmul.f32 %v1285, 1.442695
        %v1287 = vpow.pop %v1286
        %v1288 = vsel %vm877, %v1287, 0.0
        %1289 = vadd.xlane.f32.xlu0 %v1288
        %v1290 = vpop.xlane.xlu0 %1289
        %v1291 = vrcp.pop %v1290
        %v1292 = vmul.f32 %v1287, %v1291
        %1293 = vrot.lane.b32.xlu0 %v688, 112
        %v1294 = vpop.permute.xlu0 %1293
        %v1297 = vsel %vm877, %v1292, 0
        %1299 = vmatprep.subr.mxu0 0.0
        %1300 = vmatpush1.msra.mxu0 %v1294
        %1301 = vmatprep.subr.mxu0 0.0
        %1302 = vmatpush1.msra.mxu0 0.0
        %1303 = vmatprep.subr.mxu0 0.0
        %1304 = vmatpush1.msra.mxu0 0.0
        %1305 = vmatprep.subr.mxu0 0.0
        %1306 = vmatpush1.msra.mxu0 0.0
        %1307 = vmatprep.subr.mxu0 0.0
        %1308 = vmatpush1.msra.mxu0 0.0
        %1309 = vmatprep.subr.mxu0 0.0
        %1310 = vmatpush1.msra.mxu0 0.0
        %1311 = vmatprep.subr.mxu0 0.0
        %1312 = vmatpush1.msra.mxu0 0.0
        %1313 = vmatprep.subr.mxu0 0.0
        %1314 = vmatpush1.msra.mxu0 0.0
        %1315 = vmatprep.subr.mxu0 0.0
        %1316 = vmatpush1.msra.mxu0 0.0
        %1317 = vmatprep.subr.mxu0 0.0
        %1318 = vmatpush1.msra.mxu0 0.0
        %1319 = vmatprep.subr.mxu0 0.0
        %1320 = vmatpush1.msra.mxu0 0.0
        %1321 = vmatprep.subr.mxu0 0.0
        %1322 = vmatpush1.msra.mxu0 0.0
        %1323 = vmatprep.subr.mxu0 0.0
        %1324 = vmatpush1.msra.mxu0 0.0
        %1325 = vmatprep.subr.mxu0 0.0
        %1326 = vmatpush1.msra.mxu0 0.0
        %1327 = vmatprep.subr.mxu0 0.0
        %1328 = vmatpush1.msra.mxu0 0.0
        %1329 = vmatprep.subr.mxu0 0.0
        %1330 = vmatpush1.msra.mxu0 0.0
        %1331 = vmatprep.subr.mxu0 0.0
        %1332 = vmatpush1.msra.mxu0 0.0
        %1333 = vmatprep.subr.mxu0 0.0
        %1334 = vmatpush1.msra.mxu0 0.0
        %1335 = vmatprep.subr.mxu0 0.0
        %1336 = vmatpush1.msra.mxu0 0.0
        %1337 = vmatprep.subr.mxu0 0.0
        %1338 = vmatpush1.msra.mxu0 0.0
        %1339 = vmatprep.subr.mxu0 0.0
        %1340 = vmatpush1.msra.mxu0 0.0
        %1341 = vmatprep.subr.mxu0 0.0
        %1342 = vmatpush1.msra.mxu0 0.0
        %1343 = vmatprep.subr.mxu0 0.0
        %1344 = vmatpush1.msra.mxu0 0.0
        %1345 = vmatprep.subr.mxu0 0.0
        %1346 = vmatpush1.msra.mxu0 0.0
        %1347 = vmatprep.subr.mxu0 0.0
        %1348 = vmatpush1.msra.mxu0 0.0
        %1349 = vmatprep.subr.mxu0 0.0
        %1350 = vmatpush1.msra.mxu0 0.0
        %1351 = vmatprep.subr.mxu0 0.0
        %1352 = vmatpush1.msra.mxu0 0.0
        %1353 = vmatprep.subr.mxu0 0.0
        %1354 = vmatpush1.msra.mxu0 0.0
        %1355 = vmatprep.subr.mxu0 0.0
        %1356 = vmatpush1.msra.mxu0 0.0
        %1357 = vmatprep.subr.mxu0 0.0
        %1358 = vmatpush1.msra.mxu0 0.0
        %1359 = vmatprep.subr.mxu0 0.0
        %1360 = vmatpush1.msra.mxu0 0.0
        %1361 = vmatprep.subr.mxu0 0.0
        %1362 = vmatpush1.msra.mxu0 0.0
        %1363 = vmatprep.mubr.f32.mxu0 0.0
        %1364 = vmatmul.mubr.f32.gmra.mrb[0].mxu0 %v1297
        %v1365 = vpop.f32.mrb[0].mxu0
        %v1366 = vadd.f32 0.0, %v1365
        %v1367 = vpop.f32.mrb[0].mxu0
        %1368 = vdwg.mxu0
        %1369 = vrot.lane.b32.xlu0 %v781, 104
        %v1370 = vpop.permute.xlu0 %1369
        %1371 = vrot.lane.b32.xlu0 %v874, 104
        %v1372 = vpop.permute.xlu0 %1371
        %v1373 = vsel %vm877, %v1370, 0
        %v1375 = vsel %vm877, %v1372, 0
        %1377 = vmatprep.subr.mxu0 0.0
        %1378 = vmatpush1.xpose.msra.mxu0 %v1375
        %1379 = vmatprep.subr.mxu0 0.0
        %1380 = vmatpush1.xpose.msra.mxu0 0.0
        %1381 = vmatprep.subr.mxu0 0.0
        %1382 = vmatpush1.xpose.msra.mxu0 0.0
        %1383 = vmatprep.subr.mxu0 0.0
        %1384 = vmatpush1.xpose.msra.mxu0 0.0
        %1385 = vmatprep.subr.mxu0 0.0
        %1386 = vmatpush1.xpose.msra.mxu0 0.0
        %1387 = vmatprep.subr.mxu0 0.0
        %1388 = vmatpush1.xpose.msra.mxu0 0.0
        %1389 = vmatprep.subr.mxu0 0.0
        %1390 = vmatpush1.xpose.msra.mxu0 0.0
        %1391 = vmatprep.subr.mxu0 0.0
        %1392 = vmatpush1.xpose.msra.mxu0 0.0
        %1393 = vmatprep.subr.mxu0 0.0
        %1394 = vmatpush1.xpose.msra.mxu0 0.0
        %1395 = vmatprep.subr.mxu0 0.0
        %1396 = vmatpush1.xpose.msra.mxu0 0.0
        %1397 = vmatprep.subr.mxu0 0.0
        %1398 = vmatpush1.xpose.msra.mxu0 0.0
        %1399 = vmatprep.subr.mxu0 0.0
        %1400 = vmatpush1.xpose.msra.mxu0 0.0
        %1401 = vmatprep.subr.mxu0 0.0
        %1402 = vmatpush1.xpose.msra.mxu0 0.0
        %1403 = vmatprep.subr.mxu0 0.0
        %1404 = vmatpush1.xpose.msra.mxu0 0.0
        %1405 = vmatprep.subr.mxu0 0.0
        %1406 = vmatpush1.xpose.msra.mxu0 0.0
        %1407 = vmatprep.subr.mxu0 0.0
        %1408 = vmatpush1.xpose.msra.mxu0 0.0
        %1409 = vmatprep.subr.mxu0 0.0
        %1410 = vmatpush1.xpose.msra.mxu0 0.0
        %1411 = vmatprep.subr.mxu0 0.0
        %1412 = vmatpush1.xpose.msra.mxu0 0.0
        %1413 = vmatprep.subr.mxu0 0.0
        %1414 = vmatpush1.xpose.msra.mxu0 0.0
        %1415 = vmatprep.subr.mxu0 0.0
        %1416 = vmatpush1.xpose.msra.mxu0 0.0
        %1417 = vmatprep.subr.mxu0 0.0
        %1418 = vmatpush1.xpose.msra.mxu0 0.0
        %1419 = vmatprep.subr.mxu0 0.0
        %1420 = vmatpush1.xpose.msra.mxu0 0.0
        %1421 = vmatprep.subr.mxu0 0.0
        %1422 = vmatpush1.xpose.msra.mxu0 0.0
        %1423 = vmatprep.subr.mxu0 0.0
        %1424 = vmatpush1.xpose.msra.mxu0 0.0
        %1425 = vmatprep.subr.mxu0 0.0
        %1426 = vmatpush1.xpose.msra.mxu0 0.0
        %1427 = vmatprep.subr.mxu0 0.0
        %1428 = vmatpush1.xpose.msra.mxu0 0.0
        %1429 = vmatprep.subr.mxu0 0.0
        %1430 = vmatpush1.xpose.msra.mxu0 0.0
        %1431 = vmatprep.subr.mxu0 0.0
        %1432 = vmatpush1.xpose.msra.mxu0 0.0
        %1433 = vmatprep.subr.mxu0 0.0
        %1434 = vmatpush1.xpose.msra.mxu0 0.0
        %1435 = vmatprep.subr.mxu0 0.0
        %1436 = vmatpush1.xpose.msra.mxu0 0.0
        %1437 = vmatprep.subr.mxu0 0.0
        %1438 = vmatpush1.xpose.msra.mxu0 0.0
        %1439 = vmatprep.subr.mxu0 0.0
        %1440 = vmatpush1.xpose.msra.mxu0 0.0
        %1441 = vmatprep.mubr.f32.mxu0 0.0
        %1442 = vmatmul.mubr.f32.gmra.mrb[0].mxu0 %v1373
        %v1443 = vpop.f32.mrb[0].mxu0
        %v1444 = vadd.f32 0.0, %v1443
        %v1445 = vpop.f32.mrb[0].mxu0
        %1446 = vdwg.mxu0
        %v1447 = vsel %vm877, %v1444, -inf
        %1448 = vmax.xlane.f32.xlu0 %v1447
        %v1449 = vpop.xlane.xlu0 %1448
        %v1450 = vsub.f32 %v1444, %v1449
        %v1451 = vmul.f32 %v1450, 1.442695
        %v1452 = vpow.pop %v1451
        %v1453 = vsel %vm877, %v1452, 0.0
        %1454 = vadd.xlane.f32.xlu0 %v1453
        %v1455 = vpop.xlane.xlu0 %1454
        %v1456 = vrcp.pop %v1455
        %v1457 = vmul.f32 %v1452, %v1456
        %1458 = vrot.lane.b32.xlu0 %v688, 104
        %v1459 = vpop.permute.xlu0 %1458
        %v1462 = vsel %vm877, %v1457, 0
        %1464 = vmatprep.subr.mxu0 0.0
        %1465 = vmatpush1.msra.mxu0 %v1459
        %1466 = vmatprep.subr.mxu0 0.0
        %1467 = vmatpush1.msra.mxu0 0.0
        %1468 = vmatprep.subr.mxu0 0.0
        %1469 = vmatpush1.msra.mxu0 0.0
        %1470 = vmatprep.subr.mxu0 0.0
        %1471 = vmatpush1.msra.mxu0 0.0
        %1472 = vmatprep.subr.mxu0 0.0
        %1473 = vmatpush1.msra.mxu0 0.0
        %1474 = vmatprep.subr.mxu0 0.0
        %1475 = vmatpush1.msra.mxu0 0.0
        %1476 = vmatprep.subr.mxu0 0.0
        %1477 = vmatpush1.msra.mxu0 0.0
        %1478 = vmatprep.subr.mxu0 0.0
        %1479 = vmatpush1.msra.mxu0 0.0
        %1480 = vmatprep.subr.mxu0 0.0
        %1481 = vmatpush1.msra.mxu0 0.0
        %1482 = vmatprep.subr.mxu0 0.0
        %1483 = vmatpush1.msra.mxu0 0.0
        %1484 = vmatprep.subr.mxu0 0.0
        %1485 = vmatpush1.msra.mxu0 0.0
        %1486 = vmatprep.subr.mxu0 0.0
        %1487 = vmatpush1.msra.mxu0 0.0
        %1488 = vmatprep.subr.mxu0 0.0
        %1489 = vmatpush1.msra.mxu0 0.0
        %1490 = vmatprep.subr.mxu0 0.0
        %1491 = vmatpush1.msra.mxu0 0.0
        %1492 = vmatprep.subr.mxu0 0.0
        %1493 = vmatpush1.msra.mxu0 0.0
        %1494 = vmatprep.subr.mxu0 0.0
        %1495 = vmatpush1.msra.mxu0 0.0
        %1496 = vmatprep.subr.mxu0 0.0
        %1497 = vmatpush1.msra.mxu0 0.0
        %1498 = vmatprep.subr.mxu0 0.0
        %1499 = vmatpush1.msra.mxu0 0.0
        %1500 = vmatprep.subr.mxu0 0.0
        %1501 = vmatpush1.msra.mxu0 0.0
        %1502 = vmatprep.subr.mxu0 0.0
        %1503 = vmatpush1.msra.mxu0 0.0
        %1504 = vmatprep.subr.mxu0 0.0
        %1505 = vmatpush1.msra.mxu0 0.0
        %1506 = vmatprep.subr.mxu0 0.0
        %1507 = vmatpush1.msra.mxu0 0.0
        %1508 = vmatprep.subr.mxu0 0.0
        %1509 = vmatpush1.msra.mxu0 0.0
        %1510 = vmatprep.subr.mxu0 0.0
        %1511 = vmatpush1.msra.mxu0 0.0
        %1512 = vmatprep.subr.mxu0 0.0
        %1513 = vmatpush1.msra.mxu0 0.0
        %1514 = vmatprep.subr.mxu0 0.0
        %1515 = vmatpush1.msra.mxu0 0.0
        %1516 = vmatprep.subr.mxu0 0.0
        %1517 = vmatpush1.msra.mxu0 0.0
        %1518 = vmatprep.subr.mxu0 0.0
        %1519 = vmatpush1.msra.mxu0 0.0
        %1520 = vmatprep.subr.mxu0 0.0
        %1521 = vmatpush1.msra.mxu0 0.0
        %1522 = vmatprep.subr.mxu0 0.0
        %1523 = vmatpush1.msra.mxu0 0.0
        %1524 = vmatprep.subr.mxu0 0.0
        %1525 = vmatpush1.msra.mxu0 0.0
        %1526 = vmatprep.subr.mxu0 0.0
        %1527 = vmatpush1.msra.mxu0 0.0
        %1528 = vmatprep.mubr.f32.mxu0 0.0
        %1529 = vmatmul.mubr.f32.gmra.mrb[0].mxu0 %v1462
        %v1530 = vpop.f32.mrb[0].mxu0
        %v1531 = vadd.f32 0.0, %v1530
        %v1532 = vpop.f32.mrb[0].mxu0
        %1533 = vdwg.mxu0
        %1535 = vrot.lane.b32.xlu0 %v1201, 8
        %v1536 = vpop.permute.xlu0 %1535
        %1539 = vrot.lane.b32.xlu0 %v1366, 16
        %v1540 = vpop.permute.xlu0 %1539
        %1543 = vrot.lane.b32.xlu0 %v1531, 24
        %v1544 = vpop.permute.xlu0 %1543
        %v1546 = vsel %vm877, %v1035, %v1536
        %vm1547 = vcmask 130048
        %v1548 = vsel %vm1547, %v1546, %v1540
        %vm1549 = vcmask 195584
        %v1550 = vsel %vm1549, %v1548, %v1544
        %vm1551 = vcmask 261120
        %v1552 = vsel %vm1551, %v1550, 0.0
        %v1553 = vld [vmem:[#allocation10] sm:$0xff]
        %v1554 = vld [vmem:[#allocation10 + $0x8] sm:$0xff]
        %v1555 = vld [vmem:[#allocation10 + $0x10] sm:$0xff]
        %v1556 = vld [vmem:[#allocation10 + $0x18] sm:$0xff]
        %v1557 = vld [vmem:[#allocation10 + $0x20] sm:$0xff]
        %v1558 = vld [vmem:[#allocation10 + $0x28] sm:$0xff]
        %v1559 = vld [vmem:[#allocation10 + $0x30] sm:$0xff]
        %v1560 = vld [vmem:[#allocation10 + $0x38] sm:$0xff]
        %v1561 = vld [vmem:[#allocation10 + $0x40] sm:$0xff]
        %v1562 = vld [vmem:[#allocation10 + $0x48] sm:$0xff]
        %v1563 = vld [vmem:[#allocation10 + $0x50] sm:$0xff]
        %v1564 = vld [vmem:[#allocation10 + $0x58] sm:$0xff]
        %v1565 = vld [vmem:[#allocation10 + $0x60] sm:$0xff]
        %v1566 = vld [vmem:[#allocation10 + $0x68] sm:$0xff]
        %v1567 = vld [vmem:[#allocation10 + $0x70] sm:$0xff]
        %v1568 = vld [vmem:[#allocation10 + $0x78] sm:$0xff]
        %v1569 = vld [vmem:[%s8] sm:$0x1]
        %v1571 = vlaneseq
        %v1572 = vshrl.u32 %v1571, 7
        %v1573 = vsub.s32 0, %v1572
        %v1574 = vrot.slane %v1569, %v1573
        %1576 = vmatprep.subr.mxu0 0.0
        %1577 = vmatpush1.msra.mxu0 %v1553
        %1578 = vmatprep.subr.mxu0 0.0
        %1579 = vmatpush1.msra.mxu0 %v1554
        %1580 = vmatprep.subr.mxu0 0.0
        %1581 = vmatpush1.msra.mxu0 %v1555
        %1582 = vmatprep.subr.mxu0 0.0
        %1583 = vmatpush1.msra.mxu0 %v1556
        %1584 = vmatprep.subr.mxu0 0.0
        %1585 = vmatpush1.msra.mxu0 %v1557
        %1586 = vmatprep.subr.mxu0 0.0
        %1587 = vmatpush1.msra.mxu0 %v1558
        %1588 = vmatprep.subr.mxu0 0.0
        %1589 = vmatpush1.msra.mxu0 %v1559
        %1590 = vmatprep.subr.mxu0 0.0
        %1591 = vmatpush1.msra.mxu0 %v1560
        %1592 = vmatprep.subr.mxu0 0.0
        %1593 = vmatpush1.msra.mxu0 %v1561
        %1594 = vmatprep.subr.mxu0 0.0
        %1595 = vmatpush1.msra.mxu0 %v1562
        %1596 = vmatprep.subr.mxu0 0.0
        %1597 = vmatpush1.msra.mxu0 %v1563
        %1598 = vmatprep.subr.mxu0 0.0
        %1599 = vmatpush1.msra.mxu0 %v1564
        %1600 = vmatprep.subr.mxu0 0.0
        %1601 = vmatpush1.msra.mxu0 %v1565
        %1602 = vmatprep.subr.mxu0 0.0
        %1603 = vmatpush1.msra.mxu0 %v1566
        %1604 = vmatprep.subr.mxu0 0.0
        %1605 = vmatpush1.msra.mxu0 %v1567
        %1606 = vmatprep.subr.mxu0 0.0
        %1607 = vmatpush1.msra.mxu0 %v1568
        %1608 = vmatprep.subr.mxu0 0.0
        %1609 = vmatpush1.msra.mxu0 0.0
        %1610 = vmatprep.subr.mxu0 0.0
        %1611 = vmatpush1.msra.mxu0 0.0
        %1612 = vmatprep.subr.mxu0 0.0
        %1613 = vmatpush1.msra.mxu0 0.0
        %1614 = vmatprep.subr.mxu0 0.0
        %1615 = vmatpush1.msra.mxu0 0.0
        %1616 = vmatprep.subr.mxu0 0.0
        %1617 = vmatpush1.msra.mxu0 0.0
        %1618 = vmatprep.subr.mxu0 0.0
        %1619 = vmatpush1.msra.mxu0 0.0
        %1620 = vmatprep.subr.mxu0 0.0
        %1621 = vmatpush1.msra.mxu0 0.0
        %1622 = vmatprep.subr.mxu0 0.0
        %1623 = vmatpush1.msra.mxu0 0.0
        %1624 = vmatprep.subr.mxu0 0.0
        %1625 = vmatpush1.msra.mxu0 0.0
        %1626 = vmatprep.subr.mxu0 0.0
        %1627 = vmatpush1.msra.mxu0 0.0
        %1628 = vmatprep.subr.mxu0 0.0
        %1629 = vmatpush1.msra.mxu0 0.0
        %1630 = vmatprep.subr.mxu0 0.0
        %1631 = vmatpush1.msra.mxu0 0.0
        %1632 = vmatprep.subr.mxu0 0.0
        %1633 = vmatpush1.msra.mxu0 0.0
        %1634 = vmatprep.subr.mxu0 0.0
        %1635 = vmatpush1.msra.mxu0 0.0
        %1636 = vmatprep.subr.mxu0 0.0
        %1637 = vmatpush1.msra.mxu0 0.0
        %1638 = vmatprep.subr.mxu0 0.0
        %1639 = vmatpush1.msra.mxu0 0.0
        %1640 = vmatprep.mubr.f32.mxu0 0.0
        %1641 = vmatmul.mubr.f32.gmra.mrb[0].mxu0 %v1552
        %v1642 = vpop.f32.mrb[0].mxu0
        %v1643 = vadd.f32 %v1574, %v1642
        %v1644 = vpop.f32.mrb[0].mxu0
        %1645 = vdwg.mxu0
        %v1646 = vlaneseq
        %v1647 = vand.u32 %v1646, 127
        %vm1648 = vcmp.lt.s32.totalorder %v1647, 32
        %v1649 = vsel %vm1648, 1, 0
        %v1650 = vcvt.s32.f32 %v1649
        %v1651 = vld [vmem:[%s13] sm:$0x1]
        %v1652 = vld [vmem:[%s14] sm:$0x1]
        %v1653 = vadd.f32 %v1643, %v597
        %1654 = vadd.xlane.f32.xlu0 %v1653
        %v1655 = vpop.xlane.xlu0 %1654
        %v1656 = vmul.f32 %v1655, 0.03125
        %v1657 = vsub.f32 %v1653, %v1656
        %v1658 = vmul.f32 %v1657, %v1650
        %v1659 = vmul.f32 %v1658, %v1658
        %1660 = vadd.xlane.f32.xlu0 %v1659
        %v1661 = vpop.xlane.xlu0 %1660
        %v1662 = vmul.f32 %v1661, 0.03125
        %v1663 = vadd.f32 %v1662, 1e-05
        %v1664 = vrsqrt.pop %v1663
        %v1665 = vmul.f32 %v1658, %v1664
        %v1667 = vlaneseq
        %v1668 = vshrl.u32 %v1667, 7
        %v1669 = vsub.s32 0, %v1668
        %v1670 = vrot.slane %v1651, %v1669
        %v1672 = vmul.f32 %v1665, %v1670
        %v1674 = vlaneseq
        %v1675 = vshrl.u32 %v1674, 7
        %v1676 = vsub.s32 0, %v1675
        %v1677 = vrot.slane %v1652, %v1676
        %v1679 = vadd.f32 %v1672, %v1677
        %v1680 = vld [vmem:[#allocation11] sm:$0xff]
        %v1681 = vld [vmem:[#allocation11 + $0x8] sm:$0xff]
        %v1682 = vld [vmem:[#allocation11 + $0x10] sm:$0xff]
        %v1683 = vld [vmem:[#allocation11 + $0x18] sm:$0xff]
        %v1684 = vld [vmem:[#allocation11 + $0x20] sm:$0xff]
        %v1685 = vld [vmem:[#allocation11 + $0x28] sm:$0xff]
        %v1686 = vld [vmem:[#allocation11 + $0x30] sm:$0xff]
        %v1687 = vld [vmem:[#allocation11 + $0x38] sm:$0xff]
        %v1688 = vld [vmem:[#allocation11 + $0x40] sm:$0xff]
        %v1689 = vld [vmem:[#allocation11 + $0x48] sm:$0xff]
        %v1690 = vld [vmem:[#allocation11 + $0x50] sm:$0xff]
        %v1691 = vld [vmem:[#allocation11 + $0x58] sm:$0xff]
        %v1692 = vld [vmem:[#allocation11 + $0x60] sm:$0xff]
        %v1693 = vld [vmem:[#allocation11 + $0x68] sm:$0xff]
        %v1694 = vld [vmem:[#allocation11 + $0x70] sm:$0xff]
        %v1695 = vld [vmem:[#allocation11 + $0x78] sm:$0xff]
        %v1696 = vld [vmem:[%s10] sm:$0x1]
        %v1698 = vlaneseq
        %v1699 = vshrl.u32 %v1698, 7
        %v1700 = vsub.s32 0, %v1699
        %v1701 = vrot.slane %v1696, %v1700
        %1703 = vmatprep.subr.mxu0 0.0
        %1704 = vmatpush1.msra.mxu0 %v1680
        %1705 = vmatprep.subr.mxu0 0.0
        %1706 = vmatpush1.msra.mxu0 %v1681
        %1707 = vmatprep.subr.mxu0 0.0
        %1708 = vmatpush1.msra.mxu0 %v1682
        %1709 = vmatprep.subr.mxu0 0.0
        %1710 = vmatpush1.msra.mxu0 %v1683
        %1711 = vmatprep.subr.mxu0 0.0
        %1712 = vmatpush1.msra.mxu0 %v1684
        %1713 = vmatprep.subr.mxu0 0.0
        %1714 = vmatpush1.msra.mxu0 %v1685
        %1715 = vmatprep.subr.mxu0 0.0
        %1716 = vmatpush1.msra.mxu0 %v1686
        %1717 = vmatprep.subr.mxu0 0.0
        %1718 = vmatpush1.msra.mxu0 %v1687
        %1719 = vmatprep.subr.mxu0 0.0
        %1720 = vmatpush1.msra.mxu0 %v1688
        %1721 = vmatprep.subr.mxu0 0.0
        %1722 = vmatpush1.msra.mxu0 %v1689
        %1723 = vmatprep.subr.mxu0 0.0
        %1724 = vmatpush1.msra.mxu0 %v1690
        %1725 = vmatprep.subr.mxu0 0.0
        %1726 = vmatpush1.msra.mxu0 %v1691
        %1727 = vmatprep.subr.mxu0 0.0
        %1728 = vmatpush1.msra.mxu0 %v1692
        %1729 = vmatprep.subr.mxu0 0.0
        %1730 = vmatpush1.msra.mxu0 %v1693
        %1731 = vmatprep.subr.mxu0 0.0
        %1732 = vmatpush1.msra.mxu0 %v1694
        %1733 = vmatprep.subr.mxu0 0.0
        %1734 = vmatpush1.msra.mxu0 %v1695
        %1735 = vmatprep.subr.mxu0 0.0
        %1736 = vmatpush1.msra.mxu0 0.0
        %1737 = vmatprep.subr.mxu0 0.0
        %1738 = vmatpush1.msra.mxu0 0.0
        %1739 = vmatprep.subr.mxu0 0.0
        %1740 = vmatpush1.msra.mxu0 0.0
        %1741 = vmatprep.subr.mxu0 0.0
        %1742 = vmatpush1.msra.mxu0 0.0
        %1743 = vmatprep.subr.mxu0 0.0
        %1744 = vmatpush1.msra.mxu0 0.0
        %1745 = vmatprep.subr.mxu0 0.0
        %1746 = vmatpush1.msra.mxu0 0.0
        %1747 = vmatprep.subr.mxu0 0.0
        %1748 = vmatpush1.msra.mxu0 0.0
        %1749 = vmatprep.subr.mxu0 0.0
        %1750 = vmatpush1.msra.mxu0 0.0
        %1751 = vmatprep.subr.mxu0 0.0
        %1752 = vmatpush1.msra.mxu0 0.0
        %1753 = vmatprep.subr.mxu0 0.0
        %1754 = vmatpush1.msra.mxu0 0.0
        %1755 = vmatprep.subr.mxu0 0.0
        %1756 = vmatpush1.msra.mxu0 0.0
        %1757 = vmatprep.subr.mxu0 0.0
        %1758 = vmatpush1.msra.mxu0 0.0
        %1759 = vmatprep.subr.mxu0 0.0
        %1760 = vmatpush1.msra.mxu0 0.0
        %1761 = vmatprep.subr.mxu0 0.0
        %1762 = vmatpush1.msra.mxu0 0.0
        %1763 = vmatprep.subr.mxu0 0.0
        %1764 = vmatpush1.msra.mxu0 0.0
        %1765 = vmatprep.subr.mxu0 0.0
        %1766 = vmatpush1.msra.mxu0 0.0
        %1767 = vmatprep.mubr.f32.mxu0 0.0
        %1768 = vmatmul.mubr.f32.gmra.mrb[0].mxu0 %v1679
        %v1769 = vpop.f32.mrb[0].mxu0
        %v1770 = vadd.f32 %v1701, %v1769
        %v1771 = vpop.f32.mrb[0].mxu0
        %1772 = vdwg.mxu0
        %v1773 = vmax.f32 %v1770, 0.0
        %v1774 = vld [vmem:[#allocation13] sm:$0xff]
        %v1775 = vld [vmem:[#allocation13 + $0x8] sm:$0xff]
        %v1776 = vld [vmem:[#allocation13 + $0x10] sm:$0xff]
        %v1777 = vld [vmem:[#allocation13 + $0x18] sm:$0xff]
        %v1778 = vld [vmem:[#allocation13 + $0x20] sm:$0xff]
        %v1779 = vld [vmem:[#allocation13 + $0x28] sm:$0xff]
        %v1780 = vld [vmem:[#allocation13 + $0x30] sm:$0xff]
        %v1781 = vld [vmem:[#allocation13 + $0x38] sm:$0xff]
        %v1782 = vld [vmem:[#allocation13 + $0x40] sm:$0xff]
        %v1783 = vld [vmem:[#allocation13 + $0x48] sm:$0xff]
        %v1784 = vld [vmem:[#allocation13 + $0x50] sm:$0xff]
        %v1785 = vld [vmem:[#allocation13 + $0x58] sm:$0xff]
        %v1786 = vld [vmem:[#allocation13 + $0x60] sm:$0xff]
        %v1787 = vld [vmem:[#allocation13 + $0x68] sm:$0xff]
        %v1788 = vld [vmem:[#allocation13 + $0x70] sm:$0xff]
        %v1789 = vld [vmem:[#allocation13 + $0x78] sm:$0xff]
        %v1790 = vld [vmem:[%s12] sm:$0x1]
        %v1792 = vlaneseq
        %v1793 = vshrl.u32 %v1792, 7
        %v1794 = vsub.s32 0, %v1793
        %v1795 = vrot.slane %v1790, %v1794
        %1797 = vmatprep.subr.mxu0 0.0
        %1798 = vmatpush1.msra.mxu0 %v1774
        %1799 = vmatprep.subr.mxu0 0.0
        %1800 = vmatpush1.msra.mxu0 %v1775
        %1801 = vmatprep.subr.mxu0 0.0
        %1802 = vmatpush1.msra.mxu0 %v1776
        %1803 = vmatprep.subr.mxu0 0.0
        %1804 = vmatpush1.msra.mxu0 %v1777
        %1805 = vmatprep.subr.mxu0 0.0
        %1806 = vmatpush1.msra.mxu0 %v1778
        %1807 = vmatprep.subr.mxu0 0.0
        %1808 = vmatpush1.msra.mxu0 %v1779
        %1809 = vmatprep.subr.mxu0 0.0
        %1810 = vmatpush1.msra.mxu0 %v1780
        %1811 = vmatprep.subr.mxu0 0.0
        %1812 = vmatpush1.msra.mxu0 %v1781
        %1813 = vmatprep.subr.mxu0 0.0
        %1814 = vmatpush1.msra.mxu0 %v1782
        %1815 = vmatprep.subr.mxu0 0.0
        %1816 = vmatpush1.msra.mxu0 %v1783
        %1817 = vmatprep.subr.mxu0 0.0
        %1818 = vmatpush1.msra.mxu0 %v1784
        %1819 = vmatprep.subr.mxu0 0.0
        %1820 = vmatpush1.msra.mxu0 %v1785
        %1821 = vmatprep.subr.mxu0 0.0
        %1822 = vmatpush1.msra.mxu0 %v1786
        %1823 = vmatprep.subr.mxu0 0.0
        %1824 = vmatpush1.msra.mxu0 %v1787
        %1825 = vmatprep.subr.mxu0 0.0
        %1826 = vmatpush1.msra.mxu0 %v1788
        %1827 = vmatprep.subr.mxu0 0.0
        %1828 = vmatpush1.msra.mxu0 %v1789
        %1829 = vmatprep.subr.mxu0 0.0
        %1830 = vmatpush1.msra.mxu0 0.0
        %1831 = vmatprep.subr.mxu0 0.0
        %1832 = vmatpush1.msra.mxu0 0.0
        %1833 = vmatprep.subr.mxu0 0.0
        %1834 = vmatpush1.msra.mxu0 0.0
        %1835 = vmatprep.subr.mxu0 0.0
        %1836 = vmatpush1.msra.mxu0 0.0
        %1837 = vmatprep.subr.mxu0 0.0
        %1838 = vmatpush1.msra.mxu0 0.0
        %1839 = vmatprep.subr.mxu0 0.0
        %1840 = vmatpush1.msra.mxu0 0.0
        %1841 = vmatprep.subr.mxu0 0.0
        %1842 = vmatpush1.msra.mxu0 0.0
        %1843 = vmatprep.subr.mxu0 0.0
        %1844 = vmatpush1.msra.mxu0 0.0
        %1845 = vmatprep.subr.mxu0 0.0
        %1846 = vmatpush1.msra.mxu0 0.0
        %1847 = vmatprep.subr.mxu0 0.0
        %1848 = vmatpush1.msra.mxu0 0.0
        %1849 = vmatprep.subr.mxu0 0.0
        %1850 = vmatpush1.msra.mxu0 0.0
        %1851 = vmatprep.subr.mxu0 0.0
        %1852 = vmatpush1.msra.mxu0 0.0
        %1853 = vmatprep.subr.mxu0 0.0
        %1854 = vmatpush1.msra.mxu0 0.0
        %1855 = vmatprep.subr.mxu0 0.0
        %1856 = vmatpush1.msra.mxu0 0.0
        %1857 = vmatprep.subr.mxu0 0.0
        %1858 = vmatpush1.msra.mxu0 0.0
        %1859 = vmatprep.subr.mxu0 0.0
        %1860 = vmatpush1.msra.mxu0 0.0
        %1861 = vmatprep.mubr.f32.mxu0 0.0
        %1862 = vmatmul.mubr.f32.gmra.mrb[0].mxu0 %v1773
        %v1863 = vpop.f32.mrb[0].mxu0
        %v1864 = vadd.f32 %v1795, %v1863
        %v1865 = vpop.f32.mrb[0].mxu0
        %1866 = vdwg.mxu0
        %v1867 = vadd.f32 %v1864, %v1679
        %1868 = vadd.xlane.f32.xlu0 %v1867
        %v1869 = vpop.xlane.xlu0 %1868
        %v1870 = vmul.f32 %v1869, 0.03125
        %v1871 = vsub.f32 %v1867, %v1870
        %v1872 = vmul.f32 %v1871, %v1650
        %v1873 = vmul.f32 %v1872, %v1872
        %1874 = vadd.xlane.f32.xlu0 %v1873
        %v1875 = vpop.xlane.xlu0 %1874
        %v1876 = vmul.f32 %v1875, 0.03125
        %v1877 = vadd.f32 %v1876, 1e-05
        %v1878 = vrsqrt.pop %v1877
        %v1879 = vmul.f32 %v1872, %v1878
        %v1880 = vmul.f32 %v1879, %v1670
        %v1881 = vadd.f32 %v1880, %v1677
        %1882 = vst [vmem:[%s596] sm:$0xff] %v1881
        %s1883 = sand.u32 %s363, 1
        %s1884 = scalar_lea.sflag [#allocation4], %s1883
        %s1885 = sand.u32 %s363, 1
        %s1886 = smul.addr %s1885, 8
        %s1887 = scalar_lea.vmem [#allocation14], %s1886
        // Predicated region
        $region109: #{tpu_custom_call.1} parent=79 // pred_check
          %p1888 = pneg %p373
        $region110: #{tpu_custom_call.1} parent=79 // pred_check_branch
          %1890 = sbr.rel (%p1888) target = $region112
        $region111: #{tpu_custom_call.1} parent=79 // pred_region
          %s1892 = ssub.s32 128, 128
          %1893 = vsyncadd %s1884, %s1892
          %s1894 = smul.addr %s35, 128
          %s1895 = scalar_lea.hbm %s15, %s1894
          %s1897 = sshll.u32 %s1887, 4
          %s1898 = int_to_ptr.vmem [resolvable:$true] %s1897
          %1900 = dma.vmem_to_hbm [thread:$0]  %s1898, 128, %s1895, %s1884
        $region112: #{tpu_custom_call.1} parent=79 // pred_fallthru
          _
      $region80: #{tpu_custom_call.1} parent=5 // pred_fallthru
        _
      %p1901 = scmp.le.s32.totalorder 2, %s30
      // Predicated region
      $region113: #{tpu_custom_call.1} parent=5 // pred_check
        %p1902 = pneg %p1901
      $region114: #{tpu_custom_call.1} parent=5 // pred_check_branch
        %1904 = sbr.rel (%p1902) target = $region116
      $region115: #{tpu_custom_call.1} parent=5 // pred_region
        %s1905 = ssub.s32 %s30, 2
        // Predicated region
        $region117: #{tpu_custom_call.1} parent=115 // pred_check
          %p1906 = pneg %p379
        $region118: #{tpu_custom_call.1} parent=115 // pred_check_branch
          %1908 = sbr.rel (%p1906) target = $region120
        $region119: #{tpu_custom_call.1} parent=115 // pred_region
          %s1909 = sand.u32 %s364, 1
          %s1910 = scalar_lea.sflag [#allocation4], %s1909
          %s1911 = sand.u32 %s364, 1
          %s1912 = smul.addr %s1911, 8
          %s1913 = scalar_lea.vmem [#allocation14], %s1912
          %1914 = dma.done %s1910, 128
        $region120: #{tpu_custom_call.1} parent=115 // pred_fallthru
          _
      $region116: #{tpu_custom_call.1} parent=5 // pred_fallthru
        _
    $region6: #{tpu_custom_call.1} parent=1 // loop_footer
      %s34 = sadd.s32 1, %s30
    $region7: #{tpu_custom_call.1} parent=1 // loop_footer_branch
      %29 = sbr.rel target = $region3
    $region8: #{tpu_custom_call.1} parent=1 // loop_exit
      _
    %1915 = vsyncpa [#allocation3], 1
    %s1916 = scalar_lea.sflag [#allocation3], 1
    %1917 = vsyncpa %s1916, 1
    %1918 = vsyncpa [#allocation6], 1
    %1919 = vsyncpa [#allocation9], 1
    %1920 = vsyncpa [#allocation12], 1
    %1921 = vsyncpa [#allocation4], 1
    %s1922 = scalar_lea.sflag [#allocation4], 1
    %1923 = vsyncpa %s1922, 1

</llo_original>
